<compile_context>
chip_gen: v7x
topology: tpu7x:2x2x1
jax: 0.10.0
libtpu: 0.0.40
codegen_flags: <defaults>
</compile_context>

<pallas_src>
import jax
import jax.numpy as jnp
from jax.experimental import pallas as pl
from jax.experimental.pallas import tpu as pltpu


# ----------------------------------------------------------------------------
# Pallas kernels
# ----------------------------------------------------------------------------
def _make_conv_relu_pool_kernel(num_pool_pos):
    """Fused: conv (single big-K matmul per pool position) + bias + ReLU + maxpool."""

    def kernel(taps_ref, w_ref, b_ref, out_ref):
        # taps_ref: (P, TILE_P, K), w_ref: (K, Cout), b_ref: (1, Cout)
        w = w_ref[...]
        acc = jnp.dot(taps_ref[0], w, preferred_element_type=jnp.float32)
        for pp in range(1, num_pool_pos):  # static unroll over the 4 pool positions
            acc = jnp.maximum(
                acc, jnp.dot(taps_ref[pp], w, preferred_element_type=jnp.float32)
            )
        # maxpool(relu(conv + b)) == relu(max_pp(conv_pp) + b)
        out_ref[...] = jnp.maximum(acc + b_ref[...], 0.0).astype(out_ref.dtype)

    return kernel


def _linear_kernel(x_ref, w_ref, b_ref, out_ref):
    out_ref[...] = (
        jnp.dot(x_ref[...], w_ref[...], preferred_element_type=jnp.float32)
        + b_ref[...]
    ).astype(out_ref.dtype)


# ----------------------------------------------------------------------------
# pallas_call wrappers
# ----------------------------------------------------------------------------
def conv_relu_pool(taps, w, b, tile_p=256):
    """taps: (P, Mp, K)  w: (K, Cout)  b: (Cout,)  ->  (Mp, Cout) pooled rows."""
    P, Mp, K = taps.shape
    Cout = w.shape[-1]
    if Mp % tile_p != 0:
        tile_p = Mp  # small layers: one whole-array block
    grid = (Mp // tile_p,)
    b2 = b.reshape(1, Cout)
    kernel = _make_conv_relu_pool_kernel(P)
    return pl.pallas_call(
        kernel,
        out_shape=jax.ShapeDtypeStruct((Mp, Cout), jnp.float32),
        grid=grid,
        in_specs=[
            pl.BlockSpec((P, tile_p, K), lambda i: (0, i, 0)),
            pl.BlockSpec((K, Cout), lambda i: (0, 0)),
            pl.BlockSpec((1, Cout), lambda i: (0, 0)),
        ],
        out_specs=pl.BlockSpec((tile_p, Cout), lambda i: (i, 0)),
        compiler_params=pltpu.CompilerParams(dimension_semantics=("parallel",)),
    )(taps, w, b2)


def linear(x, w, b):
    M, K = x.shape
    Cout = w.shape[-1]
    b2 = b.reshape(1, Cout)
    return pl.pallas_call(
        _linear_kernel,
        out_shape=jax.ShapeDtypeStruct((M, Cout), jnp.float32),
        grid=(1,),
        in_specs=[
            pl.BlockSpec((M, K), lambda i: (0, 0)),
            pl.BlockSpec((K, Cout), lambda i: (0, 0)),
            pl.BlockSpec((1, Cout), lambda i: (0, 0)),
        ],
        out_specs=pl.BlockSpec((M, Cout), lambda i: (0, 0)),
        compiler_params=pltpu.CompilerParams(dimension_semantics=("arbitrary",)),
    )(x, w, b2)


# ----------------------------------------------------------------------------
# JAX glue: im2col in concatenated, pool-position-major layout (static slices)
# ----------------------------------------------------------------------------
def _im2col_pool(x, ksize, pad, pool):
    """x: (N,H,W,C), stride-1 conv with `pad`, then pool x pool maxpool.

    Returns taps of shape (pool*pool, N*Hp*Wp, ksize*ksize*C), where the
    leading axis enumerates the pool-window position (ph*pool+pw), rows are
    ordered (n, hp, wp), and the K axis is ordered (kh, kw, c) to match
    conv_w.reshape(ksize*ksize*C, Cout) for an HWIO weight.
    """
    N, H, W, C = x.shape
    Ho, Wo = H, W                       # stride 1, "same" padding
    Hp, Wp = Ho // pool, Wo // pool
    xp = jnp.pad(x, ((0, 0), (pad, pad), (pad, pad), (0, 0)))
    cols = []
    for kh in range(ksize):             # static Python ints only
        for kw in range(ksize):
            cols.append(xp[:, kh:kh + Ho, kw:kw + Wo, :])
    patches = jnp.concatenate(cols, axis=-1)            # (N, Ho, Wo, K)
    K = ksize * ksize * C
    patches = patches.reshape(N, Hp, pool, Wp, pool, K)
    patches = patches.transpose(2, 4, 0, 1, 3, 5)       # (ph, pw, N, Hp, Wp, K)
    taps = patches.reshape(pool * pool, N * Hp * Wp, K)
    return taps, (N, Hp, Wp)


# ----------------------------------------------------------------------------
# Parameters (HWIO conv weights; fc_w rows indexed in PyTorch NCHW-flatten order)
# ----------------------------------------------------------------------------
def init_params(key, input_channels=3, num_classes=10):
    ks = jax.random.split(key, 6)

    def conv_w(k, kh, kw, cin, cout):
        fan_in = kh * kw * cin
        return jax.random.normal(k, (kh, kw, cin, cout), jnp.float32) * (2.0 / fan_in) ** 0.5

    return {
        "conv1_w": conv_w(ks[0], 7, 7, input_channels, 8),
        "conv1_b": 0.01 * jax.random.normal(ks[1], (8,), jnp.float32),
        "conv2_w": conv_w(ks[2], 7, 7, 8, 16),
        "conv2_b": 0.01 * jax.random.normal(ks[3], (16,), jnp.float32),
        "fc_w": jax.random.normal(ks[4], (16 * 8 * 8, num_classes), jnp.float32)
        * (1.0 / (16 * 8 * 8)) ** 0.5,
        "fc_b": 0.01 * jax.random.normal(ks[5], (num_classes,), jnp.float32),
    }


# ----------------------------------------------------------------------------
# Model forward
# ----------------------------------------------------------------------------
def cnn_forward(x_nchw, params):
    x = jnp.transpose(x_nchw, (0, 2, 3, 1)).astype(jnp.float32)  # NCHW -> NHWC
    N, _, _, cin = x.shape

    # layer 1: conv7x7(pad=3) + ReLU + maxpool(2,2), fused in one kernel
    taps1, (_, Hp1, Wp1) = _im2col_pool(x, 7, 3, 2)
    w1 = params["conv1_w"].reshape(7 * 7 * cin, 8)
    out1 = conv_relu_pool(taps1, w1, params["conv1_b"])
    out1 = out1.reshape(N, Hp1, Wp1, 8)

    # layer 2: conv7x7(pad=3) + ReLU + maxpool(2,2), fused in one kernel
    taps2, (_, Hp2, Wp2) = _im2col_pool(out1, 7, 3, 2)
    w2 = params["conv2_w"].reshape(7 * 7 * 8, 16)
    out2 = conv_relu_pool(taps2, w2, params["conv2_b"])        # (N*Hp2*Wp2, 16)

    # flatten: kernel output is NHWC-ordered; permute fc_w rows from PyTorch's
    # NCHW-flatten order (c,h,w) to (h,w,c) so a plain matmul matches nn.Linear.
    num_classes = params["fc_w"].shape[-1]
    fc_w_hwc = (
        params["fc_w"]
        .reshape(16, Hp2, Wp2, num_classes)
        .transpose(1, 2, 0, 3)
        .reshape(Hp2 * Wp2 * 16, num_classes)
    )
    flat = out2.reshape(N, Hp2 * Wp2 * 16)
    # TODO(synk): FC could be fused into the layer-2 kernel epilogue to save one
    # launch, but that requires an in-kernel (N*Hp*Wp,16)->(N,1024) relayout.
    return linear(flat, fc_w_hwc, params["fc_b"])


# ----------------------------------------------------------------------------
# Pure-JAX reference (for correctness check)
# ----------------------------------------------------------------------------
def ref_forward(x_nchw, params):
    x = jnp.transpose(x_nchw, (0, 2, 3, 1)).astype(jnp.float32)

    def conv_relu(x, w, b):
        y = jax.lax.conv_general_dilated(
            x, w, (1, 1), ((3, 3), (3, 3)),
            dimension_numbers=("NHWC", "HWIO", "NHWC"),
            precision=jax.lax.Precision.HIGHEST,
        ) + b
        return jnp.maximum(y, 0.0)

    def pool(x):
        N, H, W, C = x.shape
        return x.reshape(N, H // 2, 2, W // 2, 2, C).max(axis=(2, 4))

    out = pool(conv_relu(x, params["conv1_w"], params["conv1_b"]))
    out = pool(conv_relu(out, params["conv2_w"], params["conv2_b"]))
    N = out.shape[0]
    flat = jnp.transpose(out, (0, 3, 1, 2)).reshape(N, -1)  # PyTorch NCHW flatten
    return (
        jnp.dot(flat, params["fc_w"], precision=jax.lax.Precision.HIGHEST)
        + params["fc_b"]
    )


# ----------------------------------------------------------------------------
if __name__ == "__main__":
    key = jax.random.PRNGKey(0)
    k_param, k_x = jax.random.split(key)
    params = init_params(k_param, input_channels=3, num_classes=10)
    # fc expects 16*8*8 features -> 32x32 input spatial (two 2x maxpools)
    x = jax.random.normal(k_x, (2, 3, 32, 32), jnp.float32)  # NCHW like PyTorch

    logits = jax.block_until_ready(jax.jit(cnn_forward)(x, params))
    assert logits.shape == (2, 10)

    ref = jax.block_until_ready(ref_forward(x, params))
    assert jnp.allclose(logits, ref, rtol=1e-2, atol=1e-2), (logits, ref)

    print("KERNEL_OK")
</pallas_src>

<mosaic_0001>
module attributes {stable_mosaic.version = 11 : i64} {
  func.func @kernel(%arg0: i32, %arg1: memref<4x256x147xf32, #tpu.memory_space<vmem>>, %arg2: memref<147x8xf32, #tpu.memory_space<vmem>>, %arg3: memref<1x8xf32, #tpu.memory_space<vmem>>, %arg4: memref<256x8xf32, #tpu.memory_space<vmem>>) attributes {dimension_semantics = [#tpu.dimension_semantics<parallel>], iteration_bounds = array<i64: 2>, scalar_prefetch = 0 : i64, scratch_operands = 0 : i64, tpu.core_type = #tpu.core_type<tc>, window_params = [{transform_indices = @transform_0, window_bounds = array<i64: 4, 256, 147>}, {pipeline_mode = #tpu.pipeline_mode<synchronous>, transform_indices = @transform_1, window_bounds = array<i64: 147, 8>}, {pipeline_mode = #tpu.pipeline_mode<synchronous>, transform_indices = @transform_2, window_bounds = array<i64: 1, 8>}, {transform_indices = @transform_3, window_bounds = array<i64: 256, 8>}]} {
    %c0 = arith.constant 0 : index
    %c0_0 = arith.constant 0 : index
    %0 = vector.load %arg2[%c0, %c0_0] : memref<147x8xf32, #tpu.memory_space<vmem>>, vector<147x8xf32>
    %c0_1 = arith.constant 0 : index
    %c0_2 = arith.constant 0 : index
    %c0_3 = arith.constant 0 : index
    %1 = vector.load %arg1[%c0_1, %c0_2, %c0_3] : memref<4x256x147xf32, #tpu.memory_space<vmem>>, vector<1x256x147xf32>
    %2 = vector.shape_cast %1 : vector<1x256x147xf32> to vector<256x147xf32>
    %cst = arith.constant dense<0.000000e+00> : vector<256x8xf32>
    %3 = tpu.matmul %2, %0, %cst {dimension_numbers = #tpu.dot_dimension_numbers<[1], [0], [0], [1], [0, 0, 1, 1], [], []>} : vector<256x147xf32>, vector<147x8xf32>, vector<256x8xf32> -> vector<256x8xf32>
    %c1 = arith.constant 1 : index
    %c0_4 = arith.constant 0 : index
    %c0_5 = arith.constant 0 : index
    %4 = vector.load %arg1[%c1, %c0_4, %c0_5] : memref<4x256x147xf32, #tpu.memory_space<vmem>>, vector<1x256x147xf32>
    %5 = vector.shape_cast %4 : vector<1x256x147xf32> to vector<256x147xf32>
    %cst_6 = arith.constant dense<0.000000e+00> : vector<256x8xf32>
    %6 = tpu.matmul %5, %0, %cst_6 {dimension_numbers = #tpu.dot_dimension_numbers<[1], [0], [0], [1], [0, 0, 1, 1], [], []>} : vector<256x147xf32>, vector<147x8xf32>, vector<256x8xf32> -> vector<256x8xf32>
    %7 = arith.maximumf %3, %6 : vector<256x8xf32>
    %c2 = arith.constant 2 : index
    %c0_7 = arith.constant 0 : index
    %c0_8 = arith.constant 0 : index
    %8 = vector.load %arg1[%c2, %c0_7, %c0_8] : memref<4x256x147xf32, #tpu.memory_space<vmem>>, vector<1x256x147xf32>
    %9 = vector.shape_cast %8 : vector<1x256x147xf32> to vector<256x147xf32>
    %cst_9 = arith.constant dense<0.000000e+00> : vector<256x8xf32>
    %10 = tpu.matmul %9, %0, %cst_9 {dimension_numbers = #tpu.dot_dimension_numbers<[1], [0], [0], [1], [0, 0, 1, 1], [], []>} : vector<256x147xf32>, vector<147x8xf32>, vector<256x8xf32> -> vector<256x8xf32>
    %11 = arith.maximumf %7, %10 : vector<256x8xf32>
    %c3 = arith.constant 3 : index
    %c0_10 = arith.constant 0 : index
    %c0_11 = arith.constant 0 : index
    %12 = vector.load %arg1[%c3, %c0_10, %c0_11] : memref<4x256x147xf32, #tpu.memory_space<vmem>>, vector<1x256x147xf32>
    %13 = vector.shape_cast %12 : vector<1x256x147xf32> to vector<256x147xf32>
    %cst_12 = arith.constant dense<0.000000e+00> : vector<256x8xf32>
    %14 = tpu.matmul %13, %0, %cst_12 {dimension_numbers = #tpu.dot_dimension_numbers<[1], [0], [0], [1], [0, 0, 1, 1], [], []>} : vector<256x147xf32>, vector<147x8xf32>, vector<256x8xf32> -> vector<256x8xf32>
    %15 = arith.maximumf %11, %14 : vector<256x8xf32>
    %c0_13 = arith.constant 0 : index
    %c0_14 = arith.constant 0 : index
    %16 = vector.load %arg3[%c0_13, %c0_14] : memref<1x8xf32, #tpu.memory_space<vmem>>, vector<1x8xf32>
    %17 = vector.broadcast %16 : vector<1x8xf32> to vector<256x8xf32>
    %18 = arith.addf %15, %17 : vector<256x8xf32>
    %cst_15 = arith.constant 0.000000e+00 : f32
    %19 = vector.broadcast %cst_15 : f32 to vector<256x8xf32>
    %20 = arith.maximumf %18, %19 : vector<256x8xf32>
    %c0_16 = arith.constant 0 : index
    %c0_17 = arith.constant 0 : index
    %21 = vector.load %arg4[%c0_16, %c0_17] : memref<256x8xf32, #tpu.memory_space<vmem>>, vector<256x8xf32>
    tpu.vector_store %arg4[%c0_16, %c0_17], %20 {strides = array<i32>} : memref<256x8xf32, #tpu.memory_space<vmem>>, vector<256x8xf32>,
    return
  }
  func.func @transform_0(%arg0: i32) -> (i32, i32, i32) {
    %c0_i32 = arith.constant 0 : i32
    %c0_i32_0 = arith.constant 0 : i32
    %c0_i32_1 = arith.constant 0 : i32
    return %c0_i32, %arg0, %c0_i32_0 : i32, i32, i32
  }
  func.func @transform_1(%arg0: i32) -> (i32, i32) {
    %c0_i32 = arith.constant 0 : i32
    %c0_i32_0 = arith.constant 0 : i32
    %c0_i32_1 = arith.constant 0 : i32
    return %c0_i32, %c0_i32_0 : i32, i32
  }
  func.func @transform_2(%arg0: i32) -> (i32, i32) {
    %c0_i32 = arith.constant 0 : i32
    %c0_i32_0 = arith.constant 0 : i32
    %c0_i32_1 = arith.constant 0 : i32
    return %c0_i32, %c0_i32_0 : i32, i32
  }
  func.func @transform_3(%arg0: i32) -> (i32, i32) {
    %c0_i32 = arith.constant 0 : i32
    %c0_i32_0 = arith.constant 0 : i32
    return %arg0, %c0_i32 : i32, i32
  }
}

module attributes {stable_mosaic.version = 11 : i64} {
  func.func @kernel(%arg0: i32, %arg1: memref<4x128x392xf32, #tpu.memory_space<vmem>>, %arg2: memref<392x16xf32, #tpu.memory_space<vmem>>, %arg3: memref<1x16xf32, #tpu.memory_space<vmem>>, %arg4: memref<128x16xf32, #tpu.memory_space<vmem>>) attributes {dimension_semantics = [#tpu.dimension_semantics<parallel>], iteration_bounds = array<i64: 1>, scalar_prefetch = 0 : i64, scratch_operands = 0 : i64, tpu.core_type = #tpu.core_type<tc>, window_params = [{transform_indices = @transform_0, window_bounds = array<i64: 4, 128, 392>}, {pipeline_mode = #tpu.pipeline_mode<synchronous>, transform_indices = @transform_1, window_bounds = array<i64: 392, 16>}, {pipeline_mode = #tpu.pipeline_mode<synchronous>, transform_indices = @transform_2, window_bounds = array<i64: 1, 16>}, {transform_indices = @transform_3, window_bounds = array<i64: 128, 16>}]} {
    %c0 = arith.constant 0 : index
    %c0_0 = arith.constant 0 : index
    %0 = vector.load %arg2[%c0, %c0_0] : memref<392x16xf32, #tpu.memory_space<vmem>>, vector<392x16xf32>
    %c0_1 = arith.constant 0 : index
    %c0_2 = arith.constant 0 : index
    %c0_3 = arith.constant 0 : index
    %1 = vector.load %arg1[%c0_1, %c0_2, %c0_3] : memref<4x128x392xf32, #tpu.memory_space<vmem>>, vector<1x128x392xf32>
    %2 = vector.shape_cast %1 : vector<1x128x392xf32> to vector<128x392xf32>
    %cst = arith.constant dense<0.000000e+00> : vector<128x16xf32>
    %3 = tpu.matmul %2, %0, %cst {dimension_numbers = #tpu.dot_dimension_numbers<[1], [0], [0], [1], [0, 0, 1, 1], [], []>} : vector<128x392xf32>, vector<392x16xf32>, vector<128x16xf32> -> vector<128x16xf32>
    %c1 = arith.constant 1 : index
    %c0_4 = arith.constant 0 : index
    %c0_5 = arith.constant 0 : index
    %4 = vector.load %arg1[%c1, %c0_4, %c0_5] : memref<4x128x392xf32, #tpu.memory_space<vmem>>, vector<1x128x392xf32>
    %5 = vector.shape_cast %4 : vector<1x128x392xf32> to vector<128x392xf32>
    %cst_6 = arith.constant dense<0.000000e+00> : vector<128x16xf32>
    %6 = tpu.matmul %5, %0, %cst_6 {dimension_numbers = #tpu.dot_dimension_numbers<[1], [0], [0], [1], [0, 0, 1, 1], [], []>} : vector<128x392xf32>, vector<392x16xf32>, vector<128x16xf32> -> vector<128x16xf32>
    %7 = arith.maximumf %3, %6 : vector<128x16xf32>
    %c2 = arith.constant 2 : index
    %c0_7 = arith.constant 0 : index
    %c0_8 = arith.constant 0 : index
    %8 = vector.load %arg1[%c2, %c0_7, %c0_8] : memref<4x128x392xf32, #tpu.memory_space<vmem>>, vector<1x128x392xf32>
    %9 = vector.shape_cast %8 : vector<1x128x392xf32> to vector<128x392xf32>
    %cst_9 = arith.constant dense<0.000000e+00> : vector<128x16xf32>
    %10 = tpu.matmul %9, %0, %cst_9 {dimension_numbers = #tpu.dot_dimension_numbers<[1], [0], [0], [1], [0, 0, 1, 1], [], []>} : vector<128x392xf32>, vector<392x16xf32>, vector<128x16xf32> -> vector<128x16xf32>
    %11 = arith.maximumf %7, %10 : vector<128x16xf32>
    %c3 = arith.constant 3 : index
    %c0_10 = arith.constant 0 : index
    %c0_11 = arith.constant 0 : index
    %12 = vector.load %arg1[%c3, %c0_10, %c0_11] : memref<4x128x392xf32, #tpu.memory_space<vmem>>, vector<1x128x392xf32>
    %13 = vector.shape_cast %12 : vector<1x128x392xf32> to vector<128x392xf32>
    %cst_12 = arith.constant dense<0.000000e+00> : vector<128x16xf32>
    %14 = tpu.matmul %13, %0, %cst_12 {dimension_numbers = #tpu.dot_dimension_numbers<[1], [0], [0], [1], [0, 0, 1, 1], [], []>} : vector<128x392xf32>, vector<392x16xf32>, vector<128x16xf32> -> vector<128x16xf32>
    %15 = arith.maximumf %11, %14 : vector<128x16xf32>
    %c0_13 = arith.constant 0 : index
    %c0_14 = arith.constant 0 : index
    %16 = vector.load %arg3[%c0_13, %c0_14] : memref<1x16xf32, #tpu.memory_space<vmem>>, vector<1x16xf32>
    %17 = vector.broadcast %16 : vector<1x16xf32> to vector<128x16xf32>
    %18 = arith.addf %15, %17 : vector<128x16xf32>
    %cst_15 = arith.constant 0.000000e+00 : f32
    %19 = vector.broadcast %cst_15 : f32 to vector<128x16xf32>
    %20 = arith.maximumf %18, %19 : vector<128x16xf32>
    %c0_16 = arith.constant 0 : index
    %c0_17 = arith.constant 0 : index
    %21 = vector.load %arg4[%c0_16, %c0_17] : memref<128x16xf32, #tpu.memory_space<vmem>>, vector<128x16xf32>
    tpu.vector_store %arg4[%c0_16, %c0_17], %20 {strides = array<i32>} : memref<128x16xf32, #tpu.memory_space<vmem>>, vector<128x16xf32>,
    return
  }
  func.func @transform_0(%arg0: i32) -> (i32, i32, i32) {
    %c0_i32 = arith.constant 0 : i32
    %c0_i32_0 = arith.constant 0 : i32
    %c0_i32_1 = arith.constant 0 : i32
    return %c0_i32, %arg0, %c0_i32_0 : i32, i32, i32
  }
  func.func @transform_1(%arg0: i32) -> (i32, i32) {
    %c0_i32 = arith.constant 0 : i32
    %c0_i32_0 = arith.constant 0 : i32
    %c0_i32_1 = arith.constant 0 : i32
    return %c0_i32, %c0_i32_0 : i32, i32
  }
  func.func @transform_2(%arg0: i32) -> (i32, i32) {
    %c0_i32 = arith.constant 0 : i32
    %c0_i32_0 = arith.constant 0 : i32
    %c0_i32_1 = arith.constant 0 : i32
    return %c0_i32, %c0_i32_0 : i32, i32
  }
  func.func @transform_3(%arg0: i32) -> (i32, i32) {
    %c0_i32 = arith.constant 0 : i32
    %c0_i32_0 = arith.constant 0 : i32
    return %arg0, %c0_i32 : i32, i32
  }
}

module attributes {stable_mosaic.version = 11 : i64} {
  func.func @_linear_kernel(%arg0: i32, %arg1: memref<2x1024xf32, #tpu.memory_space<vmem>>, %arg2: memref<1024x10xf32, #tpu.memory_space<vmem>>, %arg3: memref<1x10xf32, #tpu.memory_space<vmem>>, %arg4: memref<2x10xf32, #tpu.memory_space<vmem>>) attributes {dimension_semantics = [#tpu.dimension_semantics<arbitrary>], iteration_bounds = array<i64: 1>, scalar_prefetch = 0 : i64, scratch_operands = 0 : i64, tpu.core_type = #tpu.core_type<tc>, window_params = [{pipeline_mode = #tpu.pipeline_mode<synchronous>, transform_indices = @transform_0, window_bounds = array<i64: 2, 1024>}, {pipeline_mode = #tpu.pipeline_mode<synchronous>, transform_indices = @transform_1, window_bounds = array<i64: 1024, 10>}, {pipeline_mode = #tpu.pipeline_mode<synchronous>, transform_indices = @transform_2, window_bounds = array<i64: 1, 10>}, {pipeline_mode = #tpu.pipeline_mode<synchronous>, transform_indices = @transform_3, window_bounds = array<i64: 2, 10>}]} {
    %c0 = arith.constant 0 : index
    %c0_0 = arith.constant 0 : index
    %0 = vector.load %arg1[%c0, %c0_0] : memref<2x1024xf32, #tpu.memory_space<vmem>>, vector<2x1024xf32>
    %c0_1 = arith.constant 0 : index
    %c0_2 = arith.constant 0 : index
    %1 = vector.load %arg2[%c0_1, %c0_2] : memref<1024x10xf32, #tpu.memory_space<vmem>>, vector<1024x10xf32>
    %cst = arith.constant dense<0.000000e+00> : vector<2x10xf32>
    %2 = tpu.matmul %0, %1, %cst {dimension_numbers = #tpu.dot_dimension_numbers<[1], [0], [0], [1], [0, 0, 1, 1], [], []>} : vector<2x1024xf32>, vector<1024x10xf32>, vector<2x10xf32> -> vector<2x10xf32>
    %c0_3 = arith.constant 0 : index
    %c0_4 = arith.constant 0 : index
    %3 = vector.load %arg3[%c0_3, %c0_4] : memref<1x10xf32, #tpu.memory_space<vmem>>, vector<1x10xf32>
    %4 = vector.broadcast %3 : vector<1x10xf32> to vector<2x10xf32>
    %5 = arith.addf %2, %4 : vector<2x10xf32>
    %c0_5 = arith.constant 0 : index
    %c0_6 = arith.constant 0 : index
    %6 = vector.load %arg4[%c0_5, %c0_6] : memref<2x10xf32, #tpu.memory_space<vmem>>, vector<2x10xf32>
    tpu.vector_store %arg4[%c0_5, %c0_6], %5 {strides = array<i32>} : memref<2x10xf32, #tpu.memory_space<vmem>>, vector<2x10xf32>,
    return
  }
  func.func @transform_0(%arg0: i32) -> (i32, i32) {
    %c0_i32 = arith.constant 0 : i32
    %c0_i32_0 = arith.constant 0 : i32
    %c0_i32_1 = arith.constant 0 : i32
    return %c0_i32, %c0_i32_0 : i32, i32
  }
  func.func @transform_1(%arg0: i32) -> (i32, i32) {
    %c0_i32 = arith.constant 0 : i32
    %c0_i32_0 = arith.constant 0 : i32
    %c0_i32_1 = arith.constant 0 : i32
    return %c0_i32, %c0_i32_0 : i32, i32
  }
  func.func @transform_2(%arg0: i32) -> (i32, i32) {
    %c0_i32 = arith.constant 0 : i32
    %c0_i32_0 = arith.constant 0 : i32
    %c0_i32_1 = arith.constant 0 : i32
    return %c0_i32, %c0_i32_0 : i32, i32
  }
  func.func @transform_3(%arg0: i32) -> (i32, i32) {
    %c0_i32 = arith.constant 0 : i32
    %c0_i32_0 = arith.constant 0 : i32
    %c0_i32_1 = arith.constant 0 : i32
    return %c0_i32, %c0_i32_0 : i32, i32
  }
}

</mosaic_0001>

<llo_original>
// kernel: cnn_forward.3
$region0: #{cnn_forward.3}
  #allocation0 [shape = 'u32[]', space=smem, size = 0x4, offset = 0x4, fixed_abs, tag = 'smem constant byte address 0x4 - core index']
  #allocation1 [shape = 'u32[144,128]{1,0:T(1,128)}', space=vmem, size = 0x12000, scoped, tag = 'internal scratch']
  %s0 = inlined_call_operand.vmem [shape: f32[4,512,147], index: 0, kind: input, shape index: {}]
  %s1 = inlined_call_operand.vmem [shape: f32[147,8], index: 1, kind: input, shape index: {}]
  %s2 = inlined_call_operand.vmem [shape: f32[1,8], index: 2, kind: input, shape index: {}]
  %s3 = inlined_call_operand.vmem [shape: f32[512,8], index: 3, kind: output, shape index: {}]
  %s4 = sld [smem:[#allocation0]]
  $region68: #{cnn_forward.3} parent=0
    _
  %s6 = ssub.s32 1, %s4
  %s7 = scalar_select 0, %s6, %s4
  $region1: #{cnn_forward.3} parent=0
    #allocation2 [shape = 'u8[2097152]{0}', space=vmem, size = 0x200000, scoped, tag = 'input window, operand 0']
    loop: start=0, step=1, limit=4
    $region2: #{cnn_forward.3} parent=1 // loop_pre_header
      _
    $region3: #{cnn_forward.3} parent=1 // loop_header
      %s9 = sphi 0, %s13
      %p10 = scmp.ge.s32.totalorder %s9, 4
      %s19 = sphi 0, %s21
      %s22 = sphi 0, %s19
      %s23 = sphi 0, %s22
      %s39 = sphi 0, %s23
      %s43 = sphi 0, %s43
      %s45 = sphi 0, %s43
      %s46 = sphi 0, %s45
      %s60 = sphi 0, %s46
      %s64 = sphi 0, %s64
      %s66 = sphi 0, %s64
      %s67 = sphi 0, %s66
      %s81 = sphi 0, %s67
      %s87 = sphi 0, %s89
      %s90 = sphi 0, %s87
      %s91 = sphi 0, %s90
      %s107 = sphi 0, %s91
    $region4: #{cnn_forward.3} parent=1 // loop_header_branch
      %12 = sbr.rel (%p10) target = $region8
    $region5: #{cnn_forward.3} parent=1 // loop_body
      %s14 = ssub.s32 %s9, 1
      %s15 = ssub.s32 %s9, 2
      %s16 = sadd.s32 %s9, 1
      %s17 = ssub.s32 %s9, %s16
      %p18 = scmp.eq.s32.totalorder %s17, 0
      %s20 = sadd.s32 %s19, 1
      %s21 = scalar_select %p18, %s19, %s20
      %p24 = pneg %p18
      %p25 = scmp.eq.s32.totalorder %s9, 1
      %p26 = por %p24, %p25
      %p27 = scmp.ne.s32.totalorder %s19, %s22
      %p28 = scmp.eq.s32.totalorder %s9, 0
      %p29 = por %p27, %p28
      %p30 = scmp.ne.s32.totalorder %s19, %s22
      %p31 = scmp.eq.s32.totalorder %s14, 1
      %p32 = por %p30, %p31
      %p33 = scmp.ne.s32.totalorder %s22, %s23
      %p34 = scmp.eq.s32.totalorder %s14, 0
      %p35 = por %p33, %p34
      %p36 = scmp.ne.s32.totalorder %s22, %s23
      %p37 = scmp.eq.s32.totalorder %s15, 1
      %p38 = por %p36, %p37
      %p40 = scmp.ne.s32.totalorder %s23, %s39
      %p41 = scmp.eq.s32.totalorder %s15, 0
      %p42 = por %p40, %p41
      %s44 = sadd.s32 %s43, 1
      %p47 = scmp.eq.s32.totalorder %s9, 1
      %p48 = scmp.ne.s32.totalorder %s43, %s45
      %p49 = scmp.eq.s32.totalorder %s9, 0
      %p50 = por %p48, %p49
      %p51 = scmp.ne.s32.totalorder %s43, %s45
      %p52 = scmp.eq.s32.totalorder %s14, 1
      %p53 = por %p51, %p52
      %p54 = scmp.ne.s32.totalorder %s45, %s46
      %p55 = scmp.eq.s32.totalorder %s14, 0
      %p56 = por %p54, %p55
      %p57 = scmp.ne.s32.totalorder %s45, %s46
      %p58 = scmp.eq.s32.totalorder %s15, 1
      %p59 = por %p57, %p58
      %p61 = scmp.ne.s32.totalorder %s46, %s60
      %p62 = scmp.eq.s32.totalorder %s15, 0
      %p63 = por %p61, %p62
      %s65 = sadd.s32 %s64, 1
      %p68 = scmp.eq.s32.totalorder %s9, 1
      %p69 = scmp.ne.s32.totalorder %s64, %s66
      %p70 = scmp.eq.s32.totalorder %s9, 0
      %p71 = por %p69, %p70
      %p72 = scmp.ne.s32.totalorder %s64, %s66
      %p73 = scmp.eq.s32.totalorder %s14, 1
      %p74 = por %p72, %p73
      %p75 = scmp.ne.s32.totalorder %s66, %s67
      %p76 = scmp.eq.s32.totalorder %s14, 0
      %p77 = por %p75, %p76
      %p78 = scmp.ne.s32.totalorder %s66, %s67
      %p79 = scmp.eq.s32.totalorder %s15, 1
      %p80 = por %p78, %p79
      %p82 = scmp.ne.s32.totalorder %s67, %s81
      %p83 = scmp.eq.s32.totalorder %s15, 0
      %p84 = por %p82, %p83
      %s85 = ssub.s32 %s9, %s16
      %p86 = scmp.eq.s32.totalorder %s85, 0
      %s88 = sadd.s32 %s87, 1
      %s89 = scalar_select %p86, %s87, %s88
      %p92 = pneg %p86
      %p93 = scmp.eq.s32.totalorder %s9, 1
      %p94 = por %p92, %p93
      %p95 = scmp.ne.s32.totalorder %s87, %s90
      %p96 = scmp.eq.s32.totalorder %s9, 0
      %p97 = por %p95, %p96
      %p98 = scmp.ne.s32.totalorder %s87, %s90
      %p99 = scmp.eq.s32.totalorder %s14, 1
      %p100 = por %p98, %p99
      %p101 = scmp.ne.s32.totalorder %s90, %s91
      %p102 = scmp.eq.s32.totalorder %s14, 0
      %p103 = por %p101, %p102
      %p104 = scmp.ne.s32.totalorder %s90, %s91
      %p105 = scmp.eq.s32.totalorder %s15, 1
      %p106 = por %p104, %p105
      %p108 = scmp.ne.s32.totalorder %s91, %s107
      %p109 = scmp.eq.s32.totalorder %s15, 0
      %p110 = por %p108, %p109
      %p111 = scmp.le.s32.totalorder 1, %s9
      %p112 = scmp.lt.s32.totalorder %s9, 3
      %p113 = pnand %p111, %p112
      %p114 = pneg %p113
      // Predicated region
      $region9: #{cnn_forward.3} parent=5 // pred_check
        _
      $region10: #{cnn_forward.3} parent=5 // pred_check_branch
        %116 = sbr.rel (%p113) target = $region12
      $region11: #{cnn_forward.3} parent=5 // pred_region
        %s117 = ssub.s32 %s9, 1
        // Predicated region
        $region13: #{cnn_forward.3} parent=11 // pred_check
          %p118 = pneg %p56
        $region14: #{cnn_forward.3} parent=11 // pred_check_branch
          %120 = sbr.rel (%p118) target = $region16
        $region15: #{cnn_forward.3} parent=11 // pred_region
          _
        $region16: #{cnn_forward.3} parent=11 // pred_fallthru
          _
        // Predicated region
        $region17: #{cnn_forward.3} parent=11 // pred_check
          %p121 = pneg %p77
        $region18: #{cnn_forward.3} parent=11 // pred_check_branch
          %123 = sbr.rel (%p121) target = $region20
        $region19: #{cnn_forward.3} parent=11 // pred_region
          _
        $region20: #{cnn_forward.3} parent=11 // pred_fallthru
          _
      $region12: #{cnn_forward.3} parent=5 // pred_fallthru
        _
      %p124 = scmp.lt.s32.totalorder %s9, 2
      // Predicated region
      $region21: #{cnn_forward.3} parent=5 // pred_check
        %p125 = pneg %p124
      $region22: #{cnn_forward.3} parent=5 // pred_check_branch
        %127 = sbr.rel (%p125) target = $region24
      $region23: #{cnn_forward.3} parent=5 // pred_region
        // Predicated region
        $region25: #{cnn_forward.3} parent=23 // pred_check
          %p128 = pneg %p29
        $region26: #{cnn_forward.3} parent=23 // pred_check_branch
          %130 = sbr.rel (%p128) target = $region28
        $region27: #{cnn_forward.3} parent=23 // pred_region
          %s131 = sand.u32 %s19, 1
          %s132 = sand.u32 %s19, 1
          %s133 = smul.addr %s132, 2048
          %s134 = scalar_lea.vmem [#allocation2], %s133
          %s135 = smul.u32 32, %s9
          %s136 = smul.addr %s135, 2
          %s137 = smul.addr %s136, 8
          %s138 = scalar_lea.vmem %s0, %s137
          // Predicated region
          $region29: #{cnn_forward.3} parent=27 // pred_check
            _
          $region30: #{cnn_forward.3} parent=27 // pred_check_branch
            %140 = sbr.rel (0) target = $region32
          $region31: #{cnn_forward.3} parent=27 // pred_region
            // Predicated region
            $region33: #{cnn_forward.3} parent=31 // pred_check
              _
            $region34: #{cnn_forward.3} parent=31 // pred_check_branch
              %142 = sbr.rel (0) target = $region36
            $region35: #{cnn_forward.3} parent=31 // pred_region
              loop: start=0, step=1, limit=1
              $region37: #{cnn_forward.3} parent=35 // loop_pre_header
                _
              $region38: #{cnn_forward.3} parent=35 // loop_header
                %s144 = sphi 0, %s148
                %p145 = scmp.ge.s32.totalorder %s144, 1
                %s149 = sphi %s138, %s138
                %s150 = sphi %s134, %s134
              $region39: #{cnn_forward.3} parent=35 // loop_header_branch
                %147 = sbr.rel (%p145) target = $region43
              $region40: #{cnn_forward.3} parent=35 // loop_body
                %v151 = vld [vmem:[%s149] sm:$0xff]
                %152 = vst [vmem:[%s150] sm:$0xff] %v151
                %v153 = vld [vmem:[%s149 + $0x8] sm:$0xff]
                %154 = vst [vmem:[%s150 + $0x8] sm:$0xff] %v153
                %v155 = vld [vmem:[%s149 + $0x10] sm:$0xff]
                %156 = vst [vmem:[%s150 + $0x10] sm:$0xff] %v155
                %v157 = vld [vmem:[%s149 + $0x18] sm:$0xff]
                %158 = vst [vmem:[%s150 + $0x18] sm:$0xff] %v157
                %v159 = vld [vmem:[%s149 + $0x20] sm:$0xff]
                %160 = vst [vmem:[%s150 + $0x20] sm:$0xff] %v159
                %v161 = vld [vmem:[%s149 + $0x28] sm:$0xff]
                %162 = vst [vmem:[%s150 + $0x28] sm:$0xff] %v161
                %v163 = vld [vmem:[%s149 + $0x30] sm:$0xff]
                %164 = vst [vmem:[%s150 + $0x30] sm:$0xff] %v163
                %v165 = vld [vmem:[%s149 + $0x38] sm:$0xff]
                %166 = vst [vmem:[%s150 + $0x38] sm:$0xff] %v165
                %v167 = vld [vmem:[%s149 + $0x40] sm:$0xff]
                %168 = vst [vmem:[%s150 + $0x40] sm:$0xff] %v167
                %v169 = vld [vmem:[%s149 + $0x48] sm:$0xff]
                %170 = vst [vmem:[%s150 + $0x48] sm:$0xff] %v169
                %v171 = vld [vmem:[%s149 + $0x50] sm:$0xff]
                %172 = vst [vmem:[%s150 + $0x50] sm:$0xff] %v171
                %v173 = vld [vmem:[%s149 + $0x58] sm:$0xff]
                %174 = vst [vmem:[%s150 + $0x58] sm:$0xff] %v173
                %v175 = vld [vmem:[%s149 + $0x60] sm:$0xff]
                %176 = vst [vmem:[%s150 + $0x60] sm:$0xff] %v175
                %v177 = vld [vmem:[%s149 + $0x68] sm:$0xff]
                %178 = vst [vmem:[%s150 + $0x68] sm:$0xff] %v177
                %v179 = vld [vmem:[%s149 + $0x70] sm:$0xff]
                %180 = vst [vmem:[%s150 + $0x70] sm:$0xff] %v179
                %v181 = vld [vmem:[%s149 + $0x78] sm:$0xff]
                %182 = vst [vmem:[%s150 + $0x78] sm:$0xff] %v181
                %v183 = vld [vmem:[%s149 + $0x80] sm:$0xff]
                %184 = vst [vmem:[%s150 + $0x80] sm:$0xff] %v183
                %v185 = vld [vmem:[%s149 + $0x88] sm:$0xff]
                %186 = vst [vmem:[%s150 + $0x88] sm:$0xff] %v185
                %v187 = vld [vmem:[%s149 + $0x90] sm:$0xff]
                %188 = vst [vmem:[%s150 + $0x90] sm:$0xff] %v187
                %v189 = vld [vmem:[%s149 + $0x98] sm:$0xff]
                %190 = vst [vmem:[%s150 + $0x98] sm:$0xff] %v189
                %v191 = vld [vmem:[%s149 + $0xa0] sm:$0xff]
                %192 = vst [vmem:[%s150 + $0xa0] sm:$0xff] %v191
                %v193 = vld [vmem:[%s149 + $0xa8] sm:$0xff]
                %194 = vst [vmem:[%s150 + $0xa8] sm:$0xff] %v193
                %v195 = vld [vmem:[%s149 + $0xb0] sm:$0xff]
                %196 = vst [vmem:[%s150 + $0xb0] sm:$0xff] %v195
                %v197 = vld [vmem:[%s149 + $0xb8] sm:$0xff]
                %198 = vst [vmem:[%s150 + $0xb8] sm:$0xff] %v197
                %v199 = vld [vmem:[%s149 + $0xc0] sm:$0xff]
                %200 = vst [vmem:[%s150 + $0xc0] sm:$0xff] %v199
                %v201 = vld [vmem:[%s149 + $0xc8] sm:$0xff]
                %202 = vst [vmem:[%s150 + $0xc8] sm:$0xff] %v201
                %v203 = vld [vmem:[%s149 + $0xd0] sm:$0xff]
                %204 = vst [vmem:[%s150 + $0xd0] sm:$0xff] %v203
                %v205 = vld [vmem:[%s149 + $0xd8] sm:$0xff]
                %206 = vst [vmem:[%s150 + $0xd8] sm:$0xff] %v205
                %v207 = vld [vmem:[%s149 + $0xe0] sm:$0xff]
                %208 = vst [vmem:[%s150 + $0xe0] sm:$0xff] %v207
                %v209 = vld [vmem:[%s149 + $0xe8] sm:$0xff]
                %210 = vst [vmem:[%s150 + $0xe8] sm:$0xff] %v209
                %v211 = vld [vmem:[%s149 + $0xf0] sm:$0xff]
                %212 = vst [vmem:[%s150 + $0xf0] sm:$0xff] %v211
                %v213 = vld [vmem:[%s149 + $0xf8] sm:$0xff]
                %214 = vst [vmem:[%s150 + $0xf8] sm:$0xff] %v213
                %v215 = vld [vmem:[%s149 + $0x100] sm:$0xff]
                %216 = vst [vmem:[%s150 + $0x100] sm:$0xff] %v215
                %v217 = vld [vmem:[%s149 + $0x108] sm:$0xff]
                %218 = vst [vmem:[%s150 + $0x108] sm:$0xff] %v217
                %v219 = vld [vmem:[%s149 + $0x110] sm:$0xff]
                %220 = vst [vmem:[%s150 + $0x110] sm:$0xff] %v219
                %v221 = vld [vmem:[%s149 + $0x118] sm:$0xff]
                %222 = vst [vmem:[%s150 + $0x118] sm:$0xff] %v221
                %v223 = vld [vmem:[%s149 + $0x120] sm:$0xff]
                %224 = vst [vmem:[%s150 + $0x120] sm:$0xff] %v223
                %v225 = vld [vmem:[%s149 + $0x128] sm:$0xff]
                %226 = vst [vmem:[%s150 + $0x128] sm:$0xff] %v225
                %v227 = vld [vmem:[%s149 + $0x130] sm:$0xff]
                %228 = vst [vmem:[%s150 + $0x130] sm:$0xff] %v227
                %v229 = vld [vmem:[%s149 + $0x138] sm:$0xff]
                %230 = vst [vmem:[%s150 + $0x138] sm:$0xff] %v229
                %v231 = vld [vmem:[%s149 + $0x140] sm:$0xff]
                %232 = vst [vmem:[%s150 + $0x140] sm:$0xff] %v231
                %v233 = vld [vmem:[%s149 + $0x148] sm:$0xff]
                %234 = vst [vmem:[%s150 + $0x148] sm:$0xff] %v233
                %v235 = vld [vmem:[%s149 + $0x150] sm:$0xff]
                %236 = vst [vmem:[%s150 + $0x150] sm:$0xff] %v235
                %v237 = vld [vmem:[%s149 + $0x158] sm:$0xff]
                %238 = vst [vmem:[%s150 + $0x158] sm:$0xff] %v237
                %v239 = vld [vmem:[%s149 + $0x160] sm:$0xff]
                %240 = vst [vmem:[%s150 + $0x160] sm:$0xff] %v239
                %v241 = vld [vmem:[%s149 + $0x168] sm:$0xff]
                %242 = vst [vmem:[%s150 + $0x168] sm:$0xff] %v241
                %v243 = vld [vmem:[%s149 + $0x170] sm:$0xff]
                %244 = vst [vmem:[%s150 + $0x170] sm:$0xff] %v243
                %v245 = vld [vmem:[%s149 + $0x178] sm:$0xff]
                %246 = vst [vmem:[%s150 + $0x178] sm:$0xff] %v245
                %v247 = vld [vmem:[%s149 + $0x180] sm:$0xff]
                %248 = vst [vmem:[%s150 + $0x180] sm:$0xff] %v247
                %v249 = vld [vmem:[%s149 + $0x188] sm:$0xff]
                %250 = vst [vmem:[%s150 + $0x188] sm:$0xff] %v249
                %v251 = vld [vmem:[%s149 + $0x190] sm:$0xff]
                %252 = vst [vmem:[%s150 + $0x190] sm:$0xff] %v251
                %v253 = vld [vmem:[%s149 + $0x198] sm:$0xff]
                %254 = vst [vmem:[%s150 + $0x198] sm:$0xff] %v253
                %v255 = vld [vmem:[%s149 + $0x1a0] sm:$0xff]
                %256 = vst [vmem:[%s150 + $0x1a0] sm:$0xff] %v255
                %v257 = vld [vmem:[%s149 + $0x1a8] sm:$0xff]
                %258 = vst [vmem:[%s150 + $0x1a8] sm:$0xff] %v257
                %v259 = vld [vmem:[%s149 + $0x1b0] sm:$0xff]
                %260 = vst [vmem:[%s150 + $0x1b0] sm:$0xff] %v259
                %v261 = vld [vmem:[%s149 + $0x1b8] sm:$0xff]
                %262 = vst [vmem:[%s150 + $0x1b8] sm:$0xff] %v261
                %v263 = vld [vmem:[%s149 + $0x1c0] sm:$0xff]
                %264 = vst [vmem:[%s150 + $0x1c0] sm:$0xff] %v263
                %v265 = vld [vmem:[%s149 + $0x1c8] sm:$0xff]
                %266 = vst [vmem:[%s150 + $0x1c8] sm:$0xff] %v265
                %v267 = vld [vmem:[%s149 + $0x1d0] sm:$0xff]
                %268 = vst [vmem:[%s150 + $0x1d0] sm:$0xff] %v267
                %v269 = vld [vmem:[%s149 + $0x1d8] sm:$0xff]
                %270 = vst [vmem:[%s150 + $0x1d8] sm:$0xff] %v269
                %v271 = vld [vmem:[%s149 + $0x1e0] sm:$0xff]
                %272 = vst [vmem:[%s150 + $0x1e0] sm:$0xff] %v271
                %v273 = vld [vmem:[%s149 + $0x1e8] sm:$0xff]
                %274 = vst [vmem:[%s150 + $0x1e8] sm:$0xff] %v273
                %v275 = vld [vmem:[%s149 + $0x1f0] sm:$0xff]
                %276 = vst [vmem:[%s150 + $0x1f0] sm:$0xff] %v275
                %v277 = vld [vmem:[%s149 + $0x1f8] sm:$0xff]
                %278 = vst [vmem:[%s150 + $0x1f8] sm:$0xff] %v277
                %v279 = vld [vmem:[%s149 + $0x400] sm:$0xff]
                %280 = vst [vmem:[%s150 + $0x200] sm:$0xff] %v279
                %v281 = vld [vmem:[%s149 + $0x408] sm:$0xff]
                %282 = vst [vmem:[%s150 + $0x208] sm:$0xff] %v281
                %v283 = vld [vmem:[%s149 + $0x410] sm:$0xff]
                %284 = vst [vmem:[%s150 + $0x210] sm:$0xff] %v283
                %v285 = vld [vmem:[%s149 + $0x418] sm:$0xff]
                %286 = vst [vmem:[%s150 + $0x218] sm:$0xff] %v285
                %v287 = vld [vmem:[%s149 + $0x420] sm:$0xff]
                %288 = vst [vmem:[%s150 + $0x220] sm:$0xff] %v287
                %v289 = vld [vmem:[%s149 + $0x428] sm:$0xff]
                %290 = vst [vmem:[%s150 + $0x228] sm:$0xff] %v289
                %v291 = vld [vmem:[%s149 + $0x430] sm:$0xff]
                %292 = vst [vmem:[%s150 + $0x230] sm:$0xff] %v291
                %v293 = vld [vmem:[%s149 + $0x438] sm:$0xff]
                %294 = vst [vmem:[%s150 + $0x238] sm:$0xff] %v293
                %v295 = vld [vmem:[%s149 + $0x440] sm:$0xff]
                %296 = vst [vmem:[%s150 + $0x240] sm:$0xff] %v295
                %v297 = vld [vmem:[%s149 + $0x448] sm:$0xff]
                %298 = vst [vmem:[%s150 + $0x248] sm:$0xff] %v297
                %v299 = vld [vmem:[%s149 + $0x450] sm:$0xff]
                %300 = vst [vmem:[%s150 + $0x250] sm:$0xff] %v299
                %v301 = vld [vmem:[%s149 + $0x458] sm:$0xff]
                %302 = vst [vmem:[%s150 + $0x258] sm:$0xff] %v301
                %v303 = vld [vmem:[%s149 + $0x460] sm:$0xff]
                %304 = vst [vmem:[%s150 + $0x260] sm:$0xff] %v303
                %v305 = vld [vmem:[%s149 + $0x468] sm:$0xff]
                %306 = vst [vmem:[%s150 + $0x268] sm:$0xff] %v305
                %v307 = vld [vmem:[%s149 + $0x470] sm:$0xff]
                %308 = vst [vmem:[%s150 + $0x270] sm:$0xff] %v307
                %v309 = vld [vmem:[%s149 + $0x478] sm:$0xff]
                %310 = vst [vmem:[%s150 + $0x278] sm:$0xff] %v309
                %v311 = vld [vmem:[%s149 + $0x480] sm:$0xff]
                %312 = vst [vmem:[%s150 + $0x280] sm:$0xff] %v311
                %v313 = vld [vmem:[%s149 + $0x488] sm:$0xff]
                %314 = vst [vmem:[%s150 + $0x288] sm:$0xff] %v313
                %v315 = vld [vmem:[%s149 + $0x490] sm:$0xff]
                %316 = vst [vmem:[%s150 + $0x290] sm:$0xff] %v315
                %v317 = vld [vmem:[%s149 + $0x498] sm:$0xff]
                %318 = vst [vmem:[%s150 + $0x298] sm:$0xff] %v317
                %v319 = vld [vmem:[%s149 + $0x4a0] sm:$0xff]
                %320 = vst [vmem:[%s150 + $0x2a0] sm:$0xff] %v319
                %v321 = vld [vmem:[%s149 + $0x4a8] sm:$0xff]
                %322 = vst [vmem:[%s150 + $0x2a8] sm:$0xff] %v321
                %v323 = vld [vmem:[%s149 + $0x4b0] sm:$0xff]
                %324 = vst [vmem:[%s150 + $0x2b0] sm:$0xff] %v323
                %v325 = vld [vmem:[%s149 + $0x4b8] sm:$0xff]
                %326 = vst [vmem:[%s150 + $0x2b8] sm:$0xff] %v325
                %v327 = vld [vmem:[%s149 + $0x4c0] sm:$0xff]
                %328 = vst [vmem:[%s150 + $0x2c0] sm:$0xff] %v327
                %v329 = vld [vmem:[%s149 + $0x4c8] sm:$0xff]
                %330 = vst [vmem:[%s150 + $0x2c8] sm:$0xff] %v329
                %v331 = vld [vmem:[%s149 + $0x4d0] sm:$0xff]
                %332 = vst [vmem:[%s150 + $0x2d0] sm:$0xff] %v331
                %v333 = vld [vmem:[%s149 + $0x4d8] sm:$0xff]
                %334 = vst [vmem:[%s150 + $0x2d8] sm:$0xff] %v333
                %v335 = vld [vmem:[%s149 + $0x4e0] sm:$0xff]
                %336 = vst [vmem:[%s150 + $0x2e0] sm:$0xff] %v335
                %v337 = vld [vmem:[%s149 + $0x4e8] sm:$0xff]
                %338 = vst [vmem:[%s150 + $0x2e8] sm:$0xff] %v337
                %v339 = vld [vmem:[%s149 + $0x4f0] sm:$0xff]
                %340 = vst [vmem:[%s150 + $0x2f0] sm:$0xff] %v339
                %v341 = vld [vmem:[%s149 + $0x4f8] sm:$0xff]
                %342 = vst [vmem:[%s150 + $0x2f8] sm:$0xff] %v341
                %v343 = vld [vmem:[%s149 + $0x500] sm:$0xff]
                %344 = vst [vmem:[%s150 + $0x300] sm:$0xff] %v343
                %v345 = vld [vmem:[%s149 + $0x508] sm:$0xff]
                %346 = vst [vmem:[%s150 + $0x308] sm:$0xff] %v345
                %v347 = vld [vmem:[%s149 + $0x510] sm:$0xff]
                %348 = vst [vmem:[%s150 + $0x310] sm:$0xff] %v347
                %v349 = vld [vmem:[%s149 + $0x518] sm:$0xff]
                %350 = vst [vmem:[%s150 + $0x318] sm:$0xff] %v349
                %v351 = vld [vmem:[%s149 + $0x520] sm:$0xff]
                %352 = vst [vmem:[%s150 + $0x320] sm:$0xff] %v351
                %v353 = vld [vmem:[%s149 + $0x528] sm:$0xff]
                %354 = vst [vmem:[%s150 + $0x328] sm:$0xff] %v353
                %v355 = vld [vmem:[%s149 + $0x530] sm:$0xff]
                %356 = vst [vmem:[%s150 + $0x330] sm:$0xff] %v355
                %v357 = vld [vmem:[%s149 + $0x538] sm:$0xff]
                %358 = vst [vmem:[%s150 + $0x338] sm:$0xff] %v357
                %v359 = vld [vmem:[%s149 + $0x540] sm:$0xff]
                %360 = vst [vmem:[%s150 + $0x340] sm:$0xff] %v359
                %v361 = vld [vmem:[%s149 + $0x548] sm:$0xff]
                %362 = vst [vmem:[%s150 + $0x348] sm:$0xff] %v361
                %v363 = vld [vmem:[%s149 + $0x550] sm:$0xff]
                %364 = vst [vmem:[%s150 + $0x350] sm:$0xff] %v363
                %v365 = vld [vmem:[%s149 + $0x558] sm:$0xff]
                %366 = vst [vmem:[%s150 + $0x358] sm:$0xff] %v365
                %v367 = vld [vmem:[%s149 + $0x560] sm:$0xff]
                %368 = vst [vmem:[%s150 + $0x360] sm:$0xff] %v367
                %v369 = vld [vmem:[%s149 + $0x568] sm:$0xff]
                %370 = vst [vmem:[%s150 + $0x368] sm:$0xff] %v369
                %v371 = vld [vmem:[%s149 + $0x570] sm:$0xff]
                %372 = vst [vmem:[%s150 + $0x370] sm:$0xff] %v371
                %v373 = vld [vmem:[%s149 + $0x578] sm:$0xff]
                %374 = vst [vmem:[%s150 + $0x378] sm:$0xff] %v373
                %v375 = vld [vmem:[%s149 + $0x580] sm:$0xff]
                %376 = vst [vmem:[%s150 + $0x380] sm:$0xff] %v375
                %v377 = vld [vmem:[%s149 + $0x588] sm:$0xff]
                %378 = vst [vmem:[%s150 + $0x388] sm:$0xff] %v377
                %v379 = vld [vmem:[%s149 + $0x590] sm:$0xff]
                %380 = vst [vmem:[%s150 + $0x390] sm:$0xff] %v379
                %v381 = vld [vmem:[%s149 + $0x598] sm:$0xff]
                %382 = vst [vmem:[%s150 + $0x398] sm:$0xff] %v381
                %v383 = vld [vmem:[%s149 + $0x5a0] sm:$0xff]
                %384 = vst [vmem:[%s150 + $0x3a0] sm:$0xff] %v383
                %v385 = vld [vmem:[%s149 + $0x5a8] sm:$0xff]
                %386 = vst [vmem:[%s150 + $0x3a8] sm:$0xff] %v385
                %v387 = vld [vmem:[%s149 + $0x5b0] sm:$0xff]
                %388 = vst [vmem:[%s150 + $0x3b0] sm:$0xff] %v387
                %v389 = vld [vmem:[%s149 + $0x5b8] sm:$0xff]
                %390 = vst [vmem:[%s150 + $0x3b8] sm:$0xff] %v389
                %v391 = vld [vmem:[%s149 + $0x5c0] sm:$0xff]
                %392 = vst [vmem:[%s150 + $0x3c0] sm:$0xff] %v391
                %v393 = vld [vmem:[%s149 + $0x5c8] sm:$0xff]
                %394 = vst [vmem:[%s150 + $0x3c8] sm:$0xff] %v393
                %v395 = vld [vmem:[%s149 + $0x5d0] sm:$0xff]
                %396 = vst [vmem:[%s150 + $0x3d0] sm:$0xff] %v395
                %v397 = vld [vmem:[%s149 + $0x5d8] sm:$0xff]
                %398 = vst [vmem:[%s150 + $0x3d8] sm:$0xff] %v397
                %v399 = vld [vmem:[%s149 + $0x5e0] sm:$0xff]
                %400 = vst [vmem:[%s150 + $0x3e0] sm:$0xff] %v399
                %v401 = vld [vmem:[%s149 + $0x5e8] sm:$0xff]
                %402 = vst [vmem:[%s150 + $0x3e8] sm:$0xff] %v401
                %v403 = vld [vmem:[%s149 + $0x5f0] sm:$0xff]
                %404 = vst [vmem:[%s150 + $0x3f0] sm:$0xff] %v403
                %v405 = vld [vmem:[%s149 + $0x5f8] sm:$0xff]
                %406 = vst [vmem:[%s150 + $0x3f8] sm:$0xff] %v405
                %v407 = vld [vmem:[%s149 + $0x800] sm:$0xff]
                %408 = vst [vmem:[%s150 + $0x400] sm:$0xff] %v407
                %v409 = vld [vmem:[%s149 + $0x808] sm:$0xff]
                %410 = vst [vmem:[%s150 + $0x408] sm:$0xff] %v409
                %v411 = vld [vmem:[%s149 + $0x810] sm:$0xff]
                %412 = vst [vmem:[%s150 + $0x410] sm:$0xff] %v411
                %v413 = vld [vmem:[%s149 + $0x818] sm:$0xff]
                %414 = vst [vmem:[%s150 + $0x418] sm:$0xff] %v413
                %v415 = vld [vmem:[%s149 + $0x820] sm:$0xff]
                %416 = vst [vmem:[%s150 + $0x420] sm:$0xff] %v415
                %v417 = vld [vmem:[%s149 + $0x828] sm:$0xff]
                %418 = vst [vmem:[%s150 + $0x428] sm:$0xff] %v417
                %v419 = vld [vmem:[%s149 + $0x830] sm:$0xff]
                %420 = vst [vmem:[%s150 + $0x430] sm:$0xff] %v419
                %v421 = vld [vmem:[%s149 + $0x838] sm:$0xff]
                %422 = vst [vmem:[%s150 + $0x438] sm:$0xff] %v421
                %v423 = vld [vmem:[%s149 + $0x840] sm:$0xff]
                %424 = vst [vmem:[%s150 + $0x440] sm:$0xff] %v423
                %v425 = vld [vmem:[%s149 + $0x848] sm:$0xff]
                %426 = vst [vmem:[%s150 + $0x448] sm:$0xff] %v425
                %v427 = vld [vmem:[%s149 + $0x850] sm:$0xff]
                %428 = vst [vmem:[%s150 + $0x450] sm:$0xff] %v427
                %v429 = vld [vmem:[%s149 + $0x858] sm:$0xff]
                %430 = vst [vmem:[%s150 + $0x458] sm:$0xff] %v429
                %v431 = vld [vmem:[%s149 + $0x860] sm:$0xff]
                %432 = vst [vmem:[%s150 + $0x460] sm:$0xff] %v431
                %v433 = vld [vmem:[%s149 + $0x868] sm:$0xff]
                %434 = vst [vmem:[%s150 + $0x468] sm:$0xff] %v433
                %v435 = vld [vmem:[%s149 + $0x870] sm:$0xff]
                %436 = vst [vmem:[%s150 + $0x470] sm:$0xff] %v435
                %v437 = vld [vmem:[%s149 + $0x878] sm:$0xff]
                %438 = vst [vmem:[%s150 + $0x478] sm:$0xff] %v437
                %v439 = vld [vmem:[%s149 + $0x880] sm:$0xff]
                %440 = vst [vmem:[%s150 + $0x480] sm:$0xff] %v439
                %v441 = vld [vmem:[%s149 + $0x888] sm:$0xff]
                %442 = vst [vmem:[%s150 + $0x488] sm:$0xff] %v441
                %v443 = vld [vmem:[%s149 + $0x890] sm:$0xff]
                %444 = vst [vmem:[%s150 + $0x490] sm:$0xff] %v443
                %v445 = vld [vmem:[%s149 + $0x898] sm:$0xff]
                %446 = vst [vmem:[%s150 + $0x498] sm:$0xff] %v445
                %v447 = vld [vmem:[%s149 + $0x8a0] sm:$0xff]
                %448 = vst [vmem:[%s150 + $0x4a0] sm:$0xff] %v447
                %v449 = vld [vmem:[%s149 + $0x8a8] sm:$0xff]
                %450 = vst [vmem:[%s150 + $0x4a8] sm:$0xff] %v449
                %v451 = vld [vmem:[%s149 + $0x8b0] sm:$0xff]
                %452 = vst [vmem:[%s150 + $0x4b0] sm:$0xff] %v451
                %v453 = vld [vmem:[%s149 + $0x8b8] sm:$0xff]
                %454 = vst [vmem:[%s150 + $0x4b8] sm:$0xff] %v453
                %v455 = vld [vmem:[%s149 + $0x8c0] sm:$0xff]
                %456 = vst [vmem:[%s150 + $0x4c0] sm:$0xff] %v455
                %v457 = vld [vmem:[%s149 + $0x8c8] sm:$0xff]
                %458 = vst [vmem:[%s150 + $0x4c8] sm:$0xff] %v457
                %v459 = vld [vmem:[%s149 + $0x8d0] sm:$0xff]
                %460 = vst [vmem:[%s150 + $0x4d0] sm:$0xff] %v459
                %v461 = vld [vmem:[%s149 + $0x8d8] sm:$0xff]
                %462 = vst [vmem:[%s150 + $0x4d8] sm:$0xff] %v461
                %v463 = vld [vmem:[%s149 + $0x8e0] sm:$0xff]
                %464 = vst [vmem:[%s150 + $0x4e0] sm:$0xff] %v463
                %v465 = vld [vmem:[%s149 + $0x8e8] sm:$0xff]
                %466 = vst [vmem:[%s150 + $0x4e8] sm:$0xff] %v465
                %v467 = vld [vmem:[%s149 + $0x8f0] sm:$0xff]
                %468 = vst [vmem:[%s150 + $0x4f0] sm:$0xff] %v467
                %v469 = vld [vmem:[%s149 + $0x8f8] sm:$0xff]
                %470 = vst [vmem:[%s150 + $0x4f8] sm:$0xff] %v469
                %v471 = vld [vmem:[%s149 + $0x900] sm:$0xff]
                %472 = vst [vmem:[%s150 + $0x500] sm:$0xff] %v471
                %v473 = vld [vmem:[%s149 + $0x908] sm:$0xff]
                %474 = vst [vmem:[%s150 + $0x508] sm:$0xff] %v473
                %v475 = vld [vmem:[%s149 + $0x910] sm:$0xff]
                %476 = vst [vmem:[%s150 + $0x510] sm:$0xff] %v475
                %v477 = vld [vmem:[%s149 + $0x918] sm:$0xff]
                %478 = vst [vmem:[%s150 + $0x518] sm:$0xff] %v477
                %v479 = vld [vmem:[%s149 + $0x920] sm:$0xff]
                %480 = vst [vmem:[%s150 + $0x520] sm:$0xff] %v479
                %v481 = vld [vmem:[%s149 + $0x928] sm:$0xff]
                %482 = vst [vmem:[%s150 + $0x528] sm:$0xff] %v481
                %v483 = vld [vmem:[%s149 + $0x930] sm:$0xff]
                %484 = vst [vmem:[%s150 + $0x530] sm:$0xff] %v483
                %v485 = vld [vmem:[%s149 + $0x938] sm:$0xff]
                %486 = vst [vmem:[%s150 + $0x538] sm:$0xff] %v485
                %v487 = vld [vmem:[%s149 + $0x940] sm:$0xff]
                %488 = vst [vmem:[%s150 + $0x540] sm:$0xff] %v487
                %v489 = vld [vmem:[%s149 + $0x948] sm:$0xff]
                %490 = vst [vmem:[%s150 + $0x548] sm:$0xff] %v489
                %v491 = vld [vmem:[%s149 + $0x950] sm:$0xff]
                %492 = vst [vmem:[%s150 + $0x550] sm:$0xff] %v491
                %v493 = vld [vmem:[%s149 + $0x958] sm:$0xff]
                %494 = vst [vmem:[%s150 + $0x558] sm:$0xff] %v493
                %v495 = vld [vmem:[%s149 + $0x960] sm:$0xff]
                %496 = vst [vmem:[%s150 + $0x560] sm:$0xff] %v495
                %v497 = vld [vmem:[%s149 + $0x968] sm:$0xff]
                %498 = vst [vmem:[%s150 + $0x568] sm:$0xff] %v497
                %v499 = vld [vmem:[%s149 + $0x970] sm:$0xff]
                %500 = vst [vmem:[%s150 + $0x570] sm:$0xff] %v499
                %v501 = vld [vmem:[%s149 + $0x978] sm:$0xff]
                %502 = vst [vmem:[%s150 + $0x578] sm:$0xff] %v501
                %v503 = vld [vmem:[%s149 + $0x980] sm:$0xff]
                %504 = vst [vmem:[%s150 + $0x580] sm:$0xff] %v503
                %v505 = vld [vmem:[%s149 + $0x988] sm:$0xff]
                %506 = vst [vmem:[%s150 + $0x588] sm:$0xff] %v505
                %v507 = vld [vmem:[%s149 + $0x990] sm:$0xff]
                %508 = vst [vmem:[%s150 + $0x590] sm:$0xff] %v507
                %v509 = vld [vmem:[%s149 + $0x998] sm:$0xff]
                %510 = vst [vmem:[%s150 + $0x598] sm:$0xff] %v509
                %v511 = vld [vmem:[%s149 + $0x9a0] sm:$0xff]
                %512 = vst [vmem:[%s150 + $0x5a0] sm:$0xff] %v511
                %v513 = vld [vmem:[%s149 + $0x9a8] sm:$0xff]
                %514 = vst [vmem:[%s150 + $0x5a8] sm:$0xff] %v513
                %v515 = vld [vmem:[%s149 + $0x9b0] sm:$0xff]
                %516 = vst [vmem:[%s150 + $0x5b0] sm:$0xff] %v515
                %v517 = vld [vmem:[%s149 + $0x9b8] sm:$0xff]
                %518 = vst [vmem:[%s150 + $0x5b8] sm:$0xff] %v517
                %v519 = vld [vmem:[%s149 + $0x9c0] sm:$0xff]
                %520 = vst [vmem:[%s150 + $0x5c0] sm:$0xff] %v519
                %v521 = vld [vmem:[%s149 + $0x9c8] sm:$0xff]
                %522 = vst [vmem:[%s150 + $0x5c8] sm:$0xff] %v521
                %v523 = vld [vmem:[%s149 + $0x9d0] sm:$0xff]
                %524 = vst [vmem:[%s150 + $0x5d0] sm:$0xff] %v523
                %v525 = vld [vmem:[%s149 + $0x9d8] sm:$0xff]
                %526 = vst [vmem:[%s150 + $0x5d8] sm:$0xff] %v525
                %v527 = vld [vmem:[%s149 + $0x9e0] sm:$0xff]
                %528 = vst [vmem:[%s150 + $0x5e0] sm:$0xff] %v527
                %v529 = vld [vmem:[%s149 + $0x9e8] sm:$0xff]
                %530 = vst [vmem:[%s150 + $0x5e8] sm:$0xff] %v529
                %v531 = vld [vmem:[%s149 + $0x9f0] sm:$0xff]
                %532 = vst [vmem:[%s150 + $0x5f0] sm:$0xff] %v531
                %v533 = vld [vmem:[%s149 + $0x9f8] sm:$0xff]
                %534 = vst [vmem:[%s150 + $0x5f8] sm:$0xff] %v533
                %v535 = vld [vmem:[%s149 + $0xc00] sm:$0xff]
                %536 = vst [vmem:[%s150 + $0x600] sm:$0xff] %v535
                %v537 = vld [vmem:[%s149 + $0xc08] sm:$0xff]
                %538 = vst [vmem:[%s150 + $0x608] sm:$0xff] %v537
                %v539 = vld [vmem:[%s149 + $0xc10] sm:$0xff]
                %540 = vst [vmem:[%s150 + $0x610] sm:$0xff] %v539
                %v541 = vld [vmem:[%s149 + $0xc18] sm:$0xff]
                %542 = vst [vmem:[%s150 + $0x618] sm:$0xff] %v541
                %v543 = vld [vmem:[%s149 + $0xc20] sm:$0xff]
                %544 = vst [vmem:[%s150 + $0x620] sm:$0xff] %v543
                %v545 = vld [vmem:[%s149 + $0xc28] sm:$0xff]
                %546 = vst [vmem:[%s150 + $0x628] sm:$0xff] %v545
                %v547 = vld [vmem:[%s149 + $0xc30] sm:$0xff]
                %548 = vst [vmem:[%s150 + $0x630] sm:$0xff] %v547
                %v549 = vld [vmem:[%s149 + $0xc38] sm:$0xff]
                %550 = vst [vmem:[%s150 + $0x638] sm:$0xff] %v549
                %v551 = vld [vmem:[%s149 + $0xc40] sm:$0xff]
                %552 = vst [vmem:[%s150 + $0x640] sm:$0xff] %v551
                %v553 = vld [vmem:[%s149 + $0xc48] sm:$0xff]
                %554 = vst [vmem:[%s150 + $0x648] sm:$0xff] %v553
                %v555 = vld [vmem:[%s149 + $0xc50] sm:$0xff]
                %556 = vst [vmem:[%s150 + $0x650] sm:$0xff] %v555
                %v557 = vld [vmem:[%s149 + $0xc58] sm:$0xff]
                %558 = vst [vmem:[%s150 + $0x658] sm:$0xff] %v557
                %v559 = vld [vmem:[%s149 + $0xc60] sm:$0xff]
                %560 = vst [vmem:[%s150 + $0x660] sm:$0xff] %v559
                %v561 = vld [vmem:[%s149 + $0xc68] sm:$0xff]
                %562 = vst [vmem:[%s150 + $0x668] sm:$0xff] %v561
                %v563 = vld [vmem:[%s149 + $0xc70] sm:$0xff]
                %564 = vst [vmem:[%s150 + $0x670] sm:$0xff] %v563
                %v565 = vld [vmem:[%s149 + $0xc78] sm:$0xff]
                %566 = vst [vmem:[%s150 + $0x678] sm:$0xff] %v565
                %v567 = vld [vmem:[%s149 + $0xc80] sm:$0xff]
                %568 = vst [vmem:[%s150 + $0x680] sm:$0xff] %v567
                %v569 = vld [vmem:[%s149 + $0xc88] sm:$0xff]
                %570 = vst [vmem:[%s150 + $0x688] sm:$0xff] %v569
                %v571 = vld [vmem:[%s149 + $0xc90] sm:$0xff]
                %572 = vst [vmem:[%s150 + $0x690] sm:$0xff] %v571
                %v573 = vld [vmem:[%s149 + $0xc98] sm:$0xff]
                %574 = vst [vmem:[%s150 + $0x698] sm:$0xff] %v573
                %v575 = vld [vmem:[%s149 + $0xca0] sm:$0xff]
                %576 = vst [vmem:[%s150 + $0x6a0] sm:$0xff] %v575
                %v577 = vld [vmem:[%s149 + $0xca8] sm:$0xff]
                %578 = vst [vmem:[%s150 + $0x6a8] sm:$0xff] %v577
                %v579 = vld [vmem:[%s149 + $0xcb0] sm:$0xff]
                %580 = vst [vmem:[%s150 + $0x6b0] sm:$0xff] %v579
                %v581 = vld [vmem:[%s149 + $0xcb8] sm:$0xff]
                %582 = vst [vmem:[%s150 + $0x6b8] sm:$0xff] %v581
                %v583 = vld [vmem:[%s149 + $0xcc0] sm:$0xff]
                %584 = vst [vmem:[%s150 + $0x6c0] sm:$0xff] %v583
                %v585 = vld [vmem:[%s149 + $0xcc8] sm:$0xff]
                %586 = vst [vmem:[%s150 + $0x6c8] sm:$0xff] %v585
                %v587 = vld [vmem:[%s149 + $0xcd0] sm:$0xff]
                %588 = vst [vmem:[%s150 + $0x6d0] sm:$0xff] %v587
                %v589 = vld [vmem:[%s149 + $0xcd8] sm:$0xff]
                %590 = vst [vmem:[%s150 + $0x6d8] sm:$0xff] %v589
                %v591 = vld [vmem:[%s149 + $0xce0] sm:$0xff]
                %592 = vst [vmem:[%s150 + $0x6e0] sm:$0xff] %v591
                %v593 = vld [vmem:[%s149 + $0xce8] sm:$0xff]
                %594 = vst [vmem:[%s150 + $0x6e8] sm:$0xff] %v593
                %v595 = vld [vmem:[%s149 + $0xcf0] sm:$0xff]
                %596 = vst [vmem:[%s150 + $0x6f0] sm:$0xff] %v595
                %v597 = vld [vmem:[%s149 + $0xcf8] sm:$0xff]
                %598 = vst [vmem:[%s150 + $0x6f8] sm:$0xff] %v597
                %v599 = vld [vmem:[%s149 + $0xd00] sm:$0xff]
                %600 = vst [vmem:[%s150 + $0x700] sm:$0xff] %v599
                %v601 = vld [vmem:[%s149 + $0xd08] sm:$0xff]
                %602 = vst [vmem:[%s150 + $0x708] sm:$0xff] %v601
                %v603 = vld [vmem:[%s149 + $0xd10] sm:$0xff]
                %604 = vst [vmem:[%s150 + $0x710] sm:$0xff] %v603
                %v605 = vld [vmem:[%s149 + $0xd18] sm:$0xff]
                %606 = vst [vmem:[%s150 + $0x718] sm:$0xff] %v605
                %v607 = vld [vmem:[%s149 + $0xd20] sm:$0xff]
                %608 = vst [vmem:[%s150 + $0x720] sm:$0xff] %v607
                %v609 = vld [vmem:[%s149 + $0xd28] sm:$0xff]
                %610 = vst [vmem:[%s150 + $0x728] sm:$0xff] %v609
                %v611 = vld [vmem:[%s149 + $0xd30] sm:$0xff]
                %612 = vst [vmem:[%s150 + $0x730] sm:$0xff] %v611
                %v613 = vld [vmem:[%s149 + $0xd38] sm:$0xff]
                %614 = vst [vmem:[%s150 + $0x738] sm:$0xff] %v613
                %v615 = vld [vmem:[%s149 + $0xd40] sm:$0xff]
                %616 = vst [vmem:[%s150 + $0x740] sm:$0xff] %v615
                %v617 = vld [vmem:[%s149 + $0xd48] sm:$0xff]
                %618 = vst [vmem:[%s150 + $0x748] sm:$0xff] %v617
                %v619 = vld [vmem:[%s149 + $0xd50] sm:$0xff]
                %620 = vst [vmem:[%s150 + $0x750] sm:$0xff] %v619
                %v621 = vld [vmem:[%s149 + $0xd58] sm:$0xff]
                %622 = vst [vmem:[%s150 + $0x758] sm:$0xff] %v621
                %v623 = vld [vmem:[%s149 + $0xd60] sm:$0xff]
                %624 = vst [vmem:[%s150 + $0x760] sm:$0xff] %v623
                %v625 = vld [vmem:[%s149 + $0xd68] sm:$0xff]
                %626 = vst [vmem:[%s150 + $0x768] sm:$0xff] %v625
                %v627 = vld [vmem:[%s149 + $0xd70] sm:$0xff]
                %628 = vst [vmem:[%s150 + $0x770] sm:$0xff] %v627
                %v629 = vld [vmem:[%s149 + $0xd78] sm:$0xff]
                %630 = vst [vmem:[%s150 + $0x778] sm:$0xff] %v629
                %v631 = vld [vmem:[%s149 + $0xd80] sm:$0xff]
                %632 = vst [vmem:[%s150 + $0x780] sm:$0xff] %v631
                %v633 = vld [vmem:[%s149 + $0xd88] sm:$0xff]
                %634 = vst [vmem:[%s150 + $0x788] sm:$0xff] %v633
                %v635 = vld [vmem:[%s149 + $0xd90] sm:$0xff]
                %636 = vst [vmem:[%s150 + $0x790] sm:$0xff] %v635
                %v637 = vld [vmem:[%s149 + $0xd98] sm:$0xff]
                %638 = vst [vmem:[%s150 + $0x798] sm:$0xff] %v637
                %v639 = vld [vmem:[%s149 + $0xda0] sm:$0xff]
                %640 = vst [vmem:[%s150 + $0x7a0] sm:$0xff] %v639
                %v641 = vld [vmem:[%s149 + $0xda8] sm:$0xff]
                %642 = vst [vmem:[%s150 + $0x7a8] sm:$0xff] %v641
                %v643 = vld [vmem:[%s149 + $0xdb0] sm:$0xff]
                %644 = vst [vmem:[%s150 + $0x7b0] sm:$0xff] %v643
                %v645 = vld [vmem:[%s149 + $0xdb8] sm:$0xff]
                %646 = vst [vmem:[%s150 + $0x7b8] sm:$0xff] %v645
                %v647 = vld [vmem:[%s149 + $0xdc0] sm:$0xff]
                %648 = vst [vmem:[%s150 + $0x7c0] sm:$0xff] %v647
                %v649 = vld [vmem:[%s149 + $0xdc8] sm:$0xff]
                %650 = vst [vmem:[%s150 + $0x7c8] sm:$0xff] %v649
                %v651 = vld [vmem:[%s149 + $0xdd0] sm:$0xff]
                %652 = vst [vmem:[%s150 + $0x7d0] sm:$0xff] %v651
                %v653 = vld [vmem:[%s149 + $0xdd8] sm:$0xff]
                %654 = vst [vmem:[%s150 + $0x7d8] sm:$0xff] %v653
                %v655 = vld [vmem:[%s149 + $0xde0] sm:$0xff]
                %656 = vst [vmem:[%s150 + $0x7e0] sm:$0xff] %v655
                %v657 = vld [vmem:[%s149 + $0xde8] sm:$0xff]
                %658 = vst [vmem:[%s150 + $0x7e8] sm:$0xff] %v657
                %v659 = vld [vmem:[%s149 + $0xdf0] sm:$0xff]
                %660 = vst [vmem:[%s150 + $0x7f0] sm:$0xff] %v659
                %v661 = vld [vmem:[%s149 + $0xdf8] sm:$0xff]
                %662 = vst [vmem:[%s150 + $0x7f8] sm:$0xff] %v661
              $region41: #{cnn_forward.3} parent=35 // loop_footer
                %s148 = sadd.s32 1, %s144
              $region42: #{cnn_forward.3} parent=35 // loop_footer_branch
                %143 = sbr.rel target = $region38
              $region43: #{cnn_forward.3} parent=35 // loop_exit
                _
            $region36: #{cnn_forward.3} parent=31 // pred_fallthru
              _
            // Predicated region
            $region44: #{cnn_forward.3} parent=31 // pred_check
              _
            $region45: #{cnn_forward.3} parent=31 // pred_check_branch
              %664 = sbr.rel target = $region47
            $region46: #{cnn_forward.3} parent=31 // pred_region
              _
            $region47: #{cnn_forward.3} parent=31 // pred_fallthru
              _
          $region32: #{cnn_forward.3} parent=27 // pred_fallthru
            _
          %665 = vnop
        $region28: #{cnn_forward.3} parent=23 // pred_fallthru
          _
      $region24: #{cnn_forward.3} parent=5 // pred_fallthru
        _
      %p666 = scmp.le.s32.totalorder 1, %s9
      %p667 = scmp.lt.s32.totalorder %s9, 3
      %p668 = pnand %p666, %p667
      %p669 = pneg %p668
      // Predicated region
      $region48: #{cnn_forward.3} parent=5 // pred_check
        _
      $region49: #{cnn_forward.3} parent=5 // pred_check_branch
        %671 = sbr.rel (%p668) target = $region51
      $region50: #{cnn_forward.3} parent=5 // pred_region
        %s672 = ssub.s32 %s9, 1
        %s673 = sand.u32 %s22, 1
        %s674 = sand.u32 %s22, 1
        %s675 = smul.addr %s674, 2048
        %s676 = scalar_lea.vmem [#allocation2], %s675
        // Predicated region
        $region52: #{cnn_forward.3} parent=50 // pred_check
          %p677 = pneg %p35
        $region53: #{cnn_forward.3} parent=50 // pred_check_branch
          %679 = sbr.rel (%p677) target = $region55
        $region54: #{cnn_forward.3} parent=50 // pred_region
          _
        $region55: #{cnn_forward.3} parent=50 // pred_fallthru
          _
        %s680 = sand.u32 %s22, 1
        %s681 = sand.u32 %s22, 1
        %s682 = smul.addr %s681, 2048
        %s683 = scalar_lea.vmem [#allocation2], %s682
        %p684 = pneg %p35
        %p685 = pneg %p32
        %p686 = pneg %p56
        %p687 = pneg %p53
        %p688 = pneg %p77
        %p689 = pneg %p74
        %p690 = pneg %p103
        %p691 = pneg %p100
        %s692 = smul.u32 32, %s14
        %p693 = scmp.lt.s32.totalorder %s692, 63
        %s694 = scalar_select %p693, %s692, 63
        %s695 = smul.addr %s694, 8
        %s696 = scalar_lea.vmem %s3, %s695
        %s697 = smul.u32 32, %s14
        %s698 = smul.u32 32, %s14
        %p699 = scmp.lt.s32.totalorder %s698, 63
        %s700 = scalar_select %p699, %s698, 63
        %s701 = smul.addr %s700, 8
        %s702 = scalar_lea.vmem %s3, %s701
        %s703 = smul.u32 32, %s14
        %v704 = vld [vmem:[%s1] sm:$0xff]
        %v705 = vld [vmem:[%s1 + $0x8] sm:$0xff]
        %v706 = vld [vmem:[%s1 + $0x10] sm:$0xff]
        %v707 = vld [vmem:[%s1 + $0x18] sm:$0xff]
        %v708 = vld [vmem:[%s1 + $0x20] sm:$0xff]
        %v709 = vld [vmem:[%s1 + $0x28] sm:$0xff]
        %v710 = vld [vmem:[%s1 + $0x30] sm:$0xff]
        %v711 = vld [vmem:[%s1 + $0x38] sm:$0xff]
        %v712 = vld [vmem:[%s1 + $0x40] sm:$0xff]
        %v713 = vld [vmem:[%s1 + $0x48] sm:$0xff]
        %v714 = vld [vmem:[%s1 + $0x50] sm:$0xff]
        %v715 = vld [vmem:[%s1 + $0x58] sm:$0xff]
        %v716 = vld [vmem:[%s1 + $0x60] sm:$0xff]
        %v717 = vld [vmem:[%s1 + $0x68] sm:$0xff]
        %v718 = vld [vmem:[%s1 + $0x70] sm:$0xff]
        %v719 = vld [vmem:[%s1 + $0x78] sm:$0xff]
        %v720 = vld [vmem:[%s1 + $0x80] sm:$0xff]
        %v721 = vld [vmem:[%s1 + $0x88] sm:$0xff]
        %v722 = vld [vmem:[%s1 + $0x90] sm:$0x7]
        %v723 = vld [vmem:[%s676] sm:$0xff]
        %v724 = vld [vmem:[%s676 + $0x8] sm:$0xff]
        %v725 = vld [vmem:[%s676 + $0x10] sm:$0xff]
        %v726 = vld [vmem:[%s676 + $0x18] sm:$0xff]
        %v727 = vld [vmem:[%s676 + $0x20] sm:$0xff]
        %v728 = vld [vmem:[%s676 + $0x28] sm:$0xff]
        %v729 = vld [vmem:[%s676 + $0x30] sm:$0xff]
        %v730 = vld [vmem:[%s676 + $0x38] sm:$0xff]
        %v731 = vld [vmem:[%s676 + $0x40] sm:$0xff]
        %v732 = vld [vmem:[%s676 + $0x48] sm:$0xff]
        %v733 = vld [vmem:[%s676 + $0x50] sm:$0xff]
        %v734 = vld [vmem:[%s676 + $0x58] sm:$0xff]
        %v735 = vld [vmem:[%s676 + $0x60] sm:$0xff]
        %v736 = vld [vmem:[%s676 + $0x68] sm:$0xff]
        %v737 = vld [vmem:[%s676 + $0x70] sm:$0xff]
        %v738 = vld [vmem:[%s676 + $0x78] sm:$0xff]
        %v739 = vld [vmem:[%s676 + $0x80] sm:$0xff]
        %v740 = vld [vmem:[%s676 + $0x88] sm:$0xff]
        %v741 = vld [vmem:[%s676 + $0x90] sm:$0xff]
        %v742 = vld [vmem:[%s676 + $0x98] sm:$0xff]
        %v743 = vld [vmem:[%s676 + $0xa0] sm:$0xff]
        %v744 = vld [vmem:[%s676 + $0xa8] sm:$0xff]
        %v745 = vld [vmem:[%s676 + $0xb0] sm:$0xff]
        %v746 = vld [vmem:[%s676 + $0xb8] sm:$0xff]
        %v747 = vld [vmem:[%s676 + $0xc0] sm:$0xff]
        %v748 = vld [vmem:[%s676 + $0xc8] sm:$0xff]
        %v749 = vld [vmem:[%s676 + $0xd0] sm:$0xff]
        %v750 = vld [vmem:[%s676 + $0xd8] sm:$0xff]
        %v751 = vld [vmem:[%s676 + $0xe0] sm:$0xff]
        %v752 = vld [vmem:[%s676 + $0xe8] sm:$0xff]
        %v753 = vld [vmem:[%s676 + $0xf0] sm:$0xff]
        %v754 = vld [vmem:[%s676 + $0xf8] sm:$0xff]
        %v755 = vld [vmem:[%s676 + $0x100] sm:$0xff]
        %v756 = vld [vmem:[%s676 + $0x108] sm:$0xff]
        %v757 = vld [vmem:[%s676 + $0x110] sm:$0xff]
        %v758 = vld [vmem:[%s676 + $0x118] sm:$0xff]
        %v759 = vld [vmem:[%s676 + $0x120] sm:$0xff]
        %v760 = vld [vmem:[%s676 + $0x128] sm:$0xff]
        %v761 = vld [vmem:[%s676 + $0x130] sm:$0xff]
        %v762 = vld [vmem:[%s676 + $0x138] sm:$0xff]
        %v763 = vld [vmem:[%s676 + $0x140] sm:$0xff]
        %v764 = vld [vmem:[%s676 + $0x148] sm:$0xff]
        %v765 = vld [vmem:[%s676 + $0x150] sm:$0xff]
        %v766 = vld [vmem:[%s676 + $0x158] sm:$0xff]
        %v767 = vld [vmem:[%s676 + $0x160] sm:$0xff]
        %v768 = vld [vmem:[%s676 + $0x168] sm:$0xff]
        %v769 = vld [vmem:[%s676 + $0x170] sm:$0xff]
        %v770 = vld [vmem:[%s676 + $0x178] sm:$0xff]
        %v771 = vld [vmem:[%s676 + $0x180] sm:$0xff]
        %v772 = vld [vmem:[%s676 + $0x188] sm:$0xff]
        %v773 = vld [vmem:[%s676 + $0x190] sm:$0xff]
        %v774 = vld [vmem:[%s676 + $0x198] sm:$0xff]
        %v775 = vld [vmem:[%s676 + $0x1a0] sm:$0xff]
        %v776 = vld [vmem:[%s676 + $0x1a8] sm:$0xff]
        %v777 = vld [vmem:[%s676 + $0x1b0] sm:$0xff]
        %v778 = vld [vmem:[%s676 + $0x1b8] sm:$0xff]
        %v779 = vld [vmem:[%s676 + $0x1c0] sm:$0xff]
        %v780 = vld [vmem:[%s676 + $0x1c8] sm:$0xff]
        %v781 = vld [vmem:[%s676 + $0x1d0] sm:$0xff]
        %v782 = vld [vmem:[%s676 + $0x1d8] sm:$0xff]
        %v783 = vld [vmem:[%s676 + $0x1e0] sm:$0xff]
        %v784 = vld [vmem:[%s676 + $0x1e8] sm:$0xff]
        %v785 = vld [vmem:[%s676 + $0x1f0] sm:$0xff]
        %v786 = vld [vmem:[%s676 + $0x1f8] sm:$0xff]
        %vm787 = vcmask 154624
        %v789 = vsel %vm787, %v724, 0
        %v792 = vsel %vm787, %v726, 0
        %v795 = vsel %vm787, %v728, 0
        %v798 = vsel %vm787, %v730, 0
        %v801 = vsel %vm787, %v732, 0
        %v804 = vsel %vm787, %v734, 0
        %v807 = vsel %vm787, %v736, 0
        %v810 = vsel %vm787, %v738, 0
        %v813 = vsel %vm787, %v740, 0
        %v816 = vsel %vm787, %v742, 0
        %v819 = vsel %vm787, %v744, 0
        %v822 = vsel %vm787, %v746, 0
        %v825 = vsel %vm787, %v748, 0
        %v828 = vsel %vm787, %v750, 0
        %v831 = vsel %vm787, %v752, 0
        %v834 = vsel %vm787, %v754, 0
        %v837 = vsel %vm787, %v756, 0
        %v840 = vsel %vm787, %v758, 0
        %v843 = vsel %vm787, %v760, 0
        %v846 = vsel %vm787, %v762, 0
        %v849 = vsel %vm787, %v764, 0
        %v852 = vsel %vm787, %v766, 0
        %v855 = vsel %vm787, %v768, 0
        %v858 = vsel %vm787, %v770, 0
        %v861 = vsel %vm787, %v772, 0
        %v864 = vsel %vm787, %v774, 0
        %v867 = vsel %vm787, %v776, 0
        %v870 = vsel %vm787, %v778, 0
        %v873 = vsel %vm787, %v780, 0
        %v876 = vsel %vm787, %v782, 0
        %v879 = vsel %vm787, %v784, 0
        %v882 = vsel %vm787, %v786, 0
        %vm884 = vcmask 1042432
        %v886 = vsel %vm884, %v722, 0
        %888 = vmatprep.subr.mxu0 0.0
        %889 = vmatpush1.msra.mxu0 %v704
        %890 = vmatprep.subr.mxu0 0.0
        %891 = vmatpush1.msra.mxu0 %v705
        %892 = vmatprep.subr.mxu0 0.0
        %893 = vmatpush1.msra.mxu0 %v706
        %894 = vmatprep.subr.mxu0 0.0
        %895 = vmatpush1.msra.mxu0 %v707
        %896 = vmatprep.subr.mxu0 0.0
        %897 = vmatpush1.msra.mxu0 %v708
        %898 = vmatprep.subr.mxu0 0.0
        %899 = vmatpush1.msra.mxu0 %v709
        %900 = vmatprep.subr.mxu0 0.0
        %901 = vmatpush1.msra.mxu0 %v710
        %902 = vmatprep.subr.mxu0 0.0
        %903 = vmatpush1.msra.mxu0 %v711
        %904 = vmatprep.subr.mxu0 0.0
        %905 = vmatpush1.msra.mxu0 %v712
        %906 = vmatprep.subr.mxu0 0.0
        %907 = vmatpush1.msra.mxu0 %v713
        %908 = vmatprep.subr.mxu0 0.0
        %909 = vmatpush1.msra.mxu0 %v714
        %910 = vmatprep.subr.mxu0 0.0
        %911 = vmatpush1.msra.mxu0 %v715
        %912 = vmatprep.subr.mxu0 0.0
        %913 = vmatpush1.msra.mxu0 %v716
        %914 = vmatprep.subr.mxu0 0.0
        %915 = vmatpush1.msra.mxu0 %v717
        %916 = vmatprep.subr.mxu0 0.0
        %917 = vmatpush1.msra.mxu0 %v718
        %918 = vmatprep.subr.mxu0 0.0
        %919 = vmatpush1.msra.mxu0 %v719
        %920 = vmatprep.subr.mxu0 0.0
        %921 = vmatpush1.msra.mxu0 %v720
        %922 = vmatprep.subr.mxu0 0.0
        %923 = vmatpush1.msra.mxu0 %v721
        %924 = vmatprep.subr.mxu0 0.0
        %925 = vmatpush1.msra.mxu0 %v886
        %926 = vmatprep.subr.mxu0 0.0
        %927 = vmatpush1.msra.mxu0 0.0
        %928 = vmatprep.subr.mxu0 0.0
        %929 = vmatpush1.msra.mxu0 0.0
        %930 = vmatprep.subr.mxu0 0.0
        %931 = vmatpush1.msra.mxu0 0.0
        %932 = vmatprep.subr.mxu0 0.0
        %933 = vmatpush1.msra.mxu0 0.0
        %934 = vmatprep.subr.mxu0 0.0
        %935 = vmatpush1.msra.mxu0 0.0
        %936 = vmatprep.subr.mxu0 0.0
        %937 = vmatpush1.msra.mxu0 0.0
        %938 = vmatprep.subr.mxu0 0.0
        %939 = vmatpush1.msra.mxu0 0.0
        %940 = vmatprep.subr.mxu0 0.0
        %941 = vmatpush1.msra.mxu0 0.0
        %942 = vmatprep.subr.mxu0 0.0
        %943 = vmatpush1.msra.mxu0 0.0
        %944 = vmatprep.subr.mxu0 0.0
        %945 = vmatpush1.msra.mxu0 0.0
        %946 = vmatprep.subr.mxu0 0.0
        %947 = vmatpush1.msra.mxu0 0.0
        %948 = vmatprep.subr.mxu0 0.0
        %949 = vmatpush1.msra.mxu0 0.0
        %950 = vmatprep.subr.mxu0 0.0
        %951 = vmatpush1.msra.mxu0 0.0
        %952 = vmatprep.mubr.f32.mxu0 %v789
        %953 = vmatmul.mubr.f32.gmra.mrb[0].mxu0 %v723
        %v954 = vpop.f32.mrb[0].mxu0
        %v955 = vadd.f32 0.0, %v954
        %v956 = vpop.f32.mrb[0].mxu0
        %957 = vmatprep.mubr.f32.mxu0 %v792
        %958 = vmatmul.mubr.f32.gmra.mrb[0].mxu0 %v725
        %v959 = vpop.f32.mrb[0].mxu0
        %v960 = vadd.f32 0.0, %v959
        %v961 = vpop.f32.mrb[0].mxu0
        %962 = vmatprep.mubr.f32.mxu0 %v795
        %963 = vmatmul.mubr.f32.gmra.mrb[0].mxu0 %v727
        %v964 = vpop.f32.mrb[0].mxu0
        %v965 = vadd.f32 0.0, %v964
        %v966 = vpop.f32.mrb[0].mxu0
        %967 = vmatprep.mubr.f32.mxu0 %v798
        %968 = vmatmul.mubr.f32.gmra.mrb[0].mxu0 %v729
        %v969 = vpop.f32.mrb[0].mxu0
        %v970 = vadd.f32 0.0, %v969
        %v971 = vpop.f32.mrb[0].mxu0
        %972 = vmatprep.mubr.f32.mxu0 %v801
        %973 = vmatmul.mubr.f32.gmra.mrb[0].mxu0 %v731
        %v974 = vpop.f32.mrb[0].mxu0
        %v975 = vadd.f32 0.0, %v974
        %v976 = vpop.f32.mrb[0].mxu0
        %977 = vmatprep.mubr.f32.mxu0 %v804
        %978 = vmatmul.mubr.f32.gmra.mrb[0].mxu0 %v733
        %v979 = vpop.f32.mrb[0].mxu0
        %v980 = vadd.f32 0.0, %v979
        %v981 = vpop.f32.mrb[0].mxu0
        %982 = vmatprep.mubr.f32.mxu0 %v807
        %983 = vmatmul.mubr.f32.gmra.mrb[0].mxu0 %v735
        %v984 = vpop.f32.mrb[0].mxu0
        %v985 = vadd.f32 0.0, %v984
        %v986 = vpop.f32.mrb[0].mxu0
        %987 = vmatprep.mubr.f32.mxu0 %v810
        %988 = vmatmul.mubr.f32.gmra.mrb[0].mxu0 %v737
        %v989 = vpop.f32.mrb[0].mxu0
        %v990 = vadd.f32 0.0, %v989
        %v991 = vpop.f32.mrb[0].mxu0
        %992 = vmatprep.mubr.f32.mxu0 %v813
        %993 = vmatmul.mubr.f32.gmra.mrb[0].mxu0 %v739
        %v994 = vpop.f32.mrb[0].mxu0
        %v995 = vadd.f32 0.0, %v994
        %v996 = vpop.f32.mrb[0].mxu0
        %997 = vmatprep.mubr.f32.mxu0 %v816
        %998 = vmatmul.mubr.f32.gmra.mrb[0].mxu0 %v741
        %v999 = vpop.f32.mrb[0].mxu0
        %v1000 = vadd.f32 0.0, %v999
        %v1001 = vpop.f32.mrb[0].mxu0
        %1002 = vmatprep.mubr.f32.mxu0 %v819
        %1003 = vmatmul.mubr.f32.gmra.mrb[0].mxu0 %v743
        %v1004 = vpop.f32.mrb[0].mxu0
        %v1005 = vadd.f32 0.0, %v1004
        %v1006 = vpop.f32.mrb[0].mxu0
        %1007 = vmatprep.mubr.f32.mxu0 %v822
        %1008 = vmatmul.mubr.f32.gmra.mrb[0].mxu0 %v745
        %v1009 = vpop.f32.mrb[0].mxu0
        %v1010 = vadd.f32 0.0, %v1009
        %v1011 = vpop.f32.mrb[0].mxu0
        %1012 = vmatprep.mubr.f32.mxu0 %v825
        %1013 = vmatmul.mubr.f32.gmra.mrb[0].mxu0 %v747
        %v1014 = vpop.f32.mrb[0].mxu0
        %v1015 = vadd.f32 0.0, %v1014
        %v1016 = vpop.f32.mrb[0].mxu0
        %1017 = vmatprep.mubr.f32.mxu0 %v828
        %1018 = vmatmul.mubr.f32.gmra.mrb[0].mxu0 %v749
        %v1019 = vpop.f32.mrb[0].mxu0
        %v1020 = vadd.f32 0.0, %v1019
        %v1021 = vpop.f32.mrb[0].mxu0
        %1022 = vmatprep.mubr.f32.mxu0 %v831
        %1023 = vmatmul.mubr.f32.gmra.mrb[0].mxu0 %v751
        %v1024 = vpop.f32.mrb[0].mxu0
        %v1025 = vadd.f32 0.0, %v1024
        %v1026 = vpop.f32.mrb[0].mxu0
        %1027 = vmatprep.mubr.f32.mxu0 %v834
        %1028 = vmatmul.mubr.f32.gmra.mrb[0].mxu0 %v753
        %v1029 = vpop.f32.mrb[0].mxu0
        %v1030 = vadd.f32 0.0, %v1029
        %v1031 = vpop.f32.mrb[0].mxu0
        %1032 = vmatprep.mubr.f32.mxu0 %v837
        %1033 = vmatmul.mubr.f32.gmra.mrb[0].mxu0 %v755
        %v1034 = vpop.f32.mrb[0].mxu0
        %v1035 = vadd.f32 0.0, %v1034
        %v1036 = vpop.f32.mrb[0].mxu0
        %1037 = vmatprep.mubr.f32.mxu0 %v840
        %1038 = vmatmul.mubr.f32.gmra.mrb[0].mxu0 %v757
        %v1039 = vpop.f32.mrb[0].mxu0
        %v1040 = vadd.f32 0.0, %v1039
        %v1041 = vpop.f32.mrb[0].mxu0
        %1042 = vmatprep.mubr.f32.mxu0 %v843
        %1043 = vmatmul.mubr.f32.gmra.mrb[0].mxu0 %v759
        %v1044 = vpop.f32.mrb[0].mxu0
        %v1045 = vadd.f32 0.0, %v1044
        %v1046 = vpop.f32.mrb[0].mxu0
        %1047 = vmatprep.mubr.f32.mxu0 %v846
        %1048 = vmatmul.mubr.f32.gmra.mrb[0].mxu0 %v761
        %v1049 = vpop.f32.mrb[0].mxu0
        %v1050 = vadd.f32 0.0, %v1049
        %v1051 = vpop.f32.mrb[0].mxu0
        %1052 = vmatprep.mubr.f32.mxu0 %v849
        %1053 = vmatmul.mubr.f32.gmra.mrb[0].mxu0 %v763
        %v1054 = vpop.f32.mrb[0].mxu0
        %v1055 = vadd.f32 0.0, %v1054
        %v1056 = vpop.f32.mrb[0].mxu0
        %1057 = vmatprep.mubr.f32.mxu0 %v852
        %1058 = vmatmul.mubr.f32.gmra.mrb[0].mxu0 %v765
        %v1059 = vpop.f32.mrb[0].mxu0
        %v1060 = vadd.f32 0.0, %v1059
        %v1061 = vpop.f32.mrb[0].mxu0
        %1062 = vmatprep.mubr.f32.mxu0 %v855
        %1063 = vmatmul.mubr.f32.gmra.mrb[0].mxu0 %v767
        %v1064 = vpop.f32.mrb[0].mxu0
        %v1065 = vadd.f32 0.0, %v1064
        %v1066 = vpop.f32.mrb[0].mxu0
        %1067 = vmatprep.mubr.f32.mxu0 %v858
        %1068 = vmatmul.mubr.f32.gmra.mrb[0].mxu0 %v769
        %v1069 = vpop.f32.mrb[0].mxu0
        %v1070 = vadd.f32 0.0, %v1069
        %v1071 = vpop.f32.mrb[0].mxu0
        %1072 = vmatprep.mubr.f32.mxu0 %v861
        %1073 = vmatmul.mubr.f32.gmra.mrb[0].mxu0 %v771
        %v1074 = vpop.f32.mrb[0].mxu0
        %v1075 = vadd.f32 0.0, %v1074
        %v1076 = vpop.f32.mrb[0].mxu0
        %1077 = vmatprep.mubr.f32.mxu0 %v864
        %1078 = vmatmul.mubr.f32.gmra.mrb[0].mxu0 %v773
        %v1079 = vpop.f32.mrb[0].mxu0
        %v1080 = vadd.f32 0.0, %v1079
        %v1081 = vpop.f32.mrb[0].mxu0
        %1082 = vmatprep.mubr.f32.mxu0 %v867
        %1083 = vmatmul.mubr.f32.gmra.mrb[0].mxu0 %v775
        %v1084 = vpop.f32.mrb[0].mxu0
        %v1085 = vadd.f32 0.0, %v1084
        %v1086 = vpop.f32.mrb[0].mxu0
        %1087 = vmatprep.mubr.f32.mxu0 %v870
        %1088 = vmatmul.mubr.f32.gmra.mrb[0].mxu0 %v777
        %v1089 = vpop.f32.mrb[0].mxu0
        %v1090 = vadd.f32 0.0, %v1089
        %v1091 = vpop.f32.mrb[0].mxu0
        %1092 = vmatprep.mubr.f32.mxu0 %v873
        %1093 = vmatmul.mubr.f32.gmra.mrb[0].mxu0 %v779
        %v1094 = vpop.f32.mrb[0].mxu0
        %v1095 = vadd.f32 0.0, %v1094
        %v1096 = vpop.f32.mrb[0].mxu0
        %1097 = vmatprep.mubr.f32.mxu0 %v876
        %1098 = vmatmul.mubr.f32.gmra.mrb[0].mxu0 %v781
        %v1099 = vpop.f32.mrb[0].mxu0
        %v1100 = vadd.f32 0.0, %v1099
        %v1101 = vpop.f32.mrb[0].mxu0
        %1102 = vmatprep.mubr.f32.mxu0 %v879
        %1103 = vmatmul.mubr.f32.gmra.mrb[0].mxu0 %v783
        %v1104 = vpop.f32.mrb[0].mxu0
        %v1105 = vadd.f32 0.0, %v1104
        %v1106 = vpop.f32.mrb[0].mxu0
        %1107 = vmatprep.mubr.f32.mxu0 %v882
        %1108 = vmatmul.mubr.f32.gmra.mrb[0].mxu0 %v785
        %v1109 = vpop.f32.mrb[0].mxu0
        %v1110 = vadd.f32 0.0, %v1109
        %v1111 = vpop.f32.mrb[0].mxu0
        %1112 = vdwg.mxu0
        %s1113 = scalar_lea.vmem %s676, 512 [#allocation2]
        %v1114 = vld [vmem:[%s1113] sm:$0xff]
        %v1115 = vld [vmem:[%s1113 + $0x8] sm:$0xff]
        %v1116 = vld [vmem:[%s1113 + $0x10] sm:$0xff]
        %v1117 = vld [vmem:[%s1113 + $0x18] sm:$0xff]
        %v1118 = vld [vmem:[%s1113 + $0x20] sm:$0xff]
        %v1119 = vld [vmem:[%s1113 + $0x28] sm:$0xff]
        %v1120 = vld [vmem:[%s1113 + $0x30] sm:$0xff]
        %v1121 = vld [vmem:[%s1113 + $0x38] sm:$0xff]
        %v1122 = vld [vmem:[%s1113 + $0x40] sm:$0xff]
        %v1123 = vld [vmem:[%s1113 + $0x48] sm:$0xff]
        %v1124 = vld [vmem:[%s1113 + $0x50] sm:$0xff]
        %v1125 = vld [vmem:[%s1113 + $0x58] sm:$0xff]
        %v1126 = vld [vmem:[%s1113 + $0x60] sm:$0xff]
        %v1127 = vld [vmem:[%s1113 + $0x68] sm:$0xff]
        %v1128 = vld [vmem:[%s1113 + $0x70] sm:$0xff]
        %v1129 = vld [vmem:[%s1113 + $0x78] sm:$0xff]
        %v1130 = vld [vmem:[%s1113 + $0x80] sm:$0xff]
        %v1131 = vld [vmem:[%s1113 + $0x88] sm:$0xff]
        %v1132 = vld [vmem:[%s1113 + $0x90] sm:$0xff]
        %v1133 = vld [vmem:[%s1113 + $0x98] sm:$0xff]
        %v1134 = vld [vmem:[%s1113 + $0xa0] sm:$0xff]
        %v1135 = vld [vmem:[%s1113 + $0xa8] sm:$0xff]
        %v1136 = vld [vmem:[%s1113 + $0xb0] sm:$0xff]
        %v1137 = vld [vmem:[%s1113 + $0xb8] sm:$0xff]
        %v1138 = vld [vmem:[%s1113 + $0xc0] sm:$0xff]
        %v1139 = vld [vmem:[%s1113 + $0xc8] sm:$0xff]
        %v1140 = vld [vmem:[%s1113 + $0xd0] sm:$0xff]
        %v1141 = vld [vmem:[%s1113 + $0xd8] sm:$0xff]
        %v1142 = vld [vmem:[%s1113 + $0xe0] sm:$0xff]
        %v1143 = vld [vmem:[%s1113 + $0xe8] sm:$0xff]
        %v1144 = vld [vmem:[%s1113 + $0xf0] sm:$0xff]
        %v1145 = vld [vmem:[%s1113 + $0xf8] sm:$0xff]
        %v1146 = vld [vmem:[%s1113 + $0x100] sm:$0xff]
        %v1147 = vld [vmem:[%s1113 + $0x108] sm:$0xff]
        %v1148 = vld [vmem:[%s1113 + $0x110] sm:$0xff]
        %v1149 = vld [vmem:[%s1113 + $0x118] sm:$0xff]
        %v1150 = vld [vmem:[%s1113 + $0x120] sm:$0xff]
        %v1151 = vld [vmem:[%s1113 + $0x128] sm:$0xff]
        %v1152 = vld [vmem:[%s1113 + $0x130] sm:$0xff]
        %v1153 = vld [vmem:[%s1113 + $0x138] sm:$0xff]
        %v1154 = vld [vmem:[%s1113 + $0x140] sm:$0xff]
        %v1155 = vld [vmem:[%s1113 + $0x148] sm:$0xff]
        %v1156 = vld [vmem:[%s1113 + $0x150] sm:$0xff]
        %v1157 = vld [vmem:[%s1113 + $0x158] sm:$0xff]
        %v1158 = vld [vmem:[%s1113 + $0x160] sm:$0xff]
        %v1159 = vld [vmem:[%s1113 + $0x168] sm:$0xff]
        %v1160 = vld [vmem:[%s1113 + $0x170] sm:$0xff]
        %v1161 = vld [vmem:[%s1113 + $0x178] sm:$0xff]
        %v1162 = vld [vmem:[%s1113 + $0x180] sm:$0xff]
        %v1163 = vld [vmem:[%s1113 + $0x188] sm:$0xff]
        %v1164 = vld [vmem:[%s1113 + $0x190] sm:$0xff]
        %v1165 = vld [vmem:[%s1113 + $0x198] sm:$0xff]
        %v1166 = vld [vmem:[%s1113 + $0x1a0] sm:$0xff]
        %v1167 = vld [vmem:[%s1113 + $0x1a8] sm:$0xff]
        %v1168 = vld [vmem:[%s1113 + $0x1b0] sm:$0xff]
        %v1169 = vld [vmem:[%s1113 + $0x1b8] sm:$0xff]
        %v1170 = vld [vmem:[%s1113 + $0x1c0] sm:$0xff]
        %v1171 = vld [vmem:[%s1113 + $0x1c8] sm:$0xff]
        %v1172 = vld [vmem:[%s1113 + $0x1d0] sm:$0xff]
        %v1173 = vld [vmem:[%s1113 + $0x1d8] sm:$0xff]
        %v1174 = vld [vmem:[%s1113 + $0x1e0] sm:$0xff]
        %v1175 = vld [vmem:[%s1113 + $0x1e8] sm:$0xff]
        %v1176 = vld [vmem:[%s1113 + $0x1f0] sm:$0xff]
        %v1177 = vld [vmem:[%s1113 + $0x1f8] sm:$0xff]
        %v1179 = vsel %vm787, %v1115, 0
        %v1182 = vsel %vm787, %v1117, 0
        %v1185 = vsel %vm787, %v1119, 0
        %v1188 = vsel %vm787, %v1121, 0
        %v1191 = vsel %vm787, %v1123, 0
        %v1194 = vsel %vm787, %v1125, 0
        %v1197 = vsel %vm787, %v1127, 0
        %v1200 = vsel %vm787, %v1129, 0
        %v1203 = vsel %vm787, %v1131, 0
        %v1206 = vsel %vm787, %v1133, 0
        %v1209 = vsel %vm787, %v1135, 0
        %v1212 = vsel %vm787, %v1137, 0
        %v1215 = vsel %vm787, %v1139, 0
        %v1218 = vsel %vm787, %v1141, 0
        %v1221 = vsel %vm787, %v1143, 0
        %v1224 = vsel %vm787, %v1145, 0
        %v1227 = vsel %vm787, %v1147, 0
        %v1230 = vsel %vm787, %v1149, 0
        %v1233 = vsel %vm787, %v1151, 0
        %v1236 = vsel %vm787, %v1153, 0
        %v1239 = vsel %vm787, %v1155, 0
        %v1242 = vsel %vm787, %v1157, 0
        %v1245 = vsel %vm787, %v1159, 0
        %v1248 = vsel %vm787, %v1161, 0
        %v1251 = vsel %vm787, %v1163, 0
        %v1254 = vsel %vm787, %v1165, 0
        %v1257 = vsel %vm787, %v1167, 0
        %v1260 = vsel %vm787, %v1169, 0
        %v1263 = vsel %vm787, %v1171, 0
        %v1266 = vsel %vm787, %v1173, 0
        %v1269 = vsel %vm787, %v1175, 0
        %v1272 = vsel %vm787, %v1177, 0
        %1274 = vmatprep.subr.mxu0 0.0
        %1275 = vmatpush1.msra.mxu0 %v704
        %1276 = vmatprep.subr.mxu0 0.0
        %1277 = vmatpush1.msra.mxu0 %v705
        %1278 = vmatprep.subr.mxu0 0.0
        %1279 = vmatpush1.msra.mxu0 %v706
        %1280 = vmatprep.subr.mxu0 0.0
        %1281 = vmatpush1.msra.mxu0 %v707
        %1282 = vmatprep.subr.mxu0 0.0
        %1283 = vmatpush1.msra.mxu0 %v708
        %1284 = vmatprep.subr.mxu0 0.0
        %1285 = vmatpush1.msra.mxu0 %v709
        %1286 = vmatprep.subr.mxu0 0.0
        %1287 = vmatpush1.msra.mxu0 %v710
        %1288 = vmatprep.subr.mxu0 0.0
        %1289 = vmatpush1.msra.mxu0 %v711
        %1290 = vmatprep.subr.mxu0 0.0
        %1291 = vmatpush1.msra.mxu0 %v712
        %1292 = vmatprep.subr.mxu0 0.0
        %1293 = vmatpush1.msra.mxu0 %v713
        %1294 = vmatprep.subr.mxu0 0.0
        %1295 = vmatpush1.msra.mxu0 %v714
        %1296 = vmatprep.subr.mxu0 0.0
        %1297 = vmatpush1.msra.mxu0 %v715
        %1298 = vmatprep.subr.mxu0 0.0
        %1299 = vmatpush1.msra.mxu0 %v716
        %1300 = vmatprep.subr.mxu0 0.0
        %1301 = vmatpush1.msra.mxu0 %v717
        %1302 = vmatprep.subr.mxu0 0.0
        %1303 = vmatpush1.msra.mxu0 %v718
        %1304 = vmatprep.subr.mxu0 0.0
        %1305 = vmatpush1.msra.mxu0 %v719
        %1306 = vmatprep.subr.mxu0 0.0
        %1307 = vmatpush1.msra.mxu0 %v720
        %1308 = vmatprep.subr.mxu0 0.0
        %1309 = vmatpush1.msra.mxu0 %v721
        %1310 = vmatprep.subr.mxu0 0.0
        %1311 = vmatpush1.msra.mxu0 %v886
        %1312 = vmatprep.subr.mxu0 0.0
        %1313 = vmatpush1.msra.mxu0 0.0
        %1314 = vmatprep.subr.mxu0 0.0
        %1315 = vmatpush1.msra.mxu0 0.0
        %1316 = vmatprep.subr.mxu0 0.0
        %1317 = vmatpush1.msra.mxu0 0.0
        %1318 = vmatprep.subr.mxu0 0.0
        %1319 = vmatpush1.msra.mxu0 0.0
        %1320 = vmatprep.subr.mxu0 0.0
        %1321 = vmatpush1.msra.mxu0 0.0
        %1322 = vmatprep.subr.mxu0 0.0
        %1323 = vmatpush1.msra.mxu0 0.0
        %1324 = vmatprep.subr.mxu0 0.0
        %1325 = vmatpush1.msra.mxu0 0.0
        %1326 = vmatprep.subr.mxu0 0.0
        %1327 = vmatpush1.msra.mxu0 0.0
        %1328 = vmatprep.subr.mxu0 0.0
        %1329 = vmatpush1.msra.mxu0 0.0
        %1330 = vmatprep.subr.mxu0 0.0
        %1331 = vmatpush1.msra.mxu0 0.0
        %1332 = vmatprep.subr.mxu0 0.0
        %1333 = vmatpush1.msra.mxu0 0.0
        %1334 = vmatprep.subr.mxu0 0.0
        %1335 = vmatpush1.msra.mxu0 0.0
        %1336 = vmatprep.subr.mxu0 0.0
        %1337 = vmatpush1.msra.mxu0 0.0
        %1338 = vmatprep.mubr.f32.mxu0 %v1179
        %1339 = vmatmul.mubr.f32.gmra.mrb[0].mxu0 %v1114
        %v1340 = vpop.f32.mrb[0].mxu0
        %v1341 = vadd.f32 0.0, %v1340
        %v1342 = vpop.f32.mrb[0].mxu0
        %1343 = vmatprep.mubr.f32.mxu0 %v1182
        %1344 = vmatmul.mubr.f32.gmra.mrb[0].mxu0 %v1116
        %v1345 = vpop.f32.mrb[0].mxu0
        %v1346 = vadd.f32 0.0, %v1345
        %v1347 = vpop.f32.mrb[0].mxu0
        %1348 = vmatprep.mubr.f32.mxu0 %v1185
        %1349 = vmatmul.mubr.f32.gmra.mrb[0].mxu0 %v1118
        %v1350 = vpop.f32.mrb[0].mxu0
        %v1351 = vadd.f32 0.0, %v1350
        %v1352 = vpop.f32.mrb[0].mxu0
        %1353 = vmatprep.mubr.f32.mxu0 %v1188
        %1354 = vmatmul.mubr.f32.gmra.mrb[0].mxu0 %v1120
        %v1355 = vpop.f32.mrb[0].mxu0
        %v1356 = vadd.f32 0.0, %v1355
        %v1357 = vpop.f32.mrb[0].mxu0
        %1358 = vmatprep.mubr.f32.mxu0 %v1191
        %1359 = vmatmul.mubr.f32.gmra.mrb[0].mxu0 %v1122
        %v1360 = vpop.f32.mrb[0].mxu0
        %v1361 = vadd.f32 0.0, %v1360
        %v1362 = vpop.f32.mrb[0].mxu0
        %1363 = vmatprep.mubr.f32.mxu0 %v1194
        %1364 = vmatmul.mubr.f32.gmra.mrb[0].mxu0 %v1124
        %v1365 = vpop.f32.mrb[0].mxu0
        %v1366 = vadd.f32 0.0, %v1365
        %v1367 = vpop.f32.mrb[0].mxu0
        %1368 = vmatprep.mubr.f32.mxu0 %v1197
        %1369 = vmatmul.mubr.f32.gmra.mrb[0].mxu0 %v1126
        %v1370 = vpop.f32.mrb[0].mxu0
        %v1371 = vadd.f32 0.0, %v1370
        %v1372 = vpop.f32.mrb[0].mxu0
        %1373 = vmatprep.mubr.f32.mxu0 %v1200
        %1374 = vmatmul.mubr.f32.gmra.mrb[0].mxu0 %v1128
        %v1375 = vpop.f32.mrb[0].mxu0
        %v1376 = vadd.f32 0.0, %v1375
        %v1377 = vpop.f32.mrb[0].mxu0
        %1378 = vmatprep.mubr.f32.mxu0 %v1203
        %1379 = vmatmul.mubr.f32.gmra.mrb[0].mxu0 %v1130
        %v1380 = vpop.f32.mrb[0].mxu0
        %v1381 = vadd.f32 0.0, %v1380
        %v1382 = vpop.f32.mrb[0].mxu0
        %1383 = vmatprep.mubr.f32.mxu0 %v1206
        %1384 = vmatmul.mubr.f32.gmra.mrb[0].mxu0 %v1132
        %v1385 = vpop.f32.mrb[0].mxu0
        %v1386 = vadd.f32 0.0, %v1385
        %v1387 = vpop.f32.mrb[0].mxu0
        %1388 = vmatprep.mubr.f32.mxu0 %v1209
        %1389 = vmatmul.mubr.f32.gmra.mrb[0].mxu0 %v1134
        %v1390 = vpop.f32.mrb[0].mxu0
        %v1391 = vadd.f32 0.0, %v1390
        %v1392 = vpop.f32.mrb[0].mxu0
        %1393 = vmatprep.mubr.f32.mxu0 %v1212
        %1394 = vmatmul.mubr.f32.gmra.mrb[0].mxu0 %v1136
        %v1395 = vpop.f32.mrb[0].mxu0
        %v1396 = vadd.f32 0.0, %v1395
        %v1397 = vpop.f32.mrb[0].mxu0
        %1398 = vmatprep.mubr.f32.mxu0 %v1215
        %1399 = vmatmul.mubr.f32.gmra.mrb[0].mxu0 %v1138
        %v1400 = vpop.f32.mrb[0].mxu0
        %v1401 = vadd.f32 0.0, %v1400
        %v1402 = vpop.f32.mrb[0].mxu0
        %1403 = vmatprep.mubr.f32.mxu0 %v1218
        %1404 = vmatmul.mubr.f32.gmra.mrb[0].mxu0 %v1140
        %v1405 = vpop.f32.mrb[0].mxu0
        %v1406 = vadd.f32 0.0, %v1405
        %v1407 = vpop.f32.mrb[0].mxu0
        %1408 = vmatprep.mubr.f32.mxu0 %v1221
        %1409 = vmatmul.mubr.f32.gmra.mrb[0].mxu0 %v1142
        %v1410 = vpop.f32.mrb[0].mxu0
        %v1411 = vadd.f32 0.0, %v1410
        %v1412 = vpop.f32.mrb[0].mxu0
        %1413 = vmatprep.mubr.f32.mxu0 %v1224
        %1414 = vmatmul.mubr.f32.gmra.mrb[0].mxu0 %v1144
        %v1415 = vpop.f32.mrb[0].mxu0
        %v1416 = vadd.f32 0.0, %v1415
        %v1417 = vpop.f32.mrb[0].mxu0
        %1418 = vmatprep.mubr.f32.mxu0 %v1227
        %1419 = vmatmul.mubr.f32.gmra.mrb[0].mxu0 %v1146
        %v1420 = vpop.f32.mrb[0].mxu0
        %v1421 = vadd.f32 0.0, %v1420
        %v1422 = vpop.f32.mrb[0].mxu0
        %1423 = vmatprep.mubr.f32.mxu0 %v1230
        %1424 = vmatmul.mubr.f32.gmra.mrb[0].mxu0 %v1148
        %v1425 = vpop.f32.mrb[0].mxu0
        %v1426 = vadd.f32 0.0, %v1425
        %v1427 = vpop.f32.mrb[0].mxu0
        %1428 = vmatprep.mubr.f32.mxu0 %v1233
        %1429 = vmatmul.mubr.f32.gmra.mrb[0].mxu0 %v1150
        %v1430 = vpop.f32.mrb[0].mxu0
        %v1431 = vadd.f32 0.0, %v1430
        %v1432 = vpop.f32.mrb[0].mxu0
        %1433 = vmatprep.mubr.f32.mxu0 %v1236
        %1434 = vmatmul.mubr.f32.gmra.mrb[0].mxu0 %v1152
        %v1435 = vpop.f32.mrb[0].mxu0
        %v1436 = vadd.f32 0.0, %v1435
        %v1437 = vpop.f32.mrb[0].mxu0
        %1438 = vmatprep.mubr.f32.mxu0 %v1239
        %1439 = vmatmul.mubr.f32.gmra.mrb[0].mxu0 %v1154
        %v1440 = vpop.f32.mrb[0].mxu0
        %v1441 = vadd.f32 0.0, %v1440
        %v1442 = vpop.f32.mrb[0].mxu0
        %1443 = vmatprep.mubr.f32.mxu0 %v1242
        %1444 = vmatmul.mubr.f32.gmra.mrb[0].mxu0 %v1156
        %v1445 = vpop.f32.mrb[0].mxu0
        %v1446 = vadd.f32 0.0, %v1445
        %v1447 = vpop.f32.mrb[0].mxu0
        %1448 = vmatprep.mubr.f32.mxu0 %v1245
        %1449 = vmatmul.mubr.f32.gmra.mrb[0].mxu0 %v1158
        %v1450 = vpop.f32.mrb[0].mxu0
        %v1451 = vadd.f32 0.0, %v1450
        %v1452 = vpop.f32.mrb[0].mxu0
        %1453 = vmatprep.mubr.f32.mxu0 %v1248
        %1454 = vmatmul.mubr.f32.gmra.mrb[0].mxu0 %v1160
        %v1455 = vpop.f32.mrb[0].mxu0
        %v1456 = vadd.f32 0.0, %v1455
        %v1457 = vpop.f32.mrb[0].mxu0
        %1458 = vmatprep.mubr.f32.mxu0 %v1251
        %1459 = vmatmul.mubr.f32.gmra.mrb[0].mxu0 %v1162
        %v1460 = vpop.f32.mrb[0].mxu0
        %v1461 = vadd.f32 0.0, %v1460
        %v1462 = vpop.f32.mrb[0].mxu0
        %1463 = vmatprep.mubr.f32.mxu0 %v1254
        %1464 = vmatmul.mubr.f32.gmra.mrb[0].mxu0 %v1164
        %v1465 = vpop.f32.mrb[0].mxu0
        %v1466 = vadd.f32 0.0, %v1465
        %v1467 = vpop.f32.mrb[0].mxu0
        %1468 = vmatprep.mubr.f32.mxu0 %v1257
        %1469 = vmatmul.mubr.f32.gmra.mrb[0].mxu0 %v1166
        %v1470 = vpop.f32.mrb[0].mxu0
        %v1471 = vadd.f32 0.0, %v1470
        %v1472 = vpop.f32.mrb[0].mxu0
        %1473 = vmatprep.mubr.f32.mxu0 %v1260
        %1474 = vmatmul.mubr.f32.gmra.mrb[0].mxu0 %v1168
        %v1475 = vpop.f32.mrb[0].mxu0
        %v1476 = vadd.f32 0.0, %v1475
        %v1477 = vpop.f32.mrb[0].mxu0
        %1478 = vmatprep.mubr.f32.mxu0 %v1263
        %1479 = vmatmul.mubr.f32.gmra.mrb[0].mxu0 %v1170
        %v1480 = vpop.f32.mrb[0].mxu0
        %v1481 = vadd.f32 0.0, %v1480
        %v1482 = vpop.f32.mrb[0].mxu0
        %1483 = vmatprep.mubr.f32.mxu0 %v1266
        %1484 = vmatmul.mubr.f32.gmra.mrb[0].mxu0 %v1172
        %v1485 = vpop.f32.mrb[0].mxu0
        %v1486 = vadd.f32 0.0, %v1485
        %v1487 = vpop.f32.mrb[0].mxu0
        %1488 = vmatprep.mubr.f32.mxu0 %v1269
        %1489 = vmatmul.mubr.f32.gmra.mrb[0].mxu0 %v1174
        %v1490 = vpop.f32.mrb[0].mxu0
        %v1491 = vadd.f32 0.0, %v1490
        %v1492 = vpop.f32.mrb[0].mxu0
        %1493 = vmatprep.mubr.f32.mxu0 %v1272
        %1494 = vmatmul.mubr.f32.gmra.mrb[0].mxu0 %v1176
        %v1495 = vpop.f32.mrb[0].mxu0
        %v1496 = vadd.f32 0.0, %v1495
        %v1497 = vpop.f32.mrb[0].mxu0
        %1498 = vdwg.mxu0
        %v1499 = vmax.f32 %v955, %v1341
        %v1500 = vmax.f32 %v960, %v1346
        %v1501 = vmax.f32 %v965, %v1351
        %v1502 = vmax.f32 %v970, %v1356
        %v1503 = vmax.f32 %v975, %v1361
        %v1504 = vmax.f32 %v980, %v1366
        %v1505 = vmax.f32 %v985, %v1371
        %v1506 = vmax.f32 %v990, %v1376
        %v1507 = vmax.f32 %v995, %v1381
        %v1508 = vmax.f32 %v1000, %v1386
        %v1509 = vmax.f32 %v1005, %v1391
        %v1510 = vmax.f32 %v1010, %v1396
        %v1511 = vmax.f32 %v1015, %v1401
        %v1512 = vmax.f32 %v1020, %v1406
        %v1513 = vmax.f32 %v1025, %v1411
        %v1514 = vmax.f32 %v1030, %v1416
        %v1515 = vmax.f32 %v1035, %v1421
        %v1516 = vmax.f32 %v1040, %v1426
        %v1517 = vmax.f32 %v1045, %v1431
        %v1518 = vmax.f32 %v1050, %v1436
        %v1519 = vmax.f32 %v1055, %v1441
        %v1520 = vmax.f32 %v1060, %v1446
        %v1521 = vmax.f32 %v1065, %v1451
        %v1522 = vmax.f32 %v1070, %v1456
        %v1523 = vmax.f32 %v1075, %v1461
        %v1524 = vmax.f32 %v1080, %v1466
        %v1525 = vmax.f32 %v1085, %v1471
        %v1526 = vmax.f32 %v1090, %v1476
        %v1527 = vmax.f32 %v1095, %v1481
        %v1528 = vmax.f32 %v1100, %v1486
        %v1529 = vmax.f32 %v1105, %v1491
        %v1530 = vmax.f32 %v1110, %v1496
        %s1531 = scalar_lea.vmem %s676, 1024 [#allocation2]
        %v1532 = vld [vmem:[%s1531] sm:$0xff]
        %v1533 = vld [vmem:[%s1531 + $0x8] sm:$0xff]
        %v1534 = vld [vmem:[%s1531 + $0x10] sm:$0xff]
        %v1535 = vld [vmem:[%s1531 + $0x18] sm:$0xff]
        %v1536 = vld [vmem:[%s1531 + $0x20] sm:$0xff]
        %v1537 = vld [vmem:[%s1531 + $0x28] sm:$0xff]
        %v1538 = vld [vmem:[%s1531 + $0x30] sm:$0xff]
        %v1539 = vld [vmem:[%s1531 + $0x38] sm:$0xff]
        %v1540 = vld [vmem:[%s1531 + $0x40] sm:$0xff]
        %v1541 = vld [vmem:[%s1531 + $0x48] sm:$0xff]
        %v1542 = vld [vmem:[%s1531 + $0x50] sm:$0xff]
        %v1543 = vld [vmem:[%s1531 + $0x58] sm:$0xff]
        %v1544 = vld [vmem:[%s1531 + $0x60] sm:$0xff]
        %v1545 = vld [vmem:[%s1531 + $0x68] sm:$0xff]
        %v1546 = vld [vmem:[%s1531 + $0x70] sm:$0xff]
        %v1547 = vld [vmem:[%s1531 + $0x78] sm:$0xff]
        %v1548 = vld [vmem:[%s1531 + $0x80] sm:$0xff]
        %v1549 = vld [vmem:[%s1531 + $0x88] sm:$0xff]
        %v1550 = vld [vmem:[%s1531 + $0x90] sm:$0xff]
        %v1551 = vld [vmem:[%s1531 + $0x98] sm:$0xff]
        %v1552 = vld [vmem:[%s1531 + $0xa0] sm:$0xff]
        %v1553 = vld [vmem:[%s1531 + $0xa8] sm:$0xff]
        %v1554 = vld [vmem:[%s1531 + $0xb0] sm:$0xff]
        %v1555 = vld [vmem:[%s1531 + $0xb8] sm:$0xff]
        %v1556 = vld [vmem:[%s1531 + $0xc0] sm:$0xff]
        %v1557 = vld [vmem:[%s1531 + $0xc8] sm:$0xff]
        %v1558 = vld [vmem:[%s1531 + $0xd0] sm:$0xff]
        %v1559 = vld [vmem:[%s1531 + $0xd8] sm:$0xff]
        %v1560 = vld [vmem:[%s1531 + $0xe0] sm:$0xff]
        %v1561 = vld [vmem:[%s1531 + $0xe8] sm:$0xff]
        %v1562 = vld [vmem:[%s1531 + $0xf0] sm:$0xff]
        %v1563 = vld [vmem:[%s1531 + $0xf8] sm:$0xff]
        %v1564 = vld [vmem:[%s1531 + $0x100] sm:$0xff]
        %v1565 = vld [vmem:[%s1531 + $0x108] sm:$0xff]
        %v1566 = vld [vmem:[%s1531 + $0x110] sm:$0xff]
        %v1567 = vld [vmem:[%s1531 + $0x118] sm:$0xff]
        %v1568 = vld [vmem:[%s1531 + $0x120] sm:$0xff]
        %v1569 = vld [vmem:[%s1531 + $0x128] sm:$0xff]
        %v1570 = vld [vmem:[%s1531 + $0x130] sm:$0xff]
        %v1571 = vld [vmem:[%s1531 + $0x138] sm:$0xff]
        %v1572 = vld [vmem:[%s1531 + $0x140] sm:$0xff]
        %v1573 = vld [vmem:[%s1531 + $0x148] sm:$0xff]
        %v1574 = vld [vmem:[%s1531 + $0x150] sm:$0xff]
        %v1575 = vld [vmem:[%s1531 + $0x158] sm:$0xff]
        %v1576 = vld [vmem:[%s1531 + $0x160] sm:$0xff]
        %v1577 = vld [vmem:[%s1531 + $0x168] sm:$0xff]
        %v1578 = vld [vmem:[%s1531 + $0x170] sm:$0xff]
        %v1579 = vld [vmem:[%s1531 + $0x178] sm:$0xff]
        %v1580 = vld [vmem:[%s1531 + $0x180] sm:$0xff]
        %v1581 = vld [vmem:[%s1531 + $0x188] sm:$0xff]
        %v1582 = vld [vmem:[%s1531 + $0x190] sm:$0xff]
        %v1583 = vld [vmem:[%s1531 + $0x198] sm:$0xff]
        %v1584 = vld [vmem:[%s1531 + $0x1a0] sm:$0xff]
        %v1585 = vld [vmem:[%s1531 + $0x1a8] sm:$0xff]
        %v1586 = vld [vmem:[%s1531 + $0x1b0] sm:$0xff]
        %v1587 = vld [vmem:[%s1531 + $0x1b8] sm:$0xff]
        %v1588 = vld [vmem:[%s1531 + $0x1c0] sm:$0xff]
        %v1589 = vld [vmem:[%s1531 + $0x1c8] sm:$0xff]
        %v1590 = vld [vmem:[%s1531 + $0x1d0] sm:$0xff]
        %v1591 = vld [vmem:[%s1531 + $0x1d8] sm:$0xff]
        %v1592 = vld [vmem:[%s1531 + $0x1e0] sm:$0xff]
        %v1593 = vld [vmem:[%s1531 + $0x1e8] sm:$0xff]
        %v1594 = vld [vmem:[%s1531 + $0x1f0] sm:$0xff]
        %v1595 = vld [vmem:[%s1531 + $0x1f8] sm:$0xff]
        %v1597 = vsel %vm787, %v1533, 0
        %v1600 = vsel %vm787, %v1535, 0
        %v1603 = vsel %vm787, %v1537, 0
        %v1606 = vsel %vm787, %v1539, 0
        %v1609 = vsel %vm787, %v1541, 0
        %v1612 = vsel %vm787, %v1543, 0
        %v1615 = vsel %vm787, %v1545, 0
        %v1618 = vsel %vm787, %v1547, 0
        %v1621 = vsel %vm787, %v1549, 0
        %v1624 = vsel %vm787, %v1551, 0
        %v1627 = vsel %vm787, %v1553, 0
        %v1630 = vsel %vm787, %v1555, 0
        %v1633 = vsel %vm787, %v1557, 0
        %v1636 = vsel %vm787, %v1559, 0
        %v1639 = vsel %vm787, %v1561, 0
        %v1642 = vsel %vm787, %v1563, 0
        %v1645 = vsel %vm787, %v1565, 0
        %v1648 = vsel %vm787, %v1567, 0
        %v1651 = vsel %vm787, %v1569, 0
        %v1654 = vsel %vm787, %v1571, 0
        %v1657 = vsel %vm787, %v1573, 0
        %v1660 = vsel %vm787, %v1575, 0
        %v1663 = vsel %vm787, %v1577, 0
        %v1666 = vsel %vm787, %v1579, 0
        %v1669 = vsel %vm787, %v1581, 0
        %v1672 = vsel %vm787, %v1583, 0
        %v1675 = vsel %vm787, %v1585, 0
        %v1678 = vsel %vm787, %v1587, 0
        %v1681 = vsel %vm787, %v1589, 0
        %v1684 = vsel %vm787, %v1591, 0
        %v1687 = vsel %vm787, %v1593, 0
        %v1690 = vsel %vm787, %v1595, 0
        %1692 = vmatprep.subr.mxu0 0.0
        %1693 = vmatpush1.msra.mxu0 %v704
        %1694 = vmatprep.subr.mxu0 0.0
        %1695 = vmatpush1.msra.mxu0 %v705
        %1696 = vmatprep.subr.mxu0 0.0
        %1697 = vmatpush1.msra.mxu0 %v706
        %1698 = vmatprep.subr.mxu0 0.0
        %1699 = vmatpush1.msra.mxu0 %v707
        %1700 = vmatprep.subr.mxu0 0.0
        %1701 = vmatpush1.msra.mxu0 %v708
        %1702 = vmatprep.subr.mxu0 0.0
        %1703 = vmatpush1.msra.mxu0 %v709
        %1704 = vmatprep.subr.mxu0 0.0
        %1705 = vmatpush1.msra.mxu0 %v710
        %1706 = vmatprep.subr.mxu0 0.0
        %1707 = vmatpush1.msra.mxu0 %v711
        %1708 = vmatprep.subr.mxu0 0.0
        %1709 = vmatpush1.msra.mxu0 %v712
        %1710 = vmatprep.subr.mxu0 0.0
        %1711 = vmatpush1.msra.mxu0 %v713
        %1712 = vmatprep.subr.mxu0 0.0
        %1713 = vmatpush1.msra.mxu0 %v714
        %1714 = vmatprep.subr.mxu0 0.0
        %1715 = vmatpush1.msra.mxu0 %v715
        %1716 = vmatprep.subr.mxu0 0.0
        %1717 = vmatpush1.msra.mxu0 %v716
        %1718 = vmatprep.subr.mxu0 0.0
        %1719 = vmatpush1.msra.mxu0 %v717
        %1720 = vmatprep.subr.mxu0 0.0
        %1721 = vmatpush1.msra.mxu0 %v718
        %1722 = vmatprep.subr.mxu0 0.0
        %1723 = vmatpush1.msra.mxu0 %v719
        %1724 = vmatprep.subr.mxu0 0.0
        %1725 = vmatpush1.msra.mxu0 %v720
        %1726 = vmatprep.subr.mxu0 0.0
        %1727 = vmatpush1.msra.mxu0 %v721
        %1728 = vmatprep.subr.mxu0 0.0
        %1729 = vmatpush1.msra.mxu0 %v886
        %1730 = vmatprep.subr.mxu0 0.0
        %1731 = vmatpush1.msra.mxu0 0.0
        %1732 = vmatprep.subr.mxu0 0.0
        %1733 = vmatpush1.msra.mxu0 0.0
        %1734 = vmatprep.subr.mxu0 0.0
        %1735 = vmatpush1.msra.mxu0 0.0
        %1736 = vmatprep.subr.mxu0 0.0
        %1737 = vmatpush1.msra.mxu0 0.0
        %1738 = vmatprep.subr.mxu0 0.0
        %1739 = vmatpush1.msra.mxu0 0.0
        %1740 = vmatprep.subr.mxu0 0.0
        %1741 = vmatpush1.msra.mxu0 0.0
        %1742 = vmatprep.subr.mxu0 0.0
        %1743 = vmatpush1.msra.mxu0 0.0
        %1744 = vmatprep.subr.mxu0 0.0
        %1745 = vmatpush1.msra.mxu0 0.0
        %1746 = vmatprep.subr.mxu0 0.0
        %1747 = vmatpush1.msra.mxu0 0.0
        %1748 = vmatprep.subr.mxu0 0.0
        %1749 = vmatpush1.msra.mxu0 0.0
        %1750 = vmatprep.subr.mxu0 0.0
        %1751 = vmatpush1.msra.mxu0 0.0
        %1752 = vmatprep.subr.mxu0 0.0
        %1753 = vmatpush1.msra.mxu0 0.0
        %1754 = vmatprep.subr.mxu0 0.0
        %1755 = vmatpush1.msra.mxu0 0.0
        %1756 = vmatprep.mubr.f32.mxu0 %v1597
        %1757 = vmatmul.mubr.f32.gmra.mrb[0].mxu0 %v1532
        %v1758 = vpop.f32.mrb[0].mxu0
        %v1759 = vadd.f32 0.0, %v1758
        %v1760 = vpop.f32.mrb[0].mxu0
        %1761 = vmatprep.mubr.f32.mxu0 %v1600
        %1762 = vmatmul.mubr.f32.gmra.mrb[0].mxu0 %v1534
        %v1763 = vpop.f32.mrb[0].mxu0
        %v1764 = vadd.f32 0.0, %v1763
        %v1765 = vpop.f32.mrb[0].mxu0
        %1766 = vmatprep.mubr.f32.mxu0 %v1603
        %1767 = vmatmul.mubr.f32.gmra.mrb[0].mxu0 %v1536
        %v1768 = vpop.f32.mrb[0].mxu0
        %v1769 = vadd.f32 0.0, %v1768
        %v1770 = vpop.f32.mrb[0].mxu0
        %1771 = vmatprep.mubr.f32.mxu0 %v1606
        %1772 = vmatmul.mubr.f32.gmra.mrb[0].mxu0 %v1538
        %v1773 = vpop.f32.mrb[0].mxu0
        %v1774 = vadd.f32 0.0, %v1773
        %v1775 = vpop.f32.mrb[0].mxu0
        %1776 = vmatprep.mubr.f32.mxu0 %v1609
        %1777 = vmatmul.mubr.f32.gmra.mrb[0].mxu0 %v1540
        %v1778 = vpop.f32.mrb[0].mxu0
        %v1779 = vadd.f32 0.0, %v1778
        %v1780 = vpop.f32.mrb[0].mxu0
        %1781 = vmatprep.mubr.f32.mxu0 %v1612
        %1782 = vmatmul.mubr.f32.gmra.mrb[0].mxu0 %v1542
        %v1783 = vpop.f32.mrb[0].mxu0
        %v1784 = vadd.f32 0.0, %v1783
        %v1785 = vpop.f32.mrb[0].mxu0
        %1786 = vmatprep.mubr.f32.mxu0 %v1615
        %1787 = vmatmul.mubr.f32.gmra.mrb[0].mxu0 %v1544
        %v1788 = vpop.f32.mrb[0].mxu0
        %v1789 = vadd.f32 0.0, %v1788
        %v1790 = vpop.f32.mrb[0].mxu0
        %1791 = vmatprep.mubr.f32.mxu0 %v1618
        %1792 = vmatmul.mubr.f32.gmra.mrb[0].mxu0 %v1546
        %v1793 = vpop.f32.mrb[0].mxu0
        %v1794 = vadd.f32 0.0, %v1793
        %v1795 = vpop.f32.mrb[0].mxu0
        %1796 = vmatprep.mubr.f32.mxu0 %v1621
        %1797 = vmatmul.mubr.f32.gmra.mrb[0].mxu0 %v1548
        %v1798 = vpop.f32.mrb[0].mxu0
        %v1799 = vadd.f32 0.0, %v1798
        %v1800 = vpop.f32.mrb[0].mxu0
        %1801 = vmatprep.mubr.f32.mxu0 %v1624
        %1802 = vmatmul.mubr.f32.gmra.mrb[0].mxu0 %v1550
        %v1803 = vpop.f32.mrb[0].mxu0
        %v1804 = vadd.f32 0.0, %v1803
        %v1805 = vpop.f32.mrb[0].mxu0
        %1806 = vmatprep.mubr.f32.mxu0 %v1627
        %1807 = vmatmul.mubr.f32.gmra.mrb[0].mxu0 %v1552
        %v1808 = vpop.f32.mrb[0].mxu0
        %v1809 = vadd.f32 0.0, %v1808
        %v1810 = vpop.f32.mrb[0].mxu0
        %1811 = vmatprep.mubr.f32.mxu0 %v1630
        %1812 = vmatmul.mubr.f32.gmra.mrb[0].mxu0 %v1554
        %v1813 = vpop.f32.mrb[0].mxu0
        %v1814 = vadd.f32 0.0, %v1813
        %v1815 = vpop.f32.mrb[0].mxu0
        %1816 = vmatprep.mubr.f32.mxu0 %v1633
        %1817 = vmatmul.mubr.f32.gmra.mrb[0].mxu0 %v1556
        %v1818 = vpop.f32.mrb[0].mxu0
        %v1819 = vadd.f32 0.0, %v1818
        %v1820 = vpop.f32.mrb[0].mxu0
        %1821 = vmatprep.mubr.f32.mxu0 %v1636
        %1822 = vmatmul.mubr.f32.gmra.mrb[0].mxu0 %v1558
        %v1823 = vpop.f32.mrb[0].mxu0
        %v1824 = vadd.f32 0.0, %v1823
        %v1825 = vpop.f32.mrb[0].mxu0
        %1826 = vmatprep.mubr.f32.mxu0 %v1639
        %1827 = vmatmul.mubr.f32.gmra.mrb[0].mxu0 %v1560
        %v1828 = vpop.f32.mrb[0].mxu0
        %v1829 = vadd.f32 0.0, %v1828
        %v1830 = vpop.f32.mrb[0].mxu0
        %1831 = vmatprep.mubr.f32.mxu0 %v1642
        %1832 = vmatmul.mubr.f32.gmra.mrb[0].mxu0 %v1562
        %v1833 = vpop.f32.mrb[0].mxu0
        %v1834 = vadd.f32 0.0, %v1833
        %v1835 = vpop.f32.mrb[0].mxu0
        %1836 = vmatprep.mubr.f32.mxu0 %v1645
        %1837 = vmatmul.mubr.f32.gmra.mrb[0].mxu0 %v1564
        %v1838 = vpop.f32.mrb[0].mxu0
        %v1839 = vadd.f32 0.0, %v1838
        %v1840 = vpop.f32.mrb[0].mxu0
        %1841 = vmatprep.mubr.f32.mxu0 %v1648
        %1842 = vmatmul.mubr.f32.gmra.mrb[0].mxu0 %v1566
        %v1843 = vpop.f32.mrb[0].mxu0
        %v1844 = vadd.f32 0.0, %v1843
        %v1845 = vpop.f32.mrb[0].mxu0
        %1846 = vmatprep.mubr.f32.mxu0 %v1651
        %1847 = vmatmul.mubr.f32.gmra.mrb[0].mxu0 %v1568
        %v1848 = vpop.f32.mrb[0].mxu0
        %v1849 = vadd.f32 0.0, %v1848
        %v1850 = vpop.f32.mrb[0].mxu0
        %1851 = vmatprep.mubr.f32.mxu0 %v1654
        %1852 = vmatmul.mubr.f32.gmra.mrb[0].mxu0 %v1570
        %v1853 = vpop.f32.mrb[0].mxu0
        %v1854 = vadd.f32 0.0, %v1853
        %v1855 = vpop.f32.mrb[0].mxu0
        %1856 = vmatprep.mubr.f32.mxu0 %v1657
        %1857 = vmatmul.mubr.f32.gmra.mrb[0].mxu0 %v1572
        %v1858 = vpop.f32.mrb[0].mxu0
        %v1859 = vadd.f32 0.0, %v1858
        %v1860 = vpop.f32.mrb[0].mxu0
        %1861 = vmatprep.mubr.f32.mxu0 %v1660
        %1862 = vmatmul.mubr.f32.gmra.mrb[0].mxu0 %v1574
        %v1863 = vpop.f32.mrb[0].mxu0
        %v1864 = vadd.f32 0.0, %v1863
        %v1865 = vpop.f32.mrb[0].mxu0
        %1866 = vmatprep.mubr.f32.mxu0 %v1663
        %1867 = vmatmul.mubr.f32.gmra.mrb[0].mxu0 %v1576
        %v1868 = vpop.f32.mrb[0].mxu0
        %v1869 = vadd.f32 0.0, %v1868
        %v1870 = vpop.f32.mrb[0].mxu0
        %1871 = vmatprep.mubr.f32.mxu0 %v1666
        %1872 = vmatmul.mubr.f32.gmra.mrb[0].mxu0 %v1578
        %v1873 = vpop.f32.mrb[0].mxu0
        %v1874 = vadd.f32 0.0, %v1873
        %v1875 = vpop.f32.mrb[0].mxu0
        %1876 = vmatprep.mubr.f32.mxu0 %v1669
        %1877 = vmatmul.mubr.f32.gmra.mrb[0].mxu0 %v1580
        %v1878 = vpop.f32.mrb[0].mxu0
        %v1879 = vadd.f32 0.0, %v1878
        %v1880 = vpop.f32.mrb[0].mxu0
        %1881 = vmatprep.mubr.f32.mxu0 %v1672
        %1882 = vmatmul.mubr.f32.gmra.mrb[0].mxu0 %v1582
        %v1883 = vpop.f32.mrb[0].mxu0
        %v1884 = vadd.f32 0.0, %v1883
        %v1885 = vpop.f32.mrb[0].mxu0
        %1886 = vmatprep.mubr.f32.mxu0 %v1675
        %1887 = vmatmul.mubr.f32.gmra.mrb[0].mxu0 %v1584
        %v1888 = vpop.f32.mrb[0].mxu0
        %v1889 = vadd.f32 0.0, %v1888
        %v1890 = vpop.f32.mrb[0].mxu0
        %1891 = vmatprep.mubr.f32.mxu0 %v1678
        %1892 = vmatmul.mubr.f32.gmra.mrb[0].mxu0 %v1586
        %v1893 = vpop.f32.mrb[0].mxu0
        %v1894 = vadd.f32 0.0, %v1893
        %v1895 = vpop.f32.mrb[0].mxu0
        %1896 = vmatprep.mubr.f32.mxu0 %v1681
        %1897 = vmatmul.mubr.f32.gmra.mrb[0].mxu0 %v1588
        %v1898 = vpop.f32.mrb[0].mxu0
        %v1899 = vadd.f32 0.0, %v1898
        %v1900 = vpop.f32.mrb[0].mxu0
        %1901 = vmatprep.mubr.f32.mxu0 %v1684
        %1902 = vmatmul.mubr.f32.gmra.mrb[0].mxu0 %v1590
        %v1903 = vpop.f32.mrb[0].mxu0
        %v1904 = vadd.f32 0.0, %v1903
        %v1905 = vpop.f32.mrb[0].mxu0
        %1906 = vmatprep.mubr.f32.mxu0 %v1687
        %1907 = vmatmul.mubr.f32.gmra.mrb[0].mxu0 %v1592
        %v1908 = vpop.f32.mrb[0].mxu0
        %v1909 = vadd.f32 0.0, %v1908
        %v1910 = vpop.f32.mrb[0].mxu0
        %1911 = vmatprep.mubr.f32.mxu0 %v1690
        %1912 = vmatmul.mubr.f32.gmra.mrb[0].mxu0 %v1594
        %v1913 = vpop.f32.mrb[0].mxu0
        %v1914 = vadd.f32 0.0, %v1913
        %v1915 = vpop.f32.mrb[0].mxu0
        %1916 = vdwg.mxu0
        %v1917 = vmax.f32 %v1499, %v1759
        %v1918 = vmax.f32 %v1500, %v1764
        %v1919 = vmax.f32 %v1501, %v1769
        %v1920 = vmax.f32 %v1502, %v1774
        %v1921 = vmax.f32 %v1503, %v1779
        %v1922 = vmax.f32 %v1504, %v1784
        %v1923 = vmax.f32 %v1505, %v1789
        %v1924 = vmax.f32 %v1506, %v1794
        %v1925 = vmax.f32 %v1507, %v1799
        %v1926 = vmax.f32 %v1508, %v1804
        %v1927 = vmax.f32 %v1509, %v1809
        %v1928 = vmax.f32 %v1510, %v1814
        %v1929 = vmax.f32 %v1511, %v1819
        %v1930 = vmax.f32 %v1512, %v1824
        %v1931 = vmax.f32 %v1513, %v1829
        %v1932 = vmax.f32 %v1514, %v1834
        %v1933 = vmax.f32 %v1515, %v1839
        %v1934 = vmax.f32 %v1516, %v1844
        %v1935 = vmax.f32 %v1517, %v1849
        %v1936 = vmax.f32 %v1518, %v1854
        %v1937 = vmax.f32 %v1519, %v1859
        %v1938 = vmax.f32 %v1520, %v1864
        %v1939 = vmax.f32 %v1521, %v1869
        %v1940 = vmax.f32 %v1522, %v1874
        %v1941 = vmax.f32 %v1523, %v1879
        %v1942 = vmax.f32 %v1524, %v1884
        %v1943 = vmax.f32 %v1525, %v1889
        %v1944 = vmax.f32 %v1526, %v1894
        %v1945 = vmax.f32 %v1527, %v1899
        %v1946 = vmax.f32 %v1528, %v1904
        %v1947 = vmax.f32 %v1529, %v1909
        %v1948 = vmax.f32 %v1530, %v1914
        %s1949 = scalar_lea.vmem %s676, 1536 [#allocation2]
        %v1950 = vld [vmem:[%s1949] sm:$0xff]
        %v1951 = vld [vmem:[%s1949 + $0x8] sm:$0xff]
        %v1952 = vld [vmem:[%s1949 + $0x10] sm:$0xff]
        %v1953 = vld [vmem:[%s1949 + $0x18] sm:$0xff]
        %v1954 = vld [vmem:[%s1949 + $0x20] sm:$0xff]
        %v1955 = vld [vmem:[%s1949 + $0x28] sm:$0xff]
        %v1956 = vld [vmem:[%s1949 + $0x30] sm:$0xff]
        %v1957 = vld [vmem:[%s1949 + $0x38] sm:$0xff]
        %v1958 = vld [vmem:[%s1949 + $0x40] sm:$0xff]
        %v1959 = vld [vmem:[%s1949 + $0x48] sm:$0xff]
        %v1960 = vld [vmem:[%s1949 + $0x50] sm:$0xff]
        %v1961 = vld [vmem:[%s1949 + $0x58] sm:$0xff]
        %v1962 = vld [vmem:[%s1949 + $0x60] sm:$0xff]
        %v1963 = vld [vmem:[%s1949 + $0x68] sm:$0xff]
        %v1964 = vld [vmem:[%s1949 + $0x70] sm:$0xff]
        %v1965 = vld [vmem:[%s1949 + $0x78] sm:$0xff]
        %v1966 = vld [vmem:[%s1949 + $0x80] sm:$0xff]
        %v1967 = vld [vmem:[%s1949 + $0x88] sm:$0xff]
        %v1968 = vld [vmem:[%s1949 + $0x90] sm:$0xff]
        %v1969 = vld [vmem:[%s1949 + $0x98] sm:$0xff]
        %v1970 = vld [vmem:[%s1949 + $0xa0] sm:$0xff]
        %v1971 = vld [vmem:[%s1949 + $0xa8] sm:$0xff]
        %v1972 = vld [vmem:[%s1949 + $0xb0] sm:$0xff]
        %v1973 = vld [vmem:[%s1949 + $0xb8] sm:$0xff]
        %v1974 = vld [vmem:[%s1949 + $0xc0] sm:$0xff]
        %v1975 = vld [vmem:[%s1949 + $0xc8] sm:$0xff]
        %v1976 = vld [vmem:[%s1949 + $0xd0] sm:$0xff]
        %v1977 = vld [vmem:[%s1949 + $0xd8] sm:$0xff]
        %v1978 = vld [vmem:[%s1949 + $0xe0] sm:$0xff]
        %v1979 = vld [vmem:[%s1949 + $0xe8] sm:$0xff]
        %v1980 = vld [vmem:[%s1949 + $0xf0] sm:$0xff]
        %v1981 = vld [vmem:[%s1949 + $0xf8] sm:$0xff]
        %v1982 = vld [vmem:[%s1949 + $0x100] sm:$0xff]
        %v1983 = vld [vmem:[%s1949 + $0x108] sm:$0xff]
        %v1984 = vld [vmem:[%s1949 + $0x110] sm:$0xff]
        %v1985 = vld [vmem:[%s1949 + $0x118] sm:$0xff]
        %v1986 = vld [vmem:[%s1949 + $0x120] sm:$0xff]
        %v1987 = vld [vmem:[%s1949 + $0x128] sm:$0xff]
        %v1988 = vld [vmem:[%s1949 + $0x130] sm:$0xff]
        %v1989 = vld [vmem:[%s1949 + $0x138] sm:$0xff]
        %v1990 = vld [vmem:[%s1949 + $0x140] sm:$0xff]
        %v1991 = vld [vmem:[%s1949 + $0x148] sm:$0xff]
        %v1992 = vld [vmem:[%s1949 + $0x150] sm:$0xff]
        %v1993 = vld [vmem:[%s1949 + $0x158] sm:$0xff]
        %v1994 = vld [vmem:[%s1949 + $0x160] sm:$0xff]
        %v1995 = vld [vmem:[%s1949 + $0x168] sm:$0xff]
        %v1996 = vld [vmem:[%s1949 + $0x170] sm:$0xff]
        %v1997 = vld [vmem:[%s1949 + $0x178] sm:$0xff]
        %v1998 = vld [vmem:[%s1949 + $0x180] sm:$0xff]
        %v1999 = vld [vmem:[%s1949 + $0x188] sm:$0xff]
        %v2000 = vld [vmem:[%s1949 + $0x190] sm:$0xff]
        %v2001 = vld [vmem:[%s1949 + $0x198] sm:$0xff]
        %v2002 = vld [vmem:[%s1949 + $0x1a0] sm:$0xff]
        %v2003 = vld [vmem:[%s1949 + $0x1a8] sm:$0xff]
        %v2004 = vld [vmem:[%s1949 + $0x1b0] sm:$0xff]
        %v2005 = vld [vmem:[%s1949 + $0x1b8] sm:$0xff]
        %v2006 = vld [vmem:[%s1949 + $0x1c0] sm:$0xff]
        %v2007 = vld [vmem:[%s1949 + $0x1c8] sm:$0xff]
        %v2008 = vld [vmem:[%s1949 + $0x1d0] sm:$0xff]
        %v2009 = vld [vmem:[%s1949 + $0x1d8] sm:$0xff]
        %v2010 = vld [vmem:[%s1949 + $0x1e0] sm:$0xff]
        %v2011 = vld [vmem:[%s1949 + $0x1e8] sm:$0xff]
        %v2012 = vld [vmem:[%s1949 + $0x1f0] sm:$0xff]
        %v2013 = vld [vmem:[%s1949 + $0x1f8] sm:$0xff]
        %v2015 = vsel %vm787, %v1951, 0
        %v2018 = vsel %vm787, %v1953, 0
        %v2021 = vsel %vm787, %v1955, 0
        %v2024 = vsel %vm787, %v1957, 0
        %v2027 = vsel %vm787, %v1959, 0
        %v2030 = vsel %vm787, %v1961, 0
        %v2033 = vsel %vm787, %v1963, 0
        %v2036 = vsel %vm787, %v1965, 0
        %v2039 = vsel %vm787, %v1967, 0
        %v2042 = vsel %vm787, %v1969, 0
        %v2045 = vsel %vm787, %v1971, 0
        %v2048 = vsel %vm787, %v1973, 0
        %v2051 = vsel %vm787, %v1975, 0
        %v2054 = vsel %vm787, %v1977, 0
        %v2057 = vsel %vm787, %v1979, 0
        %v2060 = vsel %vm787, %v1981, 0
        %v2063 = vsel %vm787, %v1983, 0
        %v2066 = vsel %vm787, %v1985, 0
        %v2069 = vsel %vm787, %v1987, 0
        %v2072 = vsel %vm787, %v1989, 0
        %v2075 = vsel %vm787, %v1991, 0
        %v2078 = vsel %vm787, %v1993, 0
        %v2081 = vsel %vm787, %v1995, 0
        %v2084 = vsel %vm787, %v1997, 0
        %v2087 = vsel %vm787, %v1999, 0
        %v2090 = vsel %vm787, %v2001, 0
        %v2093 = vsel %vm787, %v2003, 0
        %v2096 = vsel %vm787, %v2005, 0
        %v2099 = vsel %vm787, %v2007, 0
        %v2102 = vsel %vm787, %v2009, 0
        %v2105 = vsel %vm787, %v2011, 0
        %v2108 = vsel %vm787, %v2013, 0
        %2110 = vmatprep.subr.mxu0 0.0
        %2111 = vmatpush1.msra.mxu0 %v704
        %2112 = vmatprep.subr.mxu0 0.0
        %2113 = vmatpush1.msra.mxu0 %v705
        %2114 = vmatprep.subr.mxu0 0.0
        %2115 = vmatpush1.msra.mxu0 %v706
        %2116 = vmatprep.subr.mxu0 0.0
        %2117 = vmatpush1.msra.mxu0 %v707
        %2118 = vmatprep.subr.mxu0 0.0
        %2119 = vmatpush1.msra.mxu0 %v708
        %2120 = vmatprep.subr.mxu0 0.0
        %2121 = vmatpush1.msra.mxu0 %v709
        %2122 = vmatprep.subr.mxu0 0.0
        %2123 = vmatpush1.msra.mxu0 %v710
        %2124 = vmatprep.subr.mxu0 0.0
        %2125 = vmatpush1.msra.mxu0 %v711
        %2126 = vmatprep.subr.mxu0 0.0
        %2127 = vmatpush1.msra.mxu0 %v712
        %2128 = vmatprep.subr.mxu0 0.0
        %2129 = vmatpush1.msra.mxu0 %v713
        %2130 = vmatprep.subr.mxu0 0.0
        %2131 = vmatpush1.msra.mxu0 %v714
        %2132 = vmatprep.subr.mxu0 0.0
        %2133 = vmatpush1.msra.mxu0 %v715
        %2134 = vmatprep.subr.mxu0 0.0
        %2135 = vmatpush1.msra.mxu0 %v716
        %2136 = vmatprep.subr.mxu0 0.0
        %2137 = vmatpush1.msra.mxu0 %v717
        %2138 = vmatprep.subr.mxu0 0.0
        %2139 = vmatpush1.msra.mxu0 %v718
        %2140 = vmatprep.subr.mxu0 0.0
        %2141 = vmatpush1.msra.mxu0 %v719
        %2142 = vmatprep.subr.mxu0 0.0
        %2143 = vmatpush1.msra.mxu0 %v720
        %2144 = vmatprep.subr.mxu0 0.0
        %2145 = vmatpush1.msra.mxu0 %v721
        %2146 = vmatprep.subr.mxu0 0.0
        %2147 = vmatpush1.msra.mxu0 %v886
        %2148 = vmatprep.subr.mxu0 0.0
        %2149 = vmatpush1.msra.mxu0 0.0
        %2150 = vmatprep.subr.mxu0 0.0
        %2151 = vmatpush1.msra.mxu0 0.0
        %2152 = vmatprep.subr.mxu0 0.0
        %2153 = vmatpush1.msra.mxu0 0.0
        %2154 = vmatprep.subr.mxu0 0.0
        %2155 = vmatpush1.msra.mxu0 0.0
        %2156 = vmatprep.subr.mxu0 0.0
        %2157 = vmatpush1.msra.mxu0 0.0
        %2158 = vmatprep.subr.mxu0 0.0
        %2159 = vmatpush1.msra.mxu0 0.0
        %2160 = vmatprep.subr.mxu0 0.0
        %2161 = vmatpush1.msra.mxu0 0.0
        %2162 = vmatprep.subr.mxu0 0.0
        %2163 = vmatpush1.msra.mxu0 0.0
        %2164 = vmatprep.subr.mxu0 0.0
        %2165 = vmatpush1.msra.mxu0 0.0
        %2166 = vmatprep.subr.mxu0 0.0
        %2167 = vmatpush1.msra.mxu0 0.0
        %2168 = vmatprep.subr.mxu0 0.0
        %2169 = vmatpush1.msra.mxu0 0.0
        %2170 = vmatprep.subr.mxu0 0.0
        %2171 = vmatpush1.msra.mxu0 0.0
        %2172 = vmatprep.subr.mxu0 0.0
        %2173 = vmatpush1.msra.mxu0 0.0
        %2174 = vmatprep.mubr.f32.mxu0 %v2015
        %2175 = vmatmul.mubr.f32.gmra.mrb[0].mxu0 %v1950
        %v2176 = vpop.f32.mrb[0].mxu0
        %v2177 = vadd.f32 0.0, %v2176
        %v2178 = vpop.f32.mrb[0].mxu0
        %2179 = vmatprep.mubr.f32.mxu0 %v2018
        %2180 = vmatmul.mubr.f32.gmra.mrb[0].mxu0 %v1952
        %v2181 = vpop.f32.mrb[0].mxu0
        %v2182 = vadd.f32 0.0, %v2181
        %v2183 = vpop.f32.mrb[0].mxu0
        %2184 = vmatprep.mubr.f32.mxu0 %v2021
        %2185 = vmatmul.mubr.f32.gmra.mrb[0].mxu0 %v1954
        %v2186 = vpop.f32.mrb[0].mxu0
        %v2187 = vadd.f32 0.0, %v2186
        %v2188 = vpop.f32.mrb[0].mxu0
        %2189 = vmatprep.mubr.f32.mxu0 %v2024
        %2190 = vmatmul.mubr.f32.gmra.mrb[0].mxu0 %v1956
        %v2191 = vpop.f32.mrb[0].mxu0
        %v2192 = vadd.f32 0.0, %v2191
        %v2193 = vpop.f32.mrb[0].mxu0
        %2194 = vmatprep.mubr.f32.mxu0 %v2027
        %2195 = vmatmul.mubr.f32.gmra.mrb[0].mxu0 %v1958
        %v2196 = vpop.f32.mrb[0].mxu0
        %v2197 = vadd.f32 0.0, %v2196
        %v2198 = vpop.f32.mrb[0].mxu0
        %2199 = vmatprep.mubr.f32.mxu0 %v2030
        %2200 = vmatmul.mubr.f32.gmra.mrb[0].mxu0 %v1960
        %v2201 = vpop.f32.mrb[0].mxu0
        %v2202 = vadd.f32 0.0, %v2201
        %v2203 = vpop.f32.mrb[0].mxu0
        %2204 = vmatprep.mubr.f32.mxu0 %v2033
        %2205 = vmatmul.mubr.f32.gmra.mrb[0].mxu0 %v1962
        %v2206 = vpop.f32.mrb[0].mxu0
        %v2207 = vadd.f32 0.0, %v2206
        %v2208 = vpop.f32.mrb[0].mxu0
        %2209 = vmatprep.mubr.f32.mxu0 %v2036
        %2210 = vmatmul.mubr.f32.gmra.mrb[0].mxu0 %v1964
        %v2211 = vpop.f32.mrb[0].mxu0
        %v2212 = vadd.f32 0.0, %v2211
        %v2213 = vpop.f32.mrb[0].mxu0
        %2214 = vmatprep.mubr.f32.mxu0 %v2039
        %2215 = vmatmul.mubr.f32.gmra.mrb[0].mxu0 %v1966
        %v2216 = vpop.f32.mrb[0].mxu0
        %v2217 = vadd.f32 0.0, %v2216
        %v2218 = vpop.f32.mrb[0].mxu0
        %2219 = vmatprep.mubr.f32.mxu0 %v2042
        %2220 = vmatmul.mubr.f32.gmra.mrb[0].mxu0 %v1968
        %v2221 = vpop.f32.mrb[0].mxu0
        %v2222 = vadd.f32 0.0, %v2221
        %v2223 = vpop.f32.mrb[0].mxu0
        %2224 = vmatprep.mubr.f32.mxu0 %v2045
        %2225 = vmatmul.mubr.f32.gmra.mrb[0].mxu0 %v1970
        %v2226 = vpop.f32.mrb[0].mxu0
        %v2227 = vadd.f32 0.0, %v2226
        %v2228 = vpop.f32.mrb[0].mxu0
        %2229 = vmatprep.mubr.f32.mxu0 %v2048
        %2230 = vmatmul.mubr.f32.gmra.mrb[0].mxu0 %v1972
        %v2231 = vpop.f32.mrb[0].mxu0
        %v2232 = vadd.f32 0.0, %v2231
        %v2233 = vpop.f32.mrb[0].mxu0
        %2234 = vmatprep.mubr.f32.mxu0 %v2051
        %2235 = vmatmul.mubr.f32.gmra.mrb[0].mxu0 %v1974
        %v2236 = vpop.f32.mrb[0].mxu0
        %v2237 = vadd.f32 0.0, %v2236
        %v2238 = vpop.f32.mrb[0].mxu0
        %2239 = vmatprep.mubr.f32.mxu0 %v2054
        %2240 = vmatmul.mubr.f32.gmra.mrb[0].mxu0 %v1976
        %v2241 = vpop.f32.mrb[0].mxu0
        %v2242 = vadd.f32 0.0, %v2241
        %v2243 = vpop.f32.mrb[0].mxu0
        %2244 = vmatprep.mubr.f32.mxu0 %v2057
        %2245 = vmatmul.mubr.f32.gmra.mrb[0].mxu0 %v1978
        %v2246 = vpop.f32.mrb[0].mxu0
        %v2247 = vadd.f32 0.0, %v2246
        %v2248 = vpop.f32.mrb[0].mxu0
        %2249 = vmatprep.mubr.f32.mxu0 %v2060
        %2250 = vmatmul.mubr.f32.gmra.mrb[0].mxu0 %v1980
        %v2251 = vpop.f32.mrb[0].mxu0
        %v2252 = vadd.f32 0.0, %v2251
        %v2253 = vpop.f32.mrb[0].mxu0
        %2254 = vmatprep.mubr.f32.mxu0 %v2063
        %2255 = vmatmul.mubr.f32.gmra.mrb[0].mxu0 %v1982
        %v2256 = vpop.f32.mrb[0].mxu0
        %v2257 = vadd.f32 0.0, %v2256
        %v2258 = vpop.f32.mrb[0].mxu0
        %2259 = vmatprep.mubr.f32.mxu0 %v2066
        %2260 = vmatmul.mubr.f32.gmra.mrb[0].mxu0 %v1984
        %v2261 = vpop.f32.mrb[0].mxu0
        %v2262 = vadd.f32 0.0, %v2261
        %v2263 = vpop.f32.mrb[0].mxu0
        %2264 = vmatprep.mubr.f32.mxu0 %v2069
        %2265 = vmatmul.mubr.f32.gmra.mrb[0].mxu0 %v1986
        %v2266 = vpop.f32.mrb[0].mxu0
        %v2267 = vadd.f32 0.0, %v2266
        %v2268 = vpop.f32.mrb[0].mxu0
        %2269 = vmatprep.mubr.f32.mxu0 %v2072
        %2270 = vmatmul.mubr.f32.gmra.mrb[0].mxu0 %v1988
        %v2271 = vpop.f32.mrb[0].mxu0
        %v2272 = vadd.f32 0.0, %v2271
        %v2273 = vpop.f32.mrb[0].mxu0
        %2274 = vmatprep.mubr.f32.mxu0 %v2075
        %2275 = vmatmul.mubr.f32.gmra.mrb[0].mxu0 %v1990
        %v2276 = vpop.f32.mrb[0].mxu0
        %v2277 = vadd.f32 0.0, %v2276
        %v2278 = vpop.f32.mrb[0].mxu0
        %2279 = vmatprep.mubr.f32.mxu0 %v2078
        %2280 = vmatmul.mubr.f32.gmra.mrb[0].mxu0 %v1992
        %v2281 = vpop.f32.mrb[0].mxu0
        %v2282 = vadd.f32 0.0, %v2281
        %v2283 = vpop.f32.mrb[0].mxu0
        %2284 = vmatprep.mubr.f32.mxu0 %v2081
        %2285 = vmatmul.mubr.f32.gmra.mrb[0].mxu0 %v1994
        %v2286 = vpop.f32.mrb[0].mxu0
        %v2287 = vadd.f32 0.0, %v2286
        %v2288 = vpop.f32.mrb[0].mxu0
        %2289 = vmatprep.mubr.f32.mxu0 %v2084
        %2290 = vmatmul.mubr.f32.gmra.mrb[0].mxu0 %v1996
        %v2291 = vpop.f32.mrb[0].mxu0
        %v2292 = vadd.f32 0.0, %v2291
        %v2293 = vpop.f32.mrb[0].mxu0
        %2294 = vmatprep.mubr.f32.mxu0 %v2087
        %2295 = vmatmul.mubr.f32.gmra.mrb[0].mxu0 %v1998
        %v2296 = vpop.f32.mrb[0].mxu0
        %v2297 = vadd.f32 0.0, %v2296
        %v2298 = vpop.f32.mrb[0].mxu0
        %2299 = vmatprep.mubr.f32.mxu0 %v2090
        %2300 = vmatmul.mubr.f32.gmra.mrb[0].mxu0 %v2000
        %v2301 = vpop.f32.mrb[0].mxu0
        %v2302 = vadd.f32 0.0, %v2301
        %v2303 = vpop.f32.mrb[0].mxu0
        %2304 = vmatprep.mubr.f32.mxu0 %v2093
        %2305 = vmatmul.mubr.f32.gmra.mrb[0].mxu0 %v2002
        %v2306 = vpop.f32.mrb[0].mxu0
        %v2307 = vadd.f32 0.0, %v2306
        %v2308 = vpop.f32.mrb[0].mxu0
        %2309 = vmatprep.mubr.f32.mxu0 %v2096
        %2310 = vmatmul.mubr.f32.gmra.mrb[0].mxu0 %v2004
        %v2311 = vpop.f32.mrb[0].mxu0
        %v2312 = vadd.f32 0.0, %v2311
        %v2313 = vpop.f32.mrb[0].mxu0
        %2314 = vmatprep.mubr.f32.mxu0 %v2099
        %2315 = vmatmul.mubr.f32.gmra.mrb[0].mxu0 %v2006
        %v2316 = vpop.f32.mrb[0].mxu0
        %v2317 = vadd.f32 0.0, %v2316
        %v2318 = vpop.f32.mrb[0].mxu0
        %2319 = vmatprep.mubr.f32.mxu0 %v2102
        %2320 = vmatmul.mubr.f32.gmra.mrb[0].mxu0 %v2008
        %v2321 = vpop.f32.mrb[0].mxu0
        %v2322 = vadd.f32 0.0, %v2321
        %v2323 = vpop.f32.mrb[0].mxu0
        %2324 = vmatprep.mubr.f32.mxu0 %v2105
        %2325 = vmatmul.mubr.f32.gmra.mrb[0].mxu0 %v2010
        %v2326 = vpop.f32.mrb[0].mxu0
        %v2327 = vadd.f32 0.0, %v2326
        %v2328 = vpop.f32.mrb[0].mxu0
        %2329 = vmatprep.mubr.f32.mxu0 %v2108
        %2330 = vmatmul.mubr.f32.gmra.mrb[0].mxu0 %v2012
        %v2331 = vpop.f32.mrb[0].mxu0
        %v2332 = vadd.f32 0.0, %v2331
        %v2333 = vpop.f32.mrb[0].mxu0
        %2334 = vdwg.mxu0
        %v2335 = vmax.f32 %v1917, %v2177
        %v2336 = vmax.f32 %v1918, %v2182
        %v2337 = vmax.f32 %v1919, %v2187
        %v2338 = vmax.f32 %v1920, %v2192
        %v2339 = vmax.f32 %v1921, %v2197
        %v2340 = vmax.f32 %v1922, %v2202
        %v2341 = vmax.f32 %v1923, %v2207
        %v2342 = vmax.f32 %v1924, %v2212
        %v2343 = vmax.f32 %v1925, %v2217
        %v2344 = vmax.f32 %v1926, %v2222
        %v2345 = vmax.f32 %v1927, %v2227
        %v2346 = vmax.f32 %v1928, %v2232
        %v2347 = vmax.f32 %v1929, %v2237
        %v2348 = vmax.f32 %v1930, %v2242
        %v2349 = vmax.f32 %v1931, %v2247
        %v2350 = vmax.f32 %v1932, %v2252
        %v2351 = vmax.f32 %v1933, %v2257
        %v2352 = vmax.f32 %v1934, %v2262
        %v2353 = vmax.f32 %v1935, %v2267
        %v2354 = vmax.f32 %v1936, %v2272
        %v2355 = vmax.f32 %v1937, %v2277
        %v2356 = vmax.f32 %v1938, %v2282
        %v2357 = vmax.f32 %v1939, %v2287
        %v2358 = vmax.f32 %v1940, %v2292
        %v2359 = vmax.f32 %v1941, %v2297
        %v2360 = vmax.f32 %v1942, %v2302
        %v2361 = vmax.f32 %v1943, %v2307
        %v2362 = vmax.f32 %v1944, %v2312
        %v2363 = vmax.f32 %v1945, %v2317
        %v2364 = vmax.f32 %v1946, %v2322
        %v2365 = vmax.f32 %v1947, %v2327
        %v2366 = vmax.f32 %v1948, %v2332
        %v2367 = vld [vmem:[%s2] sm:$0x1]
        %v2369 = vlaneseq
        %v2370 = vshrl.u32 %v2369, 7
        %v2371 = vsub.s32 0, %v2370
        %v2372 = vrot.slane %v2367, %v2371
        %v2374 = vadd.f32 %v2335, %v2372
        %v2375 = vadd.f32 %v2336, %v2372
        %v2376 = vadd.f32 %v2337, %v2372
        %v2377 = vadd.f32 %v2338, %v2372
        %v2378 = vadd.f32 %v2339, %v2372
        %v2379 = vadd.f32 %v2340, %v2372
        %v2380 = vadd.f32 %v2341, %v2372
        %v2381 = vadd.f32 %v2342, %v2372
        %v2382 = vadd.f32 %v2343, %v2372
        %v2383 = vadd.f32 %v2344, %v2372
        %v2384 = vadd.f32 %v2345, %v2372
        %v2385 = vadd.f32 %v2346, %v2372
        %v2386 = vadd.f32 %v2347, %v2372
        %v2387 = vadd.f32 %v2348, %v2372
        %v2388 = vadd.f32 %v2349, %v2372
        %v2389 = vadd.f32 %v2350, %v2372
        %v2390 = vadd.f32 %v2351, %v2372
        %v2391 = vadd.f32 %v2352, %v2372
        %v2392 = vadd.f32 %v2353, %v2372
        %v2393 = vadd.f32 %v2354, %v2372
        %v2394 = vadd.f32 %v2355, %v2372
        %v2395 = vadd.f32 %v2356, %v2372
        %v2396 = vadd.f32 %v2357, %v2372
        %v2397 = vadd.f32 %v2358, %v2372
        %v2398 = vadd.f32 %v2359, %v2372
        %v2399 = vadd.f32 %v2360, %v2372
        %v2400 = vadd.f32 %v2361, %v2372
        %v2401 = vadd.f32 %v2362, %v2372
        %v2402 = vadd.f32 %v2363, %v2372
        %v2403 = vadd.f32 %v2364, %v2372
        %v2404 = vadd.f32 %v2365, %v2372
        %v2405 = vadd.f32 %v2366, %v2372
        %v2406 = vmax.f32 %v2374, 0.0
        %v2407 = vmax.f32 %v2375, 0.0
        %v2408 = vmax.f32 %v2376, 0.0
        %v2409 = vmax.f32 %v2377, 0.0
        %v2410 = vmax.f32 %v2378, 0.0
        %v2411 = vmax.f32 %v2379, 0.0
        %v2412 = vmax.f32 %v2380, 0.0
        %v2413 = vmax.f32 %v2381, 0.0
        %v2414 = vmax.f32 %v2382, 0.0
        %v2415 = vmax.f32 %v2383, 0.0
        %v2416 = vmax.f32 %v2384, 0.0
        %v2417 = vmax.f32 %v2385, 0.0
        %v2418 = vmax.f32 %v2386, 0.0
        %v2419 = vmax.f32 %v2387, 0.0
        %v2420 = vmax.f32 %v2388, 0.0
        %v2421 = vmax.f32 %v2389, 0.0
        %v2422 = vmax.f32 %v2390, 0.0
        %v2423 = vmax.f32 %v2391, 0.0
        %v2424 = vmax.f32 %v2392, 0.0
        %v2425 = vmax.f32 %v2393, 0.0
        %v2426 = vmax.f32 %v2394, 0.0
        %v2427 = vmax.f32 %v2395, 0.0
        %v2428 = vmax.f32 %v2396, 0.0
        %v2429 = vmax.f32 %v2397, 0.0
        %v2430 = vmax.f32 %v2398, 0.0
        %v2431 = vmax.f32 %v2399, 0.0
        %v2432 = vmax.f32 %v2400, 0.0
        %v2433 = vmax.f32 %v2401, 0.0
        %v2434 = vmax.f32 %v2402, 0.0
        %v2435 = vmax.f32 %v2403, 0.0
        %v2436 = vmax.f32 %v2404, 0.0
        %v2437 = vmax.f32 %v2405, 0.0
        %vm2438 = vcmask 64512
        %2439 = vst.msk [vmem:[%s702] sm:$0xff] %vm2438, %v2406
        %2440 = vst.msk [vmem:[%s702 + $0x8] sm:$0xff] %vm2438, %v2407
        %2441 = vst.msk [vmem:[%s702 + $0x10] sm:$0xff] %vm2438, %v2408
        %2442 = vst.msk [vmem:[%s702 + $0x18] sm:$0xff] %vm2438, %v2409
        %2443 = vst.msk [vmem:[%s702 + $0x20] sm:$0xff] %vm2438, %v2410
        %2444 = vst.msk [vmem:[%s702 + $0x28] sm:$0xff] %vm2438, %v2411
        %2445 = vst.msk [vmem:[%s702 + $0x30] sm:$0xff] %vm2438, %v2412
        %2446 = vst.msk [vmem:[%s702 + $0x38] sm:$0xff] %vm2438, %v2413
        %2447 = vst.msk [vmem:[%s702 + $0x40] sm:$0xff] %vm2438, %v2414
        %2448 = vst.msk [vmem:[%s702 + $0x48] sm:$0xff] %vm2438, %v2415
        %2449 = vst.msk [vmem:[%s702 + $0x50] sm:$0xff] %vm2438, %v2416
        %2450 = vst.msk [vmem:[%s702 + $0x58] sm:$0xff] %vm2438, %v2417
        %2451 = vst.msk [vmem:[%s702 + $0x60] sm:$0xff] %vm2438, %v2418
        %2452 = vst.msk [vmem:[%s702 + $0x68] sm:$0xff] %vm2438, %v2419
        %2453 = vst.msk [vmem:[%s702 + $0x70] sm:$0xff] %vm2438, %v2420
        %2454 = vst.msk [vmem:[%s702 + $0x78] sm:$0xff] %vm2438, %v2421
        %2455 = vst.msk [vmem:[%s702 + $0x80] sm:$0xff] %vm2438, %v2422
        %2456 = vst.msk [vmem:[%s702 + $0x88] sm:$0xff] %vm2438, %v2423
        %2457 = vst.msk [vmem:[%s702 + $0x90] sm:$0xff] %vm2438, %v2424
        %2458 = vst.msk [vmem:[%s702 + $0x98] sm:$0xff] %vm2438, %v2425
        %2459 = vst.msk [vmem:[%s702 + $0xa0] sm:$0xff] %vm2438, %v2426
        %2460 = vst.msk [vmem:[%s702 + $0xa8] sm:$0xff] %vm2438, %v2427
        %2461 = vst.msk [vmem:[%s702 + $0xb0] sm:$0xff] %vm2438, %v2428
        %2462 = vst.msk [vmem:[%s702 + $0xb8] sm:$0xff] %vm2438, %v2429
        %2463 = vst.msk [vmem:[%s702 + $0xc0] sm:$0xff] %vm2438, %v2430
        %2464 = vst.msk [vmem:[%s702 + $0xc8] sm:$0xff] %vm2438, %v2431
        %2465 = vst.msk [vmem:[%s702 + $0xd0] sm:$0xff] %vm2438, %v2432
        %2466 = vst.msk [vmem:[%s702 + $0xd8] sm:$0xff] %vm2438, %v2433
        %2467 = vst.msk [vmem:[%s702 + $0xe0] sm:$0xff] %vm2438, %v2434
        %2468 = vst.msk [vmem:[%s702 + $0xe8] sm:$0xff] %vm2438, %v2435
        %2469 = vst.msk [vmem:[%s702 + $0xf0] sm:$0xff] %vm2438, %v2436
        %2470 = vst.msk [vmem:[%s702 + $0xf8] sm:$0xff] %vm2438, %v2437
        %s2471 = smul.u32 32, %s14
        %p2472 = scmp.lt.s32.totalorder %s2471, 63
        %s2473 = scalar_select %p2472, %s2471, 63
        %s2474 = smul.addr %s2473, 8
        %s2475 = scalar_lea.vmem %s3, %s2474
        // Predicated region
        $region56: #{cnn_forward.3} parent=50 // pred_check
          %p2476 = pneg %p100
        $region57: #{cnn_forward.3} parent=50 // pred_check_branch
          %2478 = sbr.rel (%p2476) target = $region59
        $region58: #{cnn_forward.3} parent=50 // pred_region
          %s2479 = smul.u32 32, %s14
        $region59: #{cnn_forward.3} parent=50 // pred_fallthru
          _
      $region51: #{cnn_forward.3} parent=5 // pred_fallthru
        _
      %p2480 = scmp.le.s32.totalorder 2, %s9
      // Predicated region
      $region60: #{cnn_forward.3} parent=5 // pred_check
        %p2481 = pneg %p2480
      $region61: #{cnn_forward.3} parent=5 // pred_check_branch
        %2483 = sbr.rel (%p2481) target = $region63
      $region62: #{cnn_forward.3} parent=5 // pred_region
        %s2484 = ssub.s32 %s9, 2
        // Predicated region
        $region64: #{cnn_forward.3} parent=62 // pred_check
          %p2485 = pneg %p106
        $region65: #{cnn_forward.3} parent=62 // pred_check_branch
          %2487 = sbr.rel (%p2485) target = $region67
        $region66: #{cnn_forward.3} parent=62 // pred_region
          %s2488 = smul.u32 32, %s15
          %p2489 = scmp.lt.s32.totalorder %s2488, 63
          %s2490 = scalar_select %p2489, %s2488, 63
          %s2491 = smul.addr %s2490, 8
          %s2492 = scalar_lea.vmem %s3, %s2491
        $region67: #{cnn_forward.3} parent=62 // pred_fallthru
          _
      $region63: #{cnn_forward.3} parent=5 // pred_fallthru
        _
    $region6: #{cnn_forward.3} parent=1 // loop_footer
      %s13 = sadd.s32 1, %s9
    $region7: #{cnn_forward.3} parent=1 // loop_footer_branch
      %8 = sbr.rel target = $region3
    $region8: #{cnn_forward.3} parent=1 // loop_exit
      _

// kernel: cnn_forward.4
$region0: #{cnn_forward.4}
  #allocation0 [shape = 'u32[]', space=smem, size = 0x4, offset = 0x4, fixed_abs, tag = 'smem constant byte address 0x4 - core index']
  #allocation1 [shape = 'u32[144,128]{1,0:T(1,128)}', space=vmem, size = 0x12000, scoped, tag = 'internal scratch']
  %s0 = inlined_call_operand.vmem [shape: f32[4,128,392], index: 0, kind: input, shape index: {}]
  %s1 = inlined_call_operand.vmem [shape: f32[392,16], index: 1, kind: input, shape index: {}]
  %s2 = inlined_call_operand.vmem [shape: f32[1,16], index: 2, kind: input, shape index: {}]
  %s3 = inlined_call_operand.vmem [shape: f32[128,16], index: 3, kind: output, shape index: {}]
  %s4 = sld [smem:[#allocation0]]
  $region22: #{cnn_forward.4} parent=0
    _
  %s6 = ssub.s32 1, %s4
  %s7 = scalar_select 0, %s6, %s4
  // Predicated region
  $region2: #{cnn_forward.4} parent=0 // pred_check
    _
  $region3: #{cnn_forward.4} parent=0 // pred_check_branch
    %9 = sbr.rel (0) target = $region5
  $region4: #{cnn_forward.4} parent=0 // pred_region
    _
  $region5: #{cnn_forward.4} parent=0 // pred_fallthru
    _
  // Predicated region
  $region6: #{cnn_forward.4} parent=0 // pred_check
    _
  $region7: #{cnn_forward.4} parent=0 // pred_check_branch
    %11 = sbr.rel (0) target = $region9
  $region8: #{cnn_forward.4} parent=0 // pred_region
    _
  $region9: #{cnn_forward.4} parent=0 // pred_fallthru
    _
  // Predicated region
  $region10: #{cnn_forward.4} parent=0 // pred_check
    _
  $region11: #{cnn_forward.4} parent=0 // pred_check_branch
    %13 = sbr.rel (0) target = $region13
  $region12: #{cnn_forward.4} parent=0 // pred_region
    _
  $region13: #{cnn_forward.4} parent=0 // pred_fallthru
    _
  %v14 = vld [vmem:[%s1] sm:$0xff]
  %v15 = vld [vmem:[%s1 + $0x8] sm:$0xff]
  %v16 = vld [vmem:[%s1 + $0x10] sm:$0xff]
  %v17 = vld [vmem:[%s1 + $0x18] sm:$0xff]
  %v18 = vld [vmem:[%s1 + $0x20] sm:$0xff]
  %v19 = vld [vmem:[%s1 + $0x28] sm:$0xff]
  %v20 = vld [vmem:[%s1 + $0x30] sm:$0xff]
  %v21 = vld [vmem:[%s1 + $0x38] sm:$0xff]
  %v22 = vld [vmem:[%s1 + $0x40] sm:$0xff]
  %v23 = vld [vmem:[%s1 + $0x48] sm:$0xff]
  %v24 = vld [vmem:[%s1 + $0x50] sm:$0xff]
  %v25 = vld [vmem:[%s1 + $0x58] sm:$0xff]
  %v26 = vld [vmem:[%s1 + $0x60] sm:$0xff]
  %v27 = vld [vmem:[%s1 + $0x68] sm:$0xff]
  %v28 = vld [vmem:[%s1 + $0x70] sm:$0xff]
  %v29 = vld [vmem:[%s1 + $0x78] sm:$0xff]
  %v30 = vld [vmem:[%s1 + $0x80] sm:$0xff]
  %v31 = vld [vmem:[%s1 + $0x88] sm:$0xff]
  %v32 = vld [vmem:[%s1 + $0x90] sm:$0xff]
  %v33 = vld [vmem:[%s1 + $0x98] sm:$0xff]
  %v34 = vld [vmem:[%s1 + $0xa0] sm:$0xff]
  %v35 = vld [vmem:[%s1 + $0xa8] sm:$0xff]
  %v36 = vld [vmem:[%s1 + $0xb0] sm:$0xff]
  %v37 = vld [vmem:[%s1 + $0xb8] sm:$0xff]
  %v38 = vld [vmem:[%s1 + $0xc0] sm:$0xff]
  %v39 = vld [vmem:[%s1 + $0xc8] sm:$0xff]
  %v40 = vld [vmem:[%s1 + $0xd0] sm:$0xff]
  %v41 = vld [vmem:[%s1 + $0xd8] sm:$0xff]
  %v42 = vld [vmem:[%s1 + $0xe0] sm:$0xff]
  %v43 = vld [vmem:[%s1 + $0xe8] sm:$0xff]
  %v44 = vld [vmem:[%s1 + $0xf0] sm:$0xff]
  %v45 = vld [vmem:[%s1 + $0xf8] sm:$0xff]
  %v46 = vld [vmem:[%s1 + $0x100] sm:$0xff]
  %v47 = vld [vmem:[%s1 + $0x108] sm:$0xff]
  %v48 = vld [vmem:[%s1 + $0x110] sm:$0xff]
  %v49 = vld [vmem:[%s1 + $0x118] sm:$0xff]
  %v50 = vld [vmem:[%s1 + $0x120] sm:$0xff]
  %v51 = vld [vmem:[%s1 + $0x128] sm:$0xff]
  %v52 = vld [vmem:[%s1 + $0x130] sm:$0xff]
  %v53 = vld [vmem:[%s1 + $0x138] sm:$0xff]
  %v54 = vld [vmem:[%s1 + $0x140] sm:$0xff]
  %v55 = vld [vmem:[%s1 + $0x148] sm:$0xff]
  %v56 = vld [vmem:[%s1 + $0x150] sm:$0xff]
  %v57 = vld [vmem:[%s1 + $0x158] sm:$0xff]
  %v58 = vld [vmem:[%s1 + $0x160] sm:$0xff]
  %v59 = vld [vmem:[%s1 + $0x168] sm:$0xff]
  %v60 = vld [vmem:[%s1 + $0x170] sm:$0xff]
  %v61 = vld [vmem:[%s1 + $0x178] sm:$0xff]
  %v62 = vld [vmem:[%s1 + $0x180] sm:$0xff]
  %v63 = vld [vmem:[%s0] sm:$0xff]
  %v64 = vld [vmem:[%s0 + $0x8] sm:$0xff]
  %v65 = vld [vmem:[%s0 + $0x10] sm:$0xff]
  %v66 = vld [vmem:[%s0 + $0x18] sm:$0xff]
  %v67 = vld [vmem:[%s0 + $0x20] sm:$0xff]
  %v68 = vld [vmem:[%s0 + $0x28] sm:$0xff]
  %v69 = vld [vmem:[%s0 + $0x30] sm:$0xff]
  %v70 = vld [vmem:[%s0 + $0x38] sm:$0xff]
  %v71 = vld [vmem:[%s0 + $0x40] sm:$0xff]
  %v72 = vld [vmem:[%s0 + $0x48] sm:$0xff]
  %v73 = vld [vmem:[%s0 + $0x50] sm:$0xff]
  %v74 = vld [vmem:[%s0 + $0x58] sm:$0xff]
  %v75 = vld [vmem:[%s0 + $0x60] sm:$0xff]
  %v76 = vld [vmem:[%s0 + $0x68] sm:$0xff]
  %v77 = vld [vmem:[%s0 + $0x70] sm:$0xff]
  %v78 = vld [vmem:[%s0 + $0x78] sm:$0xff]
  %v79 = vld [vmem:[%s0 + $0x80] sm:$0xff]
  %v80 = vld [vmem:[%s0 + $0x88] sm:$0xff]
  %v81 = vld [vmem:[%s0 + $0x90] sm:$0xff]
  %v82 = vld [vmem:[%s0 + $0x98] sm:$0xff]
  %v83 = vld [vmem:[%s0 + $0xa0] sm:$0xff]
  %v84 = vld [vmem:[%s0 + $0xa8] sm:$0xff]
  %v85 = vld [vmem:[%s0 + $0xb0] sm:$0xff]
  %v86 = vld [vmem:[%s0 + $0xb8] sm:$0xff]
  %v87 = vld [vmem:[%s0 + $0xc0] sm:$0xff]
  %v88 = vld [vmem:[%s0 + $0xc8] sm:$0xff]
  %v89 = vld [vmem:[%s0 + $0xd0] sm:$0xff]
  %v90 = vld [vmem:[%s0 + $0xd8] sm:$0xff]
  %v91 = vld [vmem:[%s0 + $0xe0] sm:$0xff]
  %v92 = vld [vmem:[%s0 + $0xe8] sm:$0xff]
  %v93 = vld [vmem:[%s0 + $0xf0] sm:$0xff]
  %v94 = vld [vmem:[%s0 + $0xf8] sm:$0xff]
  %v95 = vld [vmem:[%s0 + $0x100] sm:$0xff]
  %v96 = vld [vmem:[%s0 + $0x108] sm:$0xff]
  %v97 = vld [vmem:[%s0 + $0x110] sm:$0xff]
  %v98 = vld [vmem:[%s0 + $0x118] sm:$0xff]
  %v99 = vld [vmem:[%s0 + $0x120] sm:$0xff]
  %v100 = vld [vmem:[%s0 + $0x128] sm:$0xff]
  %v101 = vld [vmem:[%s0 + $0x130] sm:$0xff]
  %v102 = vld [vmem:[%s0 + $0x138] sm:$0xff]
  %v103 = vld [vmem:[%s0 + $0x140] sm:$0xff]
  %v104 = vld [vmem:[%s0 + $0x148] sm:$0xff]
  %v105 = vld [vmem:[%s0 + $0x150] sm:$0xff]
  %v106 = vld [vmem:[%s0 + $0x158] sm:$0xff]
  %v107 = vld [vmem:[%s0 + $0x160] sm:$0xff]
  %v108 = vld [vmem:[%s0 + $0x168] sm:$0xff]
  %v109 = vld [vmem:[%s0 + $0x170] sm:$0xff]
  %v110 = vld [vmem:[%s0 + $0x178] sm:$0xff]
  %v111 = vld [vmem:[%s0 + $0x180] sm:$0xff]
  %v112 = vld [vmem:[%s0 + $0x188] sm:$0xff]
  %v113 = vld [vmem:[%s0 + $0x190] sm:$0xff]
  %v114 = vld [vmem:[%s0 + $0x198] sm:$0xff]
  %v115 = vld [vmem:[%s0 + $0x1a0] sm:$0xff]
  %v116 = vld [vmem:[%s0 + $0x1a8] sm:$0xff]
  %v117 = vld [vmem:[%s0 + $0x1b0] sm:$0xff]
  %v118 = vld [vmem:[%s0 + $0x1b8] sm:$0xff]
  %v119 = vld [vmem:[%s0 + $0x1c0] sm:$0xff]
  %v120 = vld [vmem:[%s0 + $0x1c8] sm:$0xff]
  %v121 = vld [vmem:[%s0 + $0x1d0] sm:$0xff]
  %v122 = vld [vmem:[%s0 + $0x1d8] sm:$0xff]
  %v123 = vld [vmem:[%s0 + $0x1e0] sm:$0xff]
  %v124 = vld [vmem:[%s0 + $0x1e8] sm:$0xff]
  %v125 = vld [vmem:[%s0 + $0x1f0] sm:$0xff]
  %v126 = vld [vmem:[%s0 + $0x1f8] sm:$0xff]
  %vm127 = vcmask 64512
  %v129 = vsel %vm127, %v66, 0
  %v132 = vsel %vm127, %v70, 0
  %v135 = vsel %vm127, %v74, 0
  %v138 = vsel %vm127, %v78, 0
  %v141 = vsel %vm127, %v82, 0
  %v144 = vsel %vm127, %v86, 0
  %v147 = vsel %vm127, %v90, 0
  %v150 = vsel %vm127, %v94, 0
  %v153 = vsel %vm127, %v98, 0
  %v156 = vsel %vm127, %v102, 0
  %v159 = vsel %vm127, %v106, 0
  %v162 = vsel %vm127, %v110, 0
  %v165 = vsel %vm127, %v114, 0
  %v168 = vsel %vm127, %v118, 0
  %v171 = vsel %vm127, %v122, 0
  %v174 = vsel %vm127, %v126, 0
  %176 = vmatprep.subr.mxu0 0.0
  %177 = vmatpush1.msra.mxu0 %v14
  %178 = vmatprep.subr.mxu0 0.0
  %179 = vmatpush1.msra.mxu0 %v15
  %180 = vmatprep.subr.mxu0 0.0
  %181 = vmatpush1.msra.mxu0 %v16
  %182 = vmatprep.subr.mxu0 0.0
  %183 = vmatpush1.msra.mxu0 %v17
  %184 = vmatprep.subr.mxu0 0.0
  %185 = vmatpush1.msra.mxu0 %v18
  %186 = vmatprep.subr.mxu0 0.0
  %187 = vmatpush1.msra.mxu0 %v19
  %188 = vmatprep.subr.mxu0 0.0
  %189 = vmatpush1.msra.mxu0 %v20
  %190 = vmatprep.subr.mxu0 0.0
  %191 = vmatpush1.msra.mxu0 %v21
  %192 = vmatprep.subr.mxu0 0.0
  %193 = vmatpush1.msra.mxu0 %v22
  %194 = vmatprep.subr.mxu0 0.0
  %195 = vmatpush1.msra.mxu0 %v23
  %196 = vmatprep.subr.mxu0 0.0
  %197 = vmatpush1.msra.mxu0 %v24
  %198 = vmatprep.subr.mxu0 0.0
  %199 = vmatpush1.msra.mxu0 %v25
  %200 = vmatprep.subr.mxu0 0.0
  %201 = vmatpush1.msra.mxu0 %v26
  %202 = vmatprep.subr.mxu0 0.0
  %203 = vmatpush1.msra.mxu0 %v27
  %204 = vmatprep.subr.mxu0 0.0
  %205 = vmatpush1.msra.mxu0 %v28
  %206 = vmatprep.subr.mxu0 0.0
  %207 = vmatpush1.msra.mxu0 %v29
  %208 = vmatprep.subr.mxu0 0.0
  %209 = vmatpush1.msra.mxu0 %v30
  %210 = vmatprep.subr.mxu0 0.0
  %211 = vmatpush1.msra.mxu0 %v31
  %212 = vmatprep.subr.mxu0 0.0
  %213 = vmatpush1.msra.mxu0 %v32
  %214 = vmatprep.subr.mxu0 0.0
  %215 = vmatpush1.msra.mxu0 %v33
  %216 = vmatprep.subr.mxu0 0.0
  %217 = vmatpush1.msra.mxu0 %v34
  %218 = vmatprep.subr.mxu0 0.0
  %219 = vmatpush1.msra.mxu0 %v35
  %220 = vmatprep.subr.mxu0 0.0
  %221 = vmatpush1.msra.mxu0 %v36
  %222 = vmatprep.subr.mxu0 0.0
  %223 = vmatpush1.msra.mxu0 %v37
  %224 = vmatprep.subr.mxu0 0.0
  %225 = vmatpush1.msra.mxu0 %v38
  %226 = vmatprep.subr.mxu0 0.0
  %227 = vmatpush1.msra.mxu0 %v39
  %228 = vmatprep.subr.mxu0 0.0
  %229 = vmatpush1.msra.mxu0 %v40
  %230 = vmatprep.subr.mxu0 0.0
  %231 = vmatpush1.msra.mxu0 %v41
  %232 = vmatprep.subr.mxu0 0.0
  %233 = vmatpush1.msra.mxu0 %v42
  %234 = vmatprep.subr.mxu0 0.0
  %235 = vmatpush1.msra.mxu0 %v43
  %236 = vmatprep.subr.mxu0 0.0
  %237 = vmatpush1.msra.mxu0 %v44
  %238 = vmatprep.subr.mxu0 0.0
  %239 = vmatpush1.msra.mxu0 %v45
  %240 = vmatprep.mubr.f32.mxu0 %v64
  %241 = vmatmul.mubr.f32.gmra.mrb[0].mxu0 %v63
  %v242 = vpop.f32.mrb[0].mxu0
  %v243 = vadd.f32 0.0, %v242
  %v244 = vpop.f32.mrb[0].mxu0
  %245 = vmatprep.mubr.f32.mxu0 %v68
  %246 = vmatmul.mubr.f32.gmra.mrb[0].mxu0 %v67
  %v247 = vpop.f32.mrb[0].mxu0
  %v248 = vadd.f32 0.0, %v247
  %v249 = vpop.f32.mrb[0].mxu0
  %250 = vmatprep.mubr.f32.mxu0 %v72
  %251 = vmatmul.mubr.f32.gmra.mrb[0].mxu0 %v71
  %v252 = vpop.f32.mrb[0].mxu0
  %v253 = vadd.f32 0.0, %v252
  %v254 = vpop.f32.mrb[0].mxu0
  %255 = vmatprep.mubr.f32.mxu0 %v76
  %256 = vmatmul.mubr.f32.gmra.mrb[0].mxu0 %v75
  %v257 = vpop.f32.mrb[0].mxu0
  %v258 = vadd.f32 0.0, %v257
  %v259 = vpop.f32.mrb[0].mxu0
  %260 = vmatprep.mubr.f32.mxu0 %v80
  %261 = vmatmul.mubr.f32.gmra.mrb[0].mxu0 %v79
  %v262 = vpop.f32.mrb[0].mxu0
  %v263 = vadd.f32 0.0, %v262
  %v264 = vpop.f32.mrb[0].mxu0
  %265 = vmatprep.mubr.f32.mxu0 %v84
  %266 = vmatmul.mubr.f32.gmra.mrb[0].mxu0 %v83
  %v267 = vpop.f32.mrb[0].mxu0
  %v268 = vadd.f32 0.0, %v267
  %v269 = vpop.f32.mrb[0].mxu0
  %270 = vmatprep.mubr.f32.mxu0 %v88
  %271 = vmatmul.mubr.f32.gmra.mrb[0].mxu0 %v87
  %v272 = vpop.f32.mrb[0].mxu0
  %v273 = vadd.f32 0.0, %v272
  %v274 = vpop.f32.mrb[0].mxu0
  %275 = vmatprep.mubr.f32.mxu0 %v92
  %276 = vmatmul.mubr.f32.gmra.mrb[0].mxu0 %v91
  %v277 = vpop.f32.mrb[0].mxu0
  %v278 = vadd.f32 0.0, %v277
  %v279 = vpop.f32.mrb[0].mxu0
  %280 = vmatprep.mubr.f32.mxu0 %v96
  %281 = vmatmul.mubr.f32.gmra.mrb[0].mxu0 %v95
  %v282 = vpop.f32.mrb[0].mxu0
  %v283 = vadd.f32 0.0, %v282
  %v284 = vpop.f32.mrb[0].mxu0
  %285 = vmatprep.mubr.f32.mxu0 %v100
  %286 = vmatmul.mubr.f32.gmra.mrb[0].mxu0 %v99
  %v287 = vpop.f32.mrb[0].mxu0
  %v288 = vadd.f32 0.0, %v287
  %v289 = vpop.f32.mrb[0].mxu0
  %290 = vmatprep.mubr.f32.mxu0 %v104
  %291 = vmatmul.mubr.f32.gmra.mrb[0].mxu0 %v103
  %v292 = vpop.f32.mrb[0].mxu0
  %v293 = vadd.f32 0.0, %v292
  %v294 = vpop.f32.mrb[0].mxu0
  %295 = vmatprep.mubr.f32.mxu0 %v108
  %296 = vmatmul.mubr.f32.gmra.mrb[0].mxu0 %v107
  %v297 = vpop.f32.mrb[0].mxu0
  %v298 = vadd.f32 0.0, %v297
  %v299 = vpop.f32.mrb[0].mxu0
  %300 = vmatprep.mubr.f32.mxu0 %v112
  %301 = vmatmul.mubr.f32.gmra.mrb[0].mxu0 %v111
  %v302 = vpop.f32.mrb[0].mxu0
  %v303 = vadd.f32 0.0, %v302
  %v304 = vpop.f32.mrb[0].mxu0
  %305 = vmatprep.mubr.f32.mxu0 %v116
  %306 = vmatmul.mubr.f32.gmra.mrb[0].mxu0 %v115
  %v307 = vpop.f32.mrb[0].mxu0
  %v308 = vadd.f32 0.0, %v307
  %v309 = vpop.f32.mrb[0].mxu0
  %310 = vmatprep.mubr.f32.mxu0 %v120
  %311 = vmatmul.mubr.f32.gmra.mrb[0].mxu0 %v119
  %v312 = vpop.f32.mrb[0].mxu0
  %v313 = vadd.f32 0.0, %v312
  %v314 = vpop.f32.mrb[0].mxu0
  %315 = vmatprep.mubr.f32.mxu0 %v124
  %316 = vmatmul.mubr.f32.gmra.mrb[0].mxu0 %v123
  %v317 = vpop.f32.mrb[0].mxu0
  %v318 = vadd.f32 0.0, %v317
  %v319 = vpop.f32.mrb[0].mxu0
  %320 = vdwg.mxu0
  %321 = vmatprep.subr.mxu0 0.0
  %322 = vmatpush1.msra.mxu0 %v46
  %323 = vmatprep.subr.mxu0 0.0
  %324 = vmatpush1.msra.mxu0 %v47
  %325 = vmatprep.subr.mxu0 0.0
  %326 = vmatpush1.msra.mxu0 %v48
  %327 = vmatprep.subr.mxu0 0.0
  %328 = vmatpush1.msra.mxu0 %v49
  %329 = vmatprep.subr.mxu0 0.0
  %330 = vmatpush1.msra.mxu0 %v50
  %331 = vmatprep.subr.mxu0 0.0
  %332 = vmatpush1.msra.mxu0 %v51
  %333 = vmatprep.subr.mxu0 0.0
  %334 = vmatpush1.msra.mxu0 %v52
  %335 = vmatprep.subr.mxu0 0.0
  %336 = vmatpush1.msra.mxu0 %v53
  %337 = vmatprep.subr.mxu0 0.0
  %338 = vmatpush1.msra.mxu0 %v54
  %339 = vmatprep.subr.mxu0 0.0
  %340 = vmatpush1.msra.mxu0 %v55
  %341 = vmatprep.subr.mxu0 0.0
  %342 = vmatpush1.msra.mxu0 %v56
  %343 = vmatprep.subr.mxu0 0.0
  %344 = vmatpush1.msra.mxu0 %v57
  %345 = vmatprep.subr.mxu0 0.0
  %346 = vmatpush1.msra.mxu0 %v58
  %347 = vmatprep.subr.mxu0 0.0
  %348 = vmatpush1.msra.mxu0 %v59
  %349 = vmatprep.subr.mxu0 0.0
  %350 = vmatpush1.msra.mxu0 %v60
  %351 = vmatprep.subr.mxu0 0.0
  %352 = vmatpush1.msra.mxu0 %v61
  %353 = vmatprep.subr.mxu0 0.0
  %354 = vmatpush1.msra.mxu0 %v62
  %355 = vmatprep.subr.mxu0 0.0
  %356 = vmatpush1.msra.mxu0 0.0
  %357 = vmatprep.subr.mxu0 0.0
  %358 = vmatpush1.msra.mxu0 0.0
  %359 = vmatprep.subr.mxu0 0.0
  %360 = vmatpush1.msra.mxu0 0.0
  %361 = vmatprep.subr.mxu0 0.0
  %362 = vmatpush1.msra.mxu0 0.0
  %363 = vmatprep.subr.mxu0 0.0
  %364 = vmatpush1.msra.mxu0 0.0
  %365 = vmatprep.subr.mxu0 0.0
  %366 = vmatpush1.msra.mxu0 0.0
  %367 = vmatprep.subr.mxu0 0.0
  %368 = vmatpush1.msra.mxu0 0.0
  %369 = vmatprep.subr.mxu0 0.0
  %370 = vmatpush1.msra.mxu0 0.0
  %371 = vmatprep.subr.mxu0 0.0
  %372 = vmatpush1.msra.mxu0 0.0
  %373 = vmatprep.subr.mxu0 0.0
  %374 = vmatpush1.msra.mxu0 0.0
  %375 = vmatprep.subr.mxu0 0.0
  %376 = vmatpush1.msra.mxu0 0.0
  %377 = vmatprep.subr.mxu0 0.0
  %378 = vmatpush1.msra.mxu0 0.0
  %379 = vmatprep.subr.mxu0 0.0
  %380 = vmatpush1.msra.mxu0 0.0
  %381 = vmatprep.subr.mxu0 0.0
  %382 = vmatpush1.msra.mxu0 0.0
  %383 = vmatprep.subr.mxu0 0.0
  %384 = vmatpush1.msra.mxu0 0.0
  %385 = vmatprep.mubr.f32.mxu0 %v129
  %386 = vmatmul.mubr.f32.gmra.mrb[0].mxu0 %v65
  %v387 = vpop.f32.mrb[0].mxu0
  %v388 = vadd.f32 %v243, %v387
  %v389 = vpop.f32.mrb[0].mxu0
  %390 = vmatprep.mubr.f32.mxu0 %v132
  %391 = vmatmul.mubr.f32.gmra.mrb[0].mxu0 %v69
  %v392 = vpop.f32.mrb[0].mxu0
  %v393 = vadd.f32 %v248, %v392
  %v394 = vpop.f32.mrb[0].mxu0
  %395 = vmatprep.mubr.f32.mxu0 %v135
  %396 = vmatmul.mubr.f32.gmra.mrb[0].mxu0 %v73
  %v397 = vpop.f32.mrb[0].mxu0
  %v398 = vadd.f32 %v253, %v397
  %v399 = vpop.f32.mrb[0].mxu0
  %400 = vmatprep.mubr.f32.mxu0 %v138
  %401 = vmatmul.mubr.f32.gmra.mrb[0].mxu0 %v77
  %v402 = vpop.f32.mrb[0].mxu0
  %v403 = vadd.f32 %v258, %v402
  %v404 = vpop.f32.mrb[0].mxu0
  %405 = vmatprep.mubr.f32.mxu0 %v141
  %406 = vmatmul.mubr.f32.gmra.mrb[0].mxu0 %v81
  %v407 = vpop.f32.mrb[0].mxu0
  %v408 = vadd.f32 %v263, %v407
  %v409 = vpop.f32.mrb[0].mxu0
  %410 = vmatprep.mubr.f32.mxu0 %v144
  %411 = vmatmul.mubr.f32.gmra.mrb[0].mxu0 %v85
  %v412 = vpop.f32.mrb[0].mxu0
  %v413 = vadd.f32 %v268, %v412
  %v414 = vpop.f32.mrb[0].mxu0
  %415 = vmatprep.mubr.f32.mxu0 %v147
  %416 = vmatmul.mubr.f32.gmra.mrb[0].mxu0 %v89
  %v417 = vpop.f32.mrb[0].mxu0
  %v418 = vadd.f32 %v273, %v417
  %v419 = vpop.f32.mrb[0].mxu0
  %420 = vmatprep.mubr.f32.mxu0 %v150
  %421 = vmatmul.mubr.f32.gmra.mrb[0].mxu0 %v93
  %v422 = vpop.f32.mrb[0].mxu0
  %v423 = vadd.f32 %v278, %v422
  %v424 = vpop.f32.mrb[0].mxu0
  %425 = vmatprep.mubr.f32.mxu0 %v153
  %426 = vmatmul.mubr.f32.gmra.mrb[0].mxu0 %v97
  %v427 = vpop.f32.mrb[0].mxu0
  %v428 = vadd.f32 %v283, %v427
  %v429 = vpop.f32.mrb[0].mxu0
  %430 = vmatprep.mubr.f32.mxu0 %v156
  %431 = vmatmul.mubr.f32.gmra.mrb[0].mxu0 %v101
  %v432 = vpop.f32.mrb[0].mxu0
  %v433 = vadd.f32 %v288, %v432
  %v434 = vpop.f32.mrb[0].mxu0
  %435 = vmatprep.mubr.f32.mxu0 %v159
  %436 = vmatmul.mubr.f32.gmra.mrb[0].mxu0 %v105
  %v437 = vpop.f32.mrb[0].mxu0
  %v438 = vadd.f32 %v293, %v437
  %v439 = vpop.f32.mrb[0].mxu0
  %440 = vmatprep.mubr.f32.mxu0 %v162
  %441 = vmatmul.mubr.f32.gmra.mrb[0].mxu0 %v109
  %v442 = vpop.f32.mrb[0].mxu0
  %v443 = vadd.f32 %v298, %v442
  %v444 = vpop.f32.mrb[0].mxu0
  %445 = vmatprep.mubr.f32.mxu0 %v165
  %446 = vmatmul.mubr.f32.gmra.mrb[0].mxu0 %v113
  %v447 = vpop.f32.mrb[0].mxu0
  %v448 = vadd.f32 %v303, %v447
  %v449 = vpop.f32.mrb[0].mxu0
  %450 = vmatprep.mubr.f32.mxu0 %v168
  %451 = vmatmul.mubr.f32.gmra.mrb[0].mxu0 %v117
  %v452 = vpop.f32.mrb[0].mxu0
  %v453 = vadd.f32 %v308, %v452
  %v454 = vpop.f32.mrb[0].mxu0
  %455 = vmatprep.mubr.f32.mxu0 %v171
  %456 = vmatmul.mubr.f32.gmra.mrb[0].mxu0 %v121
  %v457 = vpop.f32.mrb[0].mxu0
  %v458 = vadd.f32 %v313, %v457
  %v459 = vpop.f32.mrb[0].mxu0
  %460 = vmatprep.mubr.f32.mxu0 %v174
  %461 = vmatmul.mubr.f32.gmra.mrb[0].mxu0 %v125
  %v462 = vpop.f32.mrb[0].mxu0
  %v463 = vadd.f32 %v318, %v462
  %v464 = vpop.f32.mrb[0].mxu0
  %465 = vdwg.mxu0
  %s466 = scalar_lea.vmem %s0, 512
  %v467 = vld [vmem:[%s466] sm:$0xff]
  %v468 = vld [vmem:[%s466 + $0x8] sm:$0xff]
  %v469 = vld [vmem:[%s466 + $0x10] sm:$0xff]
  %v470 = vld [vmem:[%s466 + $0x18] sm:$0xff]
  %v471 = vld [vmem:[%s466 + $0x20] sm:$0xff]
  %v472 = vld [vmem:[%s466 + $0x28] sm:$0xff]
  %v473 = vld [vmem:[%s466 + $0x30] sm:$0xff]
  %v474 = vld [vmem:[%s466 + $0x38] sm:$0xff]
  %v475 = vld [vmem:[%s466 + $0x40] sm:$0xff]
  %v476 = vld [vmem:[%s466 + $0x48] sm:$0xff]
  %v477 = vld [vmem:[%s466 + $0x50] sm:$0xff]
  %v478 = vld [vmem:[%s466 + $0x58] sm:$0xff]
  %v479 = vld [vmem:[%s466 + $0x60] sm:$0xff]
  %v480 = vld [vmem:[%s466 + $0x68] sm:$0xff]
  %v481 = vld [vmem:[%s466 + $0x70] sm:$0xff]
  %v482 = vld [vmem:[%s466 + $0x78] sm:$0xff]
  %v483 = vld [vmem:[%s466 + $0x80] sm:$0xff]
  %v484 = vld [vmem:[%s466 + $0x88] sm:$0xff]
  %v485 = vld [vmem:[%s466 + $0x90] sm:$0xff]
  %v486 = vld [vmem:[%s466 + $0x98] sm:$0xff]
  %v487 = vld [vmem:[%s466 + $0xa0] sm:$0xff]
  %v488 = vld [vmem:[%s466 + $0xa8] sm:$0xff]
  %v489 = vld [vmem:[%s466 + $0xb0] sm:$0xff]
  %v490 = vld [vmem:[%s466 + $0xb8] sm:$0xff]
  %v491 = vld [vmem:[%s466 + $0xc0] sm:$0xff]
  %v492 = vld [vmem:[%s466 + $0xc8] sm:$0xff]
  %v493 = vld [vmem:[%s466 + $0xd0] sm:$0xff]
  %v494 = vld [vmem:[%s466 + $0xd8] sm:$0xff]
  %v495 = vld [vmem:[%s466 + $0xe0] sm:$0xff]
  %v496 = vld [vmem:[%s466 + $0xe8] sm:$0xff]
  %v497 = vld [vmem:[%s466 + $0xf0] sm:$0xff]
  %v498 = vld [vmem:[%s466 + $0xf8] sm:$0xff]
  %v499 = vld [vmem:[%s466 + $0x100] sm:$0xff]
  %v500 = vld [vmem:[%s466 + $0x108] sm:$0xff]
  %v501 = vld [vmem:[%s466 + $0x110] sm:$0xff]
  %v502 = vld [vmem:[%s466 + $0x118] sm:$0xff]
  %v503 = vld [vmem:[%s466 + $0x120] sm:$0xff]
  %v504 = vld [vmem:[%s466 + $0x128] sm:$0xff]
  %v505 = vld [vmem:[%s466 + $0x130] sm:$0xff]
  %v506 = vld [vmem:[%s466 + $0x138] sm:$0xff]
  %v507 = vld [vmem:[%s466 + $0x140] sm:$0xff]
  %v508 = vld [vmem:[%s466 + $0x148] sm:$0xff]
  %v509 = vld [vmem:[%s466 + $0x150] sm:$0xff]
  %v510 = vld [vmem:[%s466 + $0x158] sm:$0xff]
  %v511 = vld [vmem:[%s466 + $0x160] sm:$0xff]
  %v512 = vld [vmem:[%s466 + $0x168] sm:$0xff]
  %v513 = vld [vmem:[%s466 + $0x170] sm:$0xff]
  %v514 = vld [vmem:[%s466 + $0x178] sm:$0xff]
  %v515 = vld [vmem:[%s466 + $0x180] sm:$0xff]
  %v516 = vld [vmem:[%s466 + $0x188] sm:$0xff]
  %v517 = vld [vmem:[%s466 + $0x190] sm:$0xff]
  %v518 = vld [vmem:[%s466 + $0x198] sm:$0xff]
  %v519 = vld [vmem:[%s466 + $0x1a0] sm:$0xff]
  %v520 = vld [vmem:[%s466 + $0x1a8] sm:$0xff]
  %v521 = vld [vmem:[%s466 + $0x1b0] sm:$0xff]
  %v522 = vld [vmem:[%s466 + $0x1b8] sm:$0xff]
  %v523 = vld [vmem:[%s466 + $0x1c0] sm:$0xff]
  %v524 = vld [vmem:[%s466 + $0x1c8] sm:$0xff]
  %v525 = vld [vmem:[%s466 + $0x1d0] sm:$0xff]
  %v526 = vld [vmem:[%s466 + $0x1d8] sm:$0xff]
  %v527 = vld [vmem:[%s466 + $0x1e0] sm:$0xff]
  %v528 = vld [vmem:[%s466 + $0x1e8] sm:$0xff]
  %v529 = vld [vmem:[%s466 + $0x1f0] sm:$0xff]
  %v530 = vld [vmem:[%s466 + $0x1f8] sm:$0xff]
  %v532 = vsel %vm127, %v470, 0
  %v535 = vsel %vm127, %v474, 0
  %v538 = vsel %vm127, %v478, 0
  %v541 = vsel %vm127, %v482, 0
  %v544 = vsel %vm127, %v486, 0
  %v547 = vsel %vm127, %v490, 0
  %v550 = vsel %vm127, %v494, 0
  %v553 = vsel %vm127, %v498, 0
  %v556 = vsel %vm127, %v502, 0
  %v559 = vsel %vm127, %v506, 0
  %v562 = vsel %vm127, %v510, 0
  %v565 = vsel %vm127, %v514, 0
  %v568 = vsel %vm127, %v518, 0
  %v571 = vsel %vm127, %v522, 0
  %v574 = vsel %vm127, %v526, 0
  %v577 = vsel %vm127, %v530, 0
  %579 = vmatprep.subr.mxu0 0.0
  %580 = vmatpush1.msra.mxu0 %v14
  %581 = vmatprep.subr.mxu0 0.0
  %582 = vmatpush1.msra.mxu0 %v15
  %583 = vmatprep.subr.mxu0 0.0
  %584 = vmatpush1.msra.mxu0 %v16
  %585 = vmatprep.subr.mxu0 0.0
  %586 = vmatpush1.msra.mxu0 %v17
  %587 = vmatprep.subr.mxu0 0.0
  %588 = vmatpush1.msra.mxu0 %v18
  %589 = vmatprep.subr.mxu0 0.0
  %590 = vmatpush1.msra.mxu0 %v19
  %591 = vmatprep.subr.mxu0 0.0
  %592 = vmatpush1.msra.mxu0 %v20
  %593 = vmatprep.subr.mxu0 0.0
  %594 = vmatpush1.msra.mxu0 %v21
  %595 = vmatprep.subr.mxu0 0.0
  %596 = vmatpush1.msra.mxu0 %v22
  %597 = vmatprep.subr.mxu0 0.0
  %598 = vmatpush1.msra.mxu0 %v23
  %599 = vmatprep.subr.mxu0 0.0
  %600 = vmatpush1.msra.mxu0 %v24
  %601 = vmatprep.subr.mxu0 0.0
  %602 = vmatpush1.msra.mxu0 %v25
  %603 = vmatprep.subr.mxu0 0.0
  %604 = vmatpush1.msra.mxu0 %v26
  %605 = vmatprep.subr.mxu0 0.0
  %606 = vmatpush1.msra.mxu0 %v27
  %607 = vmatprep.subr.mxu0 0.0
  %608 = vmatpush1.msra.mxu0 %v28
  %609 = vmatprep.subr.mxu0 0.0
  %610 = vmatpush1.msra.mxu0 %v29
  %611 = vmatprep.subr.mxu0 0.0
  %612 = vmatpush1.msra.mxu0 %v30
  %613 = vmatprep.subr.mxu0 0.0
  %614 = vmatpush1.msra.mxu0 %v31
  %615 = vmatprep.subr.mxu0 0.0
  %616 = vmatpush1.msra.mxu0 %v32
  %617 = vmatprep.subr.mxu0 0.0
  %618 = vmatpush1.msra.mxu0 %v33
  %619 = vmatprep.subr.mxu0 0.0
  %620 = vmatpush1.msra.mxu0 %v34
  %621 = vmatprep.subr.mxu0 0.0
  %622 = vmatpush1.msra.mxu0 %v35
  %623 = vmatprep.subr.mxu0 0.0
  %624 = vmatpush1.msra.mxu0 %v36
  %625 = vmatprep.subr.mxu0 0.0
  %626 = vmatpush1.msra.mxu0 %v37
  %627 = vmatprep.subr.mxu0 0.0
  %628 = vmatpush1.msra.mxu0 %v38
  %629 = vmatprep.subr.mxu0 0.0
  %630 = vmatpush1.msra.mxu0 %v39
  %631 = vmatprep.subr.mxu0 0.0
  %632 = vmatpush1.msra.mxu0 %v40
  %633 = vmatprep.subr.mxu0 0.0
  %634 = vmatpush1.msra.mxu0 %v41
  %635 = vmatprep.subr.mxu0 0.0
  %636 = vmatpush1.msra.mxu0 %v42
  %637 = vmatprep.subr.mxu0 0.0
  %638 = vmatpush1.msra.mxu0 %v43
  %639 = vmatprep.subr.mxu0 0.0
  %640 = vmatpush1.msra.mxu0 %v44
  %641 = vmatprep.subr.mxu0 0.0
  %642 = vmatpush1.msra.mxu0 %v45
  %643 = vmatprep.mubr.f32.mxu0 %v468
  %644 = vmatmul.mubr.f32.gmra.mrb[0].mxu0 %v467
  %v645 = vpop.f32.mrb[0].mxu0
  %v646 = vadd.f32 0.0, %v645
  %v647 = vpop.f32.mrb[0].mxu0
  %648 = vmatprep.mubr.f32.mxu0 %v472
  %649 = vmatmul.mubr.f32.gmra.mrb[0].mxu0 %v471
  %v650 = vpop.f32.mrb[0].mxu0
  %v651 = vadd.f32 0.0, %v650
  %v652 = vpop.f32.mrb[0].mxu0
  %653 = vmatprep.mubr.f32.mxu0 %v476
  %654 = vmatmul.mubr.f32.gmra.mrb[0].mxu0 %v475
  %v655 = vpop.f32.mrb[0].mxu0
  %v656 = vadd.f32 0.0, %v655
  %v657 = vpop.f32.mrb[0].mxu0
  %658 = vmatprep.mubr.f32.mxu0 %v480
  %659 = vmatmul.mubr.f32.gmra.mrb[0].mxu0 %v479
  %v660 = vpop.f32.mrb[0].mxu0
  %v661 = vadd.f32 0.0, %v660
  %v662 = vpop.f32.mrb[0].mxu0
  %663 = vmatprep.mubr.f32.mxu0 %v484
  %664 = vmatmul.mubr.f32.gmra.mrb[0].mxu0 %v483
  %v665 = vpop.f32.mrb[0].mxu0
  %v666 = vadd.f32 0.0, %v665
  %v667 = vpop.f32.mrb[0].mxu0
  %668 = vmatprep.mubr.f32.mxu0 %v488
  %669 = vmatmul.mubr.f32.gmra.mrb[0].mxu0 %v487
  %v670 = vpop.f32.mrb[0].mxu0
  %v671 = vadd.f32 0.0, %v670
  %v672 = vpop.f32.mrb[0].mxu0
  %673 = vmatprep.mubr.f32.mxu0 %v492
  %674 = vmatmul.mubr.f32.gmra.mrb[0].mxu0 %v491
  %v675 = vpop.f32.mrb[0].mxu0
  %v676 = vadd.f32 0.0, %v675
  %v677 = vpop.f32.mrb[0].mxu0
  %678 = vmatprep.mubr.f32.mxu0 %v496
  %679 = vmatmul.mubr.f32.gmra.mrb[0].mxu0 %v495
  %v680 = vpop.f32.mrb[0].mxu0
  %v681 = vadd.f32 0.0, %v680
  %v682 = vpop.f32.mrb[0].mxu0
  %683 = vmatprep.mubr.f32.mxu0 %v500
  %684 = vmatmul.mubr.f32.gmra.mrb[0].mxu0 %v499
  %v685 = vpop.f32.mrb[0].mxu0
  %v686 = vadd.f32 0.0, %v685
  %v687 = vpop.f32.mrb[0].mxu0
  %688 = vmatprep.mubr.f32.mxu0 %v504
  %689 = vmatmul.mubr.f32.gmra.mrb[0].mxu0 %v503
  %v690 = vpop.f32.mrb[0].mxu0
  %v691 = vadd.f32 0.0, %v690
  %v692 = vpop.f32.mrb[0].mxu0
  %693 = vmatprep.mubr.f32.mxu0 %v508
  %694 = vmatmul.mubr.f32.gmra.mrb[0].mxu0 %v507
  %v695 = vpop.f32.mrb[0].mxu0
  %v696 = vadd.f32 0.0, %v695
  %v697 = vpop.f32.mrb[0].mxu0
  %698 = vmatprep.mubr.f32.mxu0 %v512
  %699 = vmatmul.mubr.f32.gmra.mrb[0].mxu0 %v511
  %v700 = vpop.f32.mrb[0].mxu0
  %v701 = vadd.f32 0.0, %v700
  %v702 = vpop.f32.mrb[0].mxu0
  %703 = vmatprep.mubr.f32.mxu0 %v516
  %704 = vmatmul.mubr.f32.gmra.mrb[0].mxu0 %v515
  %v705 = vpop.f32.mrb[0].mxu0
  %v706 = vadd.f32 0.0, %v705
  %v707 = vpop.f32.mrb[0].mxu0
  %708 = vmatprep.mubr.f32.mxu0 %v520
  %709 = vmatmul.mubr.f32.gmra.mrb[0].mxu0 %v519
  %v710 = vpop.f32.mrb[0].mxu0
  %v711 = vadd.f32 0.0, %v710
  %v712 = vpop.f32.mrb[0].mxu0
  %713 = vmatprep.mubr.f32.mxu0 %v524
  %714 = vmatmul.mubr.f32.gmra.mrb[0].mxu0 %v523
  %v715 = vpop.f32.mrb[0].mxu0
  %v716 = vadd.f32 0.0, %v715
  %v717 = vpop.f32.mrb[0].mxu0
  %718 = vmatprep.mubr.f32.mxu0 %v528
  %719 = vmatmul.mubr.f32.gmra.mrb[0].mxu0 %v527
  %v720 = vpop.f32.mrb[0].mxu0
  %v721 = vadd.f32 0.0, %v720
  %v722 = vpop.f32.mrb[0].mxu0
  %723 = vdwg.mxu0
  %724 = vmatprep.subr.mxu0 0.0
  %725 = vmatpush1.msra.mxu0 %v46
  %726 = vmatprep.subr.mxu0 0.0
  %727 = vmatpush1.msra.mxu0 %v47
  %728 = vmatprep.subr.mxu0 0.0
  %729 = vmatpush1.msra.mxu0 %v48
  %730 = vmatprep.subr.mxu0 0.0
  %731 = vmatpush1.msra.mxu0 %v49
  %732 = vmatprep.subr.mxu0 0.0
  %733 = vmatpush1.msra.mxu0 %v50
  %734 = vmatprep.subr.mxu0 0.0
  %735 = vmatpush1.msra.mxu0 %v51
  %736 = vmatprep.subr.mxu0 0.0
  %737 = vmatpush1.msra.mxu0 %v52
  %738 = vmatprep.subr.mxu0 0.0
  %739 = vmatpush1.msra.mxu0 %v53
  %740 = vmatprep.subr.mxu0 0.0
  %741 = vmatpush1.msra.mxu0 %v54
  %742 = vmatprep.subr.mxu0 0.0
  %743 = vmatpush1.msra.mxu0 %v55
  %744 = vmatprep.subr.mxu0 0.0
  %745 = vmatpush1.msra.mxu0 %v56
  %746 = vmatprep.subr.mxu0 0.0
  %747 = vmatpush1.msra.mxu0 %v57
  %748 = vmatprep.subr.mxu0 0.0
  %749 = vmatpush1.msra.mxu0 %v58
  %750 = vmatprep.subr.mxu0 0.0
  %751 = vmatpush1.msra.mxu0 %v59
  %752 = vmatprep.subr.mxu0 0.0
  %753 = vmatpush1.msra.mxu0 %v60
  %754 = vmatprep.subr.mxu0 0.0
  %755 = vmatpush1.msra.mxu0 %v61
  %756 = vmatprep.subr.mxu0 0.0
  %757 = vmatpush1.msra.mxu0 %v62
  %758 = vmatprep.subr.mxu0 0.0
  %759 = vmatpush1.msra.mxu0 0.0
  %760 = vmatprep.subr.mxu0 0.0
  %761 = vmatpush1.msra.mxu0 0.0
  %762 = vmatprep.subr.mxu0 0.0
  %763 = vmatpush1.msra.mxu0 0.0
  %764 = vmatprep.subr.mxu0 0.0
  %765 = vmatpush1.msra.mxu0 0.0
  %766 = vmatprep.subr.mxu0 0.0
  %767 = vmatpush1.msra.mxu0 0.0
  %768 = vmatprep.subr.mxu0 0.0
  %769 = vmatpush1.msra.mxu0 0.0
  %770 = vmatprep.subr.mxu0 0.0
  %771 = vmatpush1.msra.mxu0 0.0
  %772 = vmatprep.subr.mxu0 0.0
  %773 = vmatpush1.msra.mxu0 0.0
  %774 = vmatprep.subr.mxu0 0.0
  %775 = vmatpush1.msra.mxu0 0.0
  %776 = vmatprep.subr.mxu0 0.0
  %777 = vmatpush1.msra.mxu0 0.0
  %778 = vmatprep.subr.mxu0 0.0
  %779 = vmatpush1.msra.mxu0 0.0
  %780 = vmatprep.subr.mxu0 0.0
  %781 = vmatpush1.msra.mxu0 0.0
  %782 = vmatprep.subr.mxu0 0.0
  %783 = vmatpush1.msra.mxu0 0.0
  %784 = vmatprep.subr.mxu0 0.0
  %785 = vmatpush1.msra.mxu0 0.0
  %786 = vmatprep.subr.mxu0 0.0
  %787 = vmatpush1.msra.mxu0 0.0
  %788 = vmatprep.mubr.f32.mxu0 %v532
  %789 = vmatmul.mubr.f32.gmra.mrb[0].mxu0 %v469
  %v790 = vpop.f32.mrb[0].mxu0
  %v791 = vadd.f32 %v646, %v790
  %v792 = vpop.f32.mrb[0].mxu0
  %793 = vmatprep.mubr.f32.mxu0 %v535
  %794 = vmatmul.mubr.f32.gmra.mrb[0].mxu0 %v473
  %v795 = vpop.f32.mrb[0].mxu0
  %v796 = vadd.f32 %v651, %v795
  %v797 = vpop.f32.mrb[0].mxu0
  %798 = vmatprep.mubr.f32.mxu0 %v538
  %799 = vmatmul.mubr.f32.gmra.mrb[0].mxu0 %v477
  %v800 = vpop.f32.mrb[0].mxu0
  %v801 = vadd.f32 %v656, %v800
  %v802 = vpop.f32.mrb[0].mxu0
  %803 = vmatprep.mubr.f32.mxu0 %v541
  %804 = vmatmul.mubr.f32.gmra.mrb[0].mxu0 %v481
  %v805 = vpop.f32.mrb[0].mxu0
  %v806 = vadd.f32 %v661, %v805
  %v807 = vpop.f32.mrb[0].mxu0
  %808 = vmatprep.mubr.f32.mxu0 %v544
  %809 = vmatmul.mubr.f32.gmra.mrb[0].mxu0 %v485
  %v810 = vpop.f32.mrb[0].mxu0
  %v811 = vadd.f32 %v666, %v810
  %v812 = vpop.f32.mrb[0].mxu0
  %813 = vmatprep.mubr.f32.mxu0 %v547
  %814 = vmatmul.mubr.f32.gmra.mrb[0].mxu0 %v489
  %v815 = vpop.f32.mrb[0].mxu0
  %v816 = vadd.f32 %v671, %v815
  %v817 = vpop.f32.mrb[0].mxu0
  %818 = vmatprep.mubr.f32.mxu0 %v550
  %819 = vmatmul.mubr.f32.gmra.mrb[0].mxu0 %v493
  %v820 = vpop.f32.mrb[0].mxu0
  %v821 = vadd.f32 %v676, %v820
  %v822 = vpop.f32.mrb[0].mxu0
  %823 = vmatprep.mubr.f32.mxu0 %v553
  %824 = vmatmul.mubr.f32.gmra.mrb[0].mxu0 %v497
  %v825 = vpop.f32.mrb[0].mxu0
  %v826 = vadd.f32 %v681, %v825
  %v827 = vpop.f32.mrb[0].mxu0
  %828 = vmatprep.mubr.f32.mxu0 %v556
  %829 = vmatmul.mubr.f32.gmra.mrb[0].mxu0 %v501
  %v830 = vpop.f32.mrb[0].mxu0
  %v831 = vadd.f32 %v686, %v830
  %v832 = vpop.f32.mrb[0].mxu0
  %833 = vmatprep.mubr.f32.mxu0 %v559
  %834 = vmatmul.mubr.f32.gmra.mrb[0].mxu0 %v505
  %v835 = vpop.f32.mrb[0].mxu0
  %v836 = vadd.f32 %v691, %v835
  %v837 = vpop.f32.mrb[0].mxu0
  %838 = vmatprep.mubr.f32.mxu0 %v562
  %839 = vmatmul.mubr.f32.gmra.mrb[0].mxu0 %v509
  %v840 = vpop.f32.mrb[0].mxu0
  %v841 = vadd.f32 %v696, %v840
  %v842 = vpop.f32.mrb[0].mxu0
  %843 = vmatprep.mubr.f32.mxu0 %v565
  %844 = vmatmul.mubr.f32.gmra.mrb[0].mxu0 %v513
  %v845 = vpop.f32.mrb[0].mxu0
  %v846 = vadd.f32 %v701, %v845
  %v847 = vpop.f32.mrb[0].mxu0
  %848 = vmatprep.mubr.f32.mxu0 %v568
  %849 = vmatmul.mubr.f32.gmra.mrb[0].mxu0 %v517
  %v850 = vpop.f32.mrb[0].mxu0
  %v851 = vadd.f32 %v706, %v850
  %v852 = vpop.f32.mrb[0].mxu0
  %853 = vmatprep.mubr.f32.mxu0 %v571
  %854 = vmatmul.mubr.f32.gmra.mrb[0].mxu0 %v521
  %v855 = vpop.f32.mrb[0].mxu0
  %v856 = vadd.f32 %v711, %v855
  %v857 = vpop.f32.mrb[0].mxu0
  %858 = vmatprep.mubr.f32.mxu0 %v574
  %859 = vmatmul.mubr.f32.gmra.mrb[0].mxu0 %v525
  %v860 = vpop.f32.mrb[0].mxu0
  %v861 = vadd.f32 %v716, %v860
  %v862 = vpop.f32.mrb[0].mxu0
  %863 = vmatprep.mubr.f32.mxu0 %v577
  %864 = vmatmul.mubr.f32.gmra.mrb[0].mxu0 %v529
  %v865 = vpop.f32.mrb[0].mxu0
  %v866 = vadd.f32 %v721, %v865
  %v867 = vpop.f32.mrb[0].mxu0
  %868 = vdwg.mxu0
  %v869 = vmax.f32 %v388, %v791
  %v870 = vmax.f32 %v393, %v796
  %v871 = vmax.f32 %v398, %v801
  %v872 = vmax.f32 %v403, %v806
  %v873 = vmax.f32 %v408, %v811
  %v874 = vmax.f32 %v413, %v816
  %v875 = vmax.f32 %v418, %v821
  %v876 = vmax.f32 %v423, %v826
  %v877 = vmax.f32 %v428, %v831
  %v878 = vmax.f32 %v433, %v836
  %v879 = vmax.f32 %v438, %v841
  %v880 = vmax.f32 %v443, %v846
  %v881 = vmax.f32 %v448, %v851
  %v882 = vmax.f32 %v453, %v856
  %v883 = vmax.f32 %v458, %v861
  %v884 = vmax.f32 %v463, %v866
  %s885 = scalar_lea.vmem %s0, 1024
  %v886 = vld [vmem:[%s885] sm:$0xff]
  %v887 = vld [vmem:[%s885 + $0x8] sm:$0xff]
  %v888 = vld [vmem:[%s885 + $0x10] sm:$0xff]
  %v889 = vld [vmem:[%s885 + $0x18] sm:$0xff]
  %v890 = vld [vmem:[%s885 + $0x20] sm:$0xff]
  %v891 = vld [vmem:[%s885 + $0x28] sm:$0xff]
  %v892 = vld [vmem:[%s885 + $0x30] sm:$0xff]
  %v893 = vld [vmem:[%s885 + $0x38] sm:$0xff]
  %v894 = vld [vmem:[%s885 + $0x40] sm:$0xff]
  %v895 = vld [vmem:[%s885 + $0x48] sm:$0xff]
  %v896 = vld [vmem:[%s885 + $0x50] sm:$0xff]
  %v897 = vld [vmem:[%s885 + $0x58] sm:$0xff]
  %v898 = vld [vmem:[%s885 + $0x60] sm:$0xff]
  %v899 = vld [vmem:[%s885 + $0x68] sm:$0xff]
  %v900 = vld [vmem:[%s885 + $0x70] sm:$0xff]
  %v901 = vld [vmem:[%s885 + $0x78] sm:$0xff]
  %v902 = vld [vmem:[%s885 + $0x80] sm:$0xff]
  %v903 = vld [vmem:[%s885 + $0x88] sm:$0xff]
  %v904 = vld [vmem:[%s885 + $0x90] sm:$0xff]
  %v905 = vld [vmem:[%s885 + $0x98] sm:$0xff]
  %v906 = vld [vmem:[%s885 + $0xa0] sm:$0xff]
  %v907 = vld [vmem:[%s885 + $0xa8] sm:$0xff]
  %v908 = vld [vmem:[%s885 + $0xb0] sm:$0xff]
  %v909 = vld [vmem:[%s885 + $0xb8] sm:$0xff]
  %v910 = vld [vmem:[%s885 + $0xc0] sm:$0xff]
  %v911 = vld [vmem:[%s885 + $0xc8] sm:$0xff]
  %v912 = vld [vmem:[%s885 + $0xd0] sm:$0xff]
  %v913 = vld [vmem:[%s885 + $0xd8] sm:$0xff]
  %v914 = vld [vmem:[%s885 + $0xe0] sm:$0xff]
  %v915 = vld [vmem:[%s885 + $0xe8] sm:$0xff]
  %v916 = vld [vmem:[%s885 + $0xf0] sm:$0xff]
  %v917 = vld [vmem:[%s885 + $0xf8] sm:$0xff]
  %v918 = vld [vmem:[%s885 + $0x100] sm:$0xff]
  %v919 = vld [vmem:[%s885 + $0x108] sm:$0xff]
  %v920 = vld [vmem:[%s885 + $0x110] sm:$0xff]
  %v921 = vld [vmem:[%s885 + $0x118] sm:$0xff]
  %v922 = vld [vmem:[%s885 + $0x120] sm:$0xff]
  %v923 = vld [vmem:[%s885 + $0x128] sm:$0xff]
  %v924 = vld [vmem:[%s885 + $0x130] sm:$0xff]
  %v925 = vld [vmem:[%s885 + $0x138] sm:$0xff]
  %v926 = vld [vmem:[%s885 + $0x140] sm:$0xff]
  %v927 = vld [vmem:[%s885 + $0x148] sm:$0xff]
  %v928 = vld [vmem:[%s885 + $0x150] sm:$0xff]
  %v929 = vld [vmem:[%s885 + $0x158] sm:$0xff]
  %v930 = vld [vmem:[%s885 + $0x160] sm:$0xff]
  %v931 = vld [vmem:[%s885 + $0x168] sm:$0xff]
  %v932 = vld [vmem:[%s885 + $0x170] sm:$0xff]
  %v933 = vld [vmem:[%s885 + $0x178] sm:$0xff]
  %v934 = vld [vmem:[%s885 + $0x180] sm:$0xff]
  %v935 = vld [vmem:[%s885 + $0x188] sm:$0xff]
  %v936 = vld [vmem:[%s885 + $0x190] sm:$0xff]
  %v937 = vld [vmem:[%s885 + $0x198] sm:$0xff]
  %v938 = vld [vmem:[%s885 + $0x1a0] sm:$0xff]
  %v939 = vld [vmem:[%s885 + $0x1a8] sm:$0xff]
  %v940 = vld [vmem:[%s885 + $0x1b0] sm:$0xff]
  %v941 = vld [vmem:[%s885 + $0x1b8] sm:$0xff]
  %v942 = vld [vmem:[%s885 + $0x1c0] sm:$0xff]
  %v943 = vld [vmem:[%s885 + $0x1c8] sm:$0xff]
  %v944 = vld [vmem:[%s885 + $0x1d0] sm:$0xff]
  %v945 = vld [vmem:[%s885 + $0x1d8] sm:$0xff]
  %v946 = vld [vmem:[%s885 + $0x1e0] sm:$0xff]
  %v947 = vld [vmem:[%s885 + $0x1e8] sm:$0xff]
  %v948 = vld [vmem:[%s885 + $0x1f0] sm:$0xff]
  %v949 = vld [vmem:[%s885 + $0x1f8] sm:$0xff]
  %v951 = vsel %vm127, %v889, 0
  %v954 = vsel %vm127, %v893, 0
  %v957 = vsel %vm127, %v897, 0
  %v960 = vsel %vm127, %v901, 0
  %v963 = vsel %vm127, %v905, 0
  %v966 = vsel %vm127, %v909, 0
  %v969 = vsel %vm127, %v913, 0
  %v972 = vsel %vm127, %v917, 0
  %v975 = vsel %vm127, %v921, 0
  %v978 = vsel %vm127, %v925, 0
  %v981 = vsel %vm127, %v929, 0
  %v984 = vsel %vm127, %v933, 0
  %v987 = vsel %vm127, %v937, 0
  %v990 = vsel %vm127, %v941, 0
  %v993 = vsel %vm127, %v945, 0
  %v996 = vsel %vm127, %v949, 0
  %998 = vmatprep.subr.mxu0 0.0
  %999 = vmatpush1.msra.mxu0 %v14
  %1000 = vmatprep.subr.mxu0 0.0
  %1001 = vmatpush1.msra.mxu0 %v15
  %1002 = vmatprep.subr.mxu0 0.0
  %1003 = vmatpush1.msra.mxu0 %v16
  %1004 = vmatprep.subr.mxu0 0.0
  %1005 = vmatpush1.msra.mxu0 %v17
  %1006 = vmatprep.subr.mxu0 0.0
  %1007 = vmatpush1.msra.mxu0 %v18
  %1008 = vmatprep.subr.mxu0 0.0
  %1009 = vmatpush1.msra.mxu0 %v19
  %1010 = vmatprep.subr.mxu0 0.0
  %1011 = vmatpush1.msra.mxu0 %v20
  %1012 = vmatprep.subr.mxu0 0.0
  %1013 = vmatpush1.msra.mxu0 %v21
  %1014 = vmatprep.subr.mxu0 0.0
  %1015 = vmatpush1.msra.mxu0 %v22
  %1016 = vmatprep.subr.mxu0 0.0
  %1017 = vmatpush1.msra.mxu0 %v23
  %1018 = vmatprep.subr.mxu0 0.0
  %1019 = vmatpush1.msra.mxu0 %v24
  %1020 = vmatprep.subr.mxu0 0.0
  %1021 = vmatpush1.msra.mxu0 %v25
  %1022 = vmatprep.subr.mxu0 0.0
  %1023 = vmatpush1.msra.mxu0 %v26
  %1024 = vmatprep.subr.mxu0 0.0
  %1025 = vmatpush1.msra.mxu0 %v27
  %1026 = vmatprep.subr.mxu0 0.0
  %1027 = vmatpush1.msra.mxu0 %v28
  %1028 = vmatprep.subr.mxu0 0.0
  %1029 = vmatpush1.msra.mxu0 %v29
  %1030 = vmatprep.subr.mxu0 0.0
  %1031 = vmatpush1.msra.mxu0 %v30
  %1032 = vmatprep.subr.mxu0 0.0
  %1033 = vmatpush1.msra.mxu0 %v31
  %1034 = vmatprep.subr.mxu0 0.0
  %1035 = vmatpush1.msra.mxu0 %v32
  %1036 = vmatprep.subr.mxu0 0.0
  %1037 = vmatpush1.msra.mxu0 %v33
  %1038 = vmatprep.subr.mxu0 0.0
  %1039 = vmatpush1.msra.mxu0 %v34
  %1040 = vmatprep.subr.mxu0 0.0
  %1041 = vmatpush1.msra.mxu0 %v35
  %1042 = vmatprep.subr.mxu0 0.0
  %1043 = vmatpush1.msra.mxu0 %v36
  %1044 = vmatprep.subr.mxu0 0.0
  %1045 = vmatpush1.msra.mxu0 %v37
  %1046 = vmatprep.subr.mxu0 0.0
  %1047 = vmatpush1.msra.mxu0 %v38
  %1048 = vmatprep.subr.mxu0 0.0
  %1049 = vmatpush1.msra.mxu0 %v39
  %1050 = vmatprep.subr.mxu0 0.0
  %1051 = vmatpush1.msra.mxu0 %v40
  %1052 = vmatprep.subr.mxu0 0.0
  %1053 = vmatpush1.msra.mxu0 %v41
  %1054 = vmatprep.subr.mxu0 0.0
  %1055 = vmatpush1.msra.mxu0 %v42
  %1056 = vmatprep.subr.mxu0 0.0
  %1057 = vmatpush1.msra.mxu0 %v43
  %1058 = vmatprep.subr.mxu0 0.0
  %1059 = vmatpush1.msra.mxu0 %v44
  %1060 = vmatprep.subr.mxu0 0.0
  %1061 = vmatpush1.msra.mxu0 %v45
  %1062 = vmatprep.mubr.f32.mxu0 %v887
  %1063 = vmatmul.mubr.f32.gmra.mrb[0].mxu0 %v886
  %v1064 = vpop.f32.mrb[0].mxu0
  %v1065 = vadd.f32 0.0, %v1064
  %v1066 = vpop.f32.mrb[0].mxu0
  %1067 = vmatprep.mubr.f32.mxu0 %v891
  %1068 = vmatmul.mubr.f32.gmra.mrb[0].mxu0 %v890
  %v1069 = vpop.f32.mrb[0].mxu0
  %v1070 = vadd.f32 0.0, %v1069
  %v1071 = vpop.f32.mrb[0].mxu0
  %1072 = vmatprep.mubr.f32.mxu0 %v895
  %1073 = vmatmul.mubr.f32.gmra.mrb[0].mxu0 %v894
  %v1074 = vpop.f32.mrb[0].mxu0
  %v1075 = vadd.f32 0.0, %v1074
  %v1076 = vpop.f32.mrb[0].mxu0
  %1077 = vmatprep.mubr.f32.mxu0 %v899
  %1078 = vmatmul.mubr.f32.gmra.mrb[0].mxu0 %v898
  %v1079 = vpop.f32.mrb[0].mxu0
  %v1080 = vadd.f32 0.0, %v1079
  %v1081 = vpop.f32.mrb[0].mxu0
  %1082 = vmatprep.mubr.f32.mxu0 %v903
  %1083 = vmatmul.mubr.f32.gmra.mrb[0].mxu0 %v902
  %v1084 = vpop.f32.mrb[0].mxu0
  %v1085 = vadd.f32 0.0, %v1084
  %v1086 = vpop.f32.mrb[0].mxu0
  %1087 = vmatprep.mubr.f32.mxu0 %v907
  %1088 = vmatmul.mubr.f32.gmra.mrb[0].mxu0 %v906
  %v1089 = vpop.f32.mrb[0].mxu0
  %v1090 = vadd.f32 0.0, %v1089
  %v1091 = vpop.f32.mrb[0].mxu0
  %1092 = vmatprep.mubr.f32.mxu0 %v911
  %1093 = vmatmul.mubr.f32.gmra.mrb[0].mxu0 %v910
  %v1094 = vpop.f32.mrb[0].mxu0
  %v1095 = vadd.f32 0.0, %v1094
  %v1096 = vpop.f32.mrb[0].mxu0
  %1097 = vmatprep.mubr.f32.mxu0 %v915
  %1098 = vmatmul.mubr.f32.gmra.mrb[0].mxu0 %v914
  %v1099 = vpop.f32.mrb[0].mxu0
  %v1100 = vadd.f32 0.0, %v1099
  %v1101 = vpop.f32.mrb[0].mxu0
  %1102 = vmatprep.mubr.f32.mxu0 %v919
  %1103 = vmatmul.mubr.f32.gmra.mrb[0].mxu0 %v918
  %v1104 = vpop.f32.mrb[0].mxu0
  %v1105 = vadd.f32 0.0, %v1104
  %v1106 = vpop.f32.mrb[0].mxu0
  %1107 = vmatprep.mubr.f32.mxu0 %v923
  %1108 = vmatmul.mubr.f32.gmra.mrb[0].mxu0 %v922
  %v1109 = vpop.f32.mrb[0].mxu0
  %v1110 = vadd.f32 0.0, %v1109
  %v1111 = vpop.f32.mrb[0].mxu0
  %1112 = vmatprep.mubr.f32.mxu0 %v927
  %1113 = vmatmul.mubr.f32.gmra.mrb[0].mxu0 %v926
  %v1114 = vpop.f32.mrb[0].mxu0
  %v1115 = vadd.f32 0.0, %v1114
  %v1116 = vpop.f32.mrb[0].mxu0
  %1117 = vmatprep.mubr.f32.mxu0 %v931
  %1118 = vmatmul.mubr.f32.gmra.mrb[0].mxu0 %v930
  %v1119 = vpop.f32.mrb[0].mxu0
  %v1120 = vadd.f32 0.0, %v1119
  %v1121 = vpop.f32.mrb[0].mxu0
  %1122 = vmatprep.mubr.f32.mxu0 %v935
  %1123 = vmatmul.mubr.f32.gmra.mrb[0].mxu0 %v934
  %v1124 = vpop.f32.mrb[0].mxu0
  %v1125 = vadd.f32 0.0, %v1124
  %v1126 = vpop.f32.mrb[0].mxu0
  %1127 = vmatprep.mubr.f32.mxu0 %v939
  %1128 = vmatmul.mubr.f32.gmra.mrb[0].mxu0 %v938
  %v1129 = vpop.f32.mrb[0].mxu0
  %v1130 = vadd.f32 0.0, %v1129
  %v1131 = vpop.f32.mrb[0].mxu0
  %1132 = vmatprep.mubr.f32.mxu0 %v943
  %1133 = vmatmul.mubr.f32.gmra.mrb[0].mxu0 %v942
  %v1134 = vpop.f32.mrb[0].mxu0
  %v1135 = vadd.f32 0.0, %v1134
  %v1136 = vpop.f32.mrb[0].mxu0
  %1137 = vmatprep.mubr.f32.mxu0 %v947
  %1138 = vmatmul.mubr.f32.gmra.mrb[0].mxu0 %v946
  %v1139 = vpop.f32.mrb[0].mxu0
  %v1140 = vadd.f32 0.0, %v1139
  %v1141 = vpop.f32.mrb[0].mxu0
  %1142 = vdwg.mxu0
  %1143 = vmatprep.subr.mxu0 0.0
  %1144 = vmatpush1.msra.mxu0 %v46
  %1145 = vmatprep.subr.mxu0 0.0
  %1146 = vmatpush1.msra.mxu0 %v47
  %1147 = vmatprep.subr.mxu0 0.0
  %1148 = vmatpush1.msra.mxu0 %v48
  %1149 = vmatprep.subr.mxu0 0.0
  %1150 = vmatpush1.msra.mxu0 %v49
  %1151 = vmatprep.subr.mxu0 0.0
  %1152 = vmatpush1.msra.mxu0 %v50
  %1153 = vmatprep.subr.mxu0 0.0
  %1154 = vmatpush1.msra.mxu0 %v51
  %1155 = vmatprep.subr.mxu0 0.0
  %1156 = vmatpush1.msra.mxu0 %v52
  %1157 = vmatprep.subr.mxu0 0.0
  %1158 = vmatpush1.msra.mxu0 %v53
  %1159 = vmatprep.subr.mxu0 0.0
  %1160 = vmatpush1.msra.mxu0 %v54
  %1161 = vmatprep.subr.mxu0 0.0
  %1162 = vmatpush1.msra.mxu0 %v55
  %1163 = vmatprep.subr.mxu0 0.0
  %1164 = vmatpush1.msra.mxu0 %v56
  %1165 = vmatprep.subr.mxu0 0.0
  %1166 = vmatpush1.msra.mxu0 %v57
  %1167 = vmatprep.subr.mxu0 0.0
  %1168 = vmatpush1.msra.mxu0 %v58
  %1169 = vmatprep.subr.mxu0 0.0
  %1170 = vmatpush1.msra.mxu0 %v59
  %1171 = vmatprep.subr.mxu0 0.0
  %1172 = vmatpush1.msra.mxu0 %v60
  %1173 = vmatprep.subr.mxu0 0.0
  %1174 = vmatpush1.msra.mxu0 %v61
  %1175 = vmatprep.subr.mxu0 0.0
  %1176 = vmatpush1.msra.mxu0 %v62
  %1177 = vmatprep.subr.mxu0 0.0
  %1178 = vmatpush1.msra.mxu0 0.0
  %1179 = vmatprep.subr.mxu0 0.0
  %1180 = vmatpush1.msra.mxu0 0.0
  %1181 = vmatprep.subr.mxu0 0.0
  %1182 = vmatpush1.msra.mxu0 0.0
  %1183 = vmatprep.subr.mxu0 0.0
  %1184 = vmatpush1.msra.mxu0 0.0
  %1185 = vmatprep.subr.mxu0 0.0
  %1186 = vmatpush1.msra.mxu0 0.0
  %1187 = vmatprep.subr.mxu0 0.0
  %1188 = vmatpush1.msra.mxu0 0.0
  %1189 = vmatprep.subr.mxu0 0.0
  %1190 = vmatpush1.msra.mxu0 0.0
  %1191 = vmatprep.subr.mxu0 0.0
  %1192 = vmatpush1.msra.mxu0 0.0
  %1193 = vmatprep.subr.mxu0 0.0
  %1194 = vmatpush1.msra.mxu0 0.0
  %1195 = vmatprep.subr.mxu0 0.0
  %1196 = vmatpush1.msra.mxu0 0.0
  %1197 = vmatprep.subr.mxu0 0.0
  %1198 = vmatpush1.msra.mxu0 0.0
  %1199 = vmatprep.subr.mxu0 0.0
  %1200 = vmatpush1.msra.mxu0 0.0
  %1201 = vmatprep.subr.mxu0 0.0
  %1202 = vmatpush1.msra.mxu0 0.0
  %1203 = vmatprep.subr.mxu0 0.0
  %1204 = vmatpush1.msra.mxu0 0.0
  %1205 = vmatprep.subr.mxu0 0.0
  %1206 = vmatpush1.msra.mxu0 0.0
  %1207 = vmatprep.mubr.f32.mxu0 %v951
  %1208 = vmatmul.mubr.f32.gmra.mrb[0].mxu0 %v888
  %v1209 = vpop.f32.mrb[0].mxu0
  %v1210 = vadd.f32 %v1065, %v1209
  %v1211 = vpop.f32.mrb[0].mxu0
  %1212 = vmatprep.mubr.f32.mxu0 %v954
  %1213 = vmatmul.mubr.f32.gmra.mrb[0].mxu0 %v892
  %v1214 = vpop.f32.mrb[0].mxu0
  %v1215 = vadd.f32 %v1070, %v1214
  %v1216 = vpop.f32.mrb[0].mxu0
  %1217 = vmatprep.mubr.f32.mxu0 %v957
  %1218 = vmatmul.mubr.f32.gmra.mrb[0].mxu0 %v896
  %v1219 = vpop.f32.mrb[0].mxu0
  %v1220 = vadd.f32 %v1075, %v1219
  %v1221 = vpop.f32.mrb[0].mxu0
  %1222 = vmatprep.mubr.f32.mxu0 %v960
  %1223 = vmatmul.mubr.f32.gmra.mrb[0].mxu0 %v900
  %v1224 = vpop.f32.mrb[0].mxu0
  %v1225 = vadd.f32 %v1080, %v1224
  %v1226 = vpop.f32.mrb[0].mxu0
  %1227 = vmatprep.mubr.f32.mxu0 %v963
  %1228 = vmatmul.mubr.f32.gmra.mrb[0].mxu0 %v904
  %v1229 = vpop.f32.mrb[0].mxu0
  %v1230 = vadd.f32 %v1085, %v1229
  %v1231 = vpop.f32.mrb[0].mxu0
  %1232 = vmatprep.mubr.f32.mxu0 %v966
  %1233 = vmatmul.mubr.f32.gmra.mrb[0].mxu0 %v908
  %v1234 = vpop.f32.mrb[0].mxu0
  %v1235 = vadd.f32 %v1090, %v1234
  %v1236 = vpop.f32.mrb[0].mxu0
  %1237 = vmatprep.mubr.f32.mxu0 %v969
  %1238 = vmatmul.mubr.f32.gmra.mrb[0].mxu0 %v912
  %v1239 = vpop.f32.mrb[0].mxu0
  %v1240 = vadd.f32 %v1095, %v1239
  %v1241 = vpop.f32.mrb[0].mxu0
  %1242 = vmatprep.mubr.f32.mxu0 %v972
  %1243 = vmatmul.mubr.f32.gmra.mrb[0].mxu0 %v916
  %v1244 = vpop.f32.mrb[0].mxu0
  %v1245 = vadd.f32 %v1100, %v1244
  %v1246 = vpop.f32.mrb[0].mxu0
  %1247 = vmatprep.mubr.f32.mxu0 %v975
  %1248 = vmatmul.mubr.f32.gmra.mrb[0].mxu0 %v920
  %v1249 = vpop.f32.mrb[0].mxu0
  %v1250 = vadd.f32 %v1105, %v1249
  %v1251 = vpop.f32.mrb[0].mxu0
  %1252 = vmatprep.mubr.f32.mxu0 %v978
  %1253 = vmatmul.mubr.f32.gmra.mrb[0].mxu0 %v924
  %v1254 = vpop.f32.mrb[0].mxu0
  %v1255 = vadd.f32 %v1110, %v1254
  %v1256 = vpop.f32.mrb[0].mxu0
  %1257 = vmatprep.mubr.f32.mxu0 %v981
  %1258 = vmatmul.mubr.f32.gmra.mrb[0].mxu0 %v928
  %v1259 = vpop.f32.mrb[0].mxu0
  %v1260 = vadd.f32 %v1115, %v1259
  %v1261 = vpop.f32.mrb[0].mxu0
  %1262 = vmatprep.mubr.f32.mxu0 %v984
  %1263 = vmatmul.mubr.f32.gmra.mrb[0].mxu0 %v932
  %v1264 = vpop.f32.mrb[0].mxu0
  %v1265 = vadd.f32 %v1120, %v1264
  %v1266 = vpop.f32.mrb[0].mxu0
  %1267 = vmatprep.mubr.f32.mxu0 %v987
  %1268 = vmatmul.mubr.f32.gmra.mrb[0].mxu0 %v936
  %v1269 = vpop.f32.mrb[0].mxu0
  %v1270 = vadd.f32 %v1125, %v1269
  %v1271 = vpop.f32.mrb[0].mxu0
  %1272 = vmatprep.mubr.f32.mxu0 %v990
  %1273 = vmatmul.mubr.f32.gmra.mrb[0].mxu0 %v940
  %v1274 = vpop.f32.mrb[0].mxu0
  %v1275 = vadd.f32 %v1130, %v1274
  %v1276 = vpop.f32.mrb[0].mxu0
  %1277 = vmatprep.mubr.f32.mxu0 %v993
  %1278 = vmatmul.mubr.f32.gmra.mrb[0].mxu0 %v944
  %v1279 = vpop.f32.mrb[0].mxu0
  %v1280 = vadd.f32 %v1135, %v1279
  %v1281 = vpop.f32.mrb[0].mxu0
  %1282 = vmatprep.mubr.f32.mxu0 %v996
  %1283 = vmatmul.mubr.f32.gmra.mrb[0].mxu0 %v948
  %v1284 = vpop.f32.mrb[0].mxu0
  %v1285 = vadd.f32 %v1140, %v1284
  %v1286 = vpop.f32.mrb[0].mxu0
  %1287 = vdwg.mxu0
  %v1288 = vmax.f32 %v869, %v1210
  %v1289 = vmax.f32 %v870, %v1215
  %v1290 = vmax.f32 %v871, %v1220
  %v1291 = vmax.f32 %v872, %v1225
  %v1292 = vmax.f32 %v873, %v1230
  %v1293 = vmax.f32 %v874, %v1235
  %v1294 = vmax.f32 %v875, %v1240
  %v1295 = vmax.f32 %v876, %v1245
  %v1296 = vmax.f32 %v877, %v1250
  %v1297 = vmax.f32 %v878, %v1255
  %v1298 = vmax.f32 %v879, %v1260
  %v1299 = vmax.f32 %v880, %v1265
  %v1300 = vmax.f32 %v881, %v1270
  %v1301 = vmax.f32 %v882, %v1275
  %v1302 = vmax.f32 %v883, %v1280
  %v1303 = vmax.f32 %v884, %v1285
  %s1304 = scalar_lea.vmem %s0, 1536
  %v1305 = vld [vmem:[%s1304] sm:$0xff]
  %v1306 = vld [vmem:[%s1304 + $0x8] sm:$0xff]
  %v1307 = vld [vmem:[%s1304 + $0x10] sm:$0xff]
  %v1308 = vld [vmem:[%s1304 + $0x18] sm:$0xff]
  %v1309 = vld [vmem:[%s1304 + $0x20] sm:$0xff]
  %v1310 = vld [vmem:[%s1304 + $0x28] sm:$0xff]
  %v1311 = vld [vmem:[%s1304 + $0x30] sm:$0xff]
  %v1312 = vld [vmem:[%s1304 + $0x38] sm:$0xff]
  %v1313 = vld [vmem:[%s1304 + $0x40] sm:$0xff]
  %v1314 = vld [vmem:[%s1304 + $0x48] sm:$0xff]
  %v1315 = vld [vmem:[%s1304 + $0x50] sm:$0xff]
  %v1316 = vld [vmem:[%s1304 + $0x58] sm:$0xff]
  %v1317 = vld [vmem:[%s1304 + $0x60] sm:$0xff]
  %v1318 = vld [vmem:[%s1304 + $0x68] sm:$0xff]
  %v1319 = vld [vmem:[%s1304 + $0x70] sm:$0xff]
  %v1320 = vld [vmem:[%s1304 + $0x78] sm:$0xff]
  %v1321 = vld [vmem:[%s1304 + $0x80] sm:$0xff]
  %v1322 = vld [vmem:[%s1304 + $0x88] sm:$0xff]
  %v1323 = vld [vmem:[%s1304 + $0x90] sm:$0xff]
  %v1324 = vld [vmem:[%s1304 + $0x98] sm:$0xff]
  %v1325 = vld [vmem:[%s1304 + $0xa0] sm:$0xff]
  %v1326 = vld [vmem:[%s1304 + $0xa8] sm:$0xff]
  %v1327 = vld [vmem:[%s1304 + $0xb0] sm:$0xff]
  %v1328 = vld [vmem:[%s1304 + $0xb8] sm:$0xff]
  %v1329 = vld [vmem:[%s1304 + $0xc0] sm:$0xff]
  %v1330 = vld [vmem:[%s1304 + $0xc8] sm:$0xff]
  %v1331 = vld [vmem:[%s1304 + $0xd0] sm:$0xff]
  %v1332 = vld [vmem:[%s1304 + $0xd8] sm:$0xff]
  %v1333 = vld [vmem:[%s1304 + $0xe0] sm:$0xff]
  %v1334 = vld [vmem:[%s1304 + $0xe8] sm:$0xff]
  %v1335 = vld [vmem:[%s1304 + $0xf0] sm:$0xff]
  %v1336 = vld [vmem:[%s1304 + $0xf8] sm:$0xff]
  %v1337 = vld [vmem:[%s1304 + $0x100] sm:$0xff]
  %v1338 = vld [vmem:[%s1304 + $0x108] sm:$0xff]
  %v1339 = vld [vmem:[%s1304 + $0x110] sm:$0xff]
  %v1340 = vld [vmem:[%s1304 + $0x118] sm:$0xff]
  %v1341 = vld [vmem:[%s1304 + $0x120] sm:$0xff]
  %v1342 = vld [vmem:[%s1304 + $0x128] sm:$0xff]
  %v1343 = vld [vmem:[%s1304 + $0x130] sm:$0xff]
  %v1344 = vld [vmem:[%s1304 + $0x138] sm:$0xff]
  %v1345 = vld [vmem:[%s1304 + $0x140] sm:$0xff]
  %v1346 = vld [vmem:[%s1304 + $0x148] sm:$0xff]
  %v1347 = vld [vmem:[%s1304 + $0x150] sm:$0xff]
  %v1348 = vld [vmem:[%s1304 + $0x158] sm:$0xff]
  %v1349 = vld [vmem:[%s1304 + $0x160] sm:$0xff]
  %v1350 = vld [vmem:[%s1304 + $0x168] sm:$0xff]
  %v1351 = vld [vmem:[%s1304 + $0x170] sm:$0xff]
  %v1352 = vld [vmem:[%s1304 + $0x178] sm:$0xff]
  %v1353 = vld [vmem:[%s1304 + $0x180] sm:$0xff]
  %v1354 = vld [vmem:[%s1304 + $0x188] sm:$0xff]
  %v1355 = vld [vmem:[%s1304 + $0x190] sm:$0xff]
  %v1356 = vld [vmem:[%s1304 + $0x198] sm:$0xff]
  %v1357 = vld [vmem:[%s1304 + $0x1a0] sm:$0xff]
  %v1358 = vld [vmem:[%s1304 + $0x1a8] sm:$0xff]
  %v1359 = vld [vmem:[%s1304 + $0x1b0] sm:$0xff]
  %v1360 = vld [vmem:[%s1304 + $0x1b8] sm:$0xff]
  %v1361 = vld [vmem:[%s1304 + $0x1c0] sm:$0xff]
  %v1362 = vld [vmem:[%s1304 + $0x1c8] sm:$0xff]
  %v1363 = vld [vmem:[%s1304 + $0x1d0] sm:$0xff]
  %v1364 = vld [vmem:[%s1304 + $0x1d8] sm:$0xff]
  %v1365 = vld [vmem:[%s1304 + $0x1e0] sm:$0xff]
  %v1366 = vld [vmem:[%s1304 + $0x1e8] sm:$0xff]
  %v1367 = vld [vmem:[%s1304 + $0x1f0] sm:$0xff]
  %v1368 = vld [vmem:[%s1304 + $0x1f8] sm:$0xff]
  %v1370 = vsel %vm127, %v1308, 0
  %v1373 = vsel %vm127, %v1312, 0
  %v1376 = vsel %vm127, %v1316, 0
  %v1379 = vsel %vm127, %v1320, 0
  %v1382 = vsel %vm127, %v1324, 0
  %v1385 = vsel %vm127, %v1328, 0
  %v1388 = vsel %vm127, %v1332, 0
  %v1391 = vsel %vm127, %v1336, 0
  %v1394 = vsel %vm127, %v1340, 0
  %v1397 = vsel %vm127, %v1344, 0
  %v1400 = vsel %vm127, %v1348, 0
  %v1403 = vsel %vm127, %v1352, 0
  %v1406 = vsel %vm127, %v1356, 0
  %v1409 = vsel %vm127, %v1360, 0
  %v1412 = vsel %vm127, %v1364, 0
  %v1415 = vsel %vm127, %v1368, 0
  %1417 = vmatprep.subr.mxu0 0.0
  %1418 = vmatpush1.msra.mxu0 %v14
  %1419 = vmatprep.subr.mxu0 0.0
  %1420 = vmatpush1.msra.mxu0 %v15
  %1421 = vmatprep.subr.mxu0 0.0
  %1422 = vmatpush1.msra.mxu0 %v16
  %1423 = vmatprep.subr.mxu0 0.0
  %1424 = vmatpush1.msra.mxu0 %v17
  %1425 = vmatprep.subr.mxu0 0.0
  %1426 = vmatpush1.msra.mxu0 %v18
  %1427 = vmatprep.subr.mxu0 0.0
  %1428 = vmatpush1.msra.mxu0 %v19
  %1429 = vmatprep.subr.mxu0 0.0
  %1430 = vmatpush1.msra.mxu0 %v20
  %1431 = vmatprep.subr.mxu0 0.0
  %1432 = vmatpush1.msra.mxu0 %v21
  %1433 = vmatprep.subr.mxu0 0.0
  %1434 = vmatpush1.msra.mxu0 %v22
  %1435 = vmatprep.subr.mxu0 0.0
  %1436 = vmatpush1.msra.mxu0 %v23
  %1437 = vmatprep.subr.mxu0 0.0
  %1438 = vmatpush1.msra.mxu0 %v24
  %1439 = vmatprep.subr.mxu0 0.0
  %1440 = vmatpush1.msra.mxu0 %v25
  %1441 = vmatprep.subr.mxu0 0.0
  %1442 = vmatpush1.msra.mxu0 %v26
  %1443 = vmatprep.subr.mxu0 0.0
  %1444 = vmatpush1.msra.mxu0 %v27
  %1445 = vmatprep.subr.mxu0 0.0
  %1446 = vmatpush1.msra.mxu0 %v28
  %1447 = vmatprep.subr.mxu0 0.0
  %1448 = vmatpush1.msra.mxu0 %v29
  %1449 = vmatprep.subr.mxu0 0.0
  %1450 = vmatpush1.msra.mxu0 %v30
  %1451 = vmatprep.subr.mxu0 0.0
  %1452 = vmatpush1.msra.mxu0 %v31
  %1453 = vmatprep.subr.mxu0 0.0
  %1454 = vmatpush1.msra.mxu0 %v32
  %1455 = vmatprep.subr.mxu0 0.0
  %1456 = vmatpush1.msra.mxu0 %v33
  %1457 = vmatprep.subr.mxu0 0.0
  %1458 = vmatpush1.msra.mxu0 %v34
  %1459 = vmatprep.subr.mxu0 0.0
  %1460 = vmatpush1.msra.mxu0 %v35
  %1461 = vmatprep.subr.mxu0 0.0
  %1462 = vmatpush1.msra.mxu0 %v36
  %1463 = vmatprep.subr.mxu0 0.0
  %1464 = vmatpush1.msra.mxu0 %v37
  %1465 = vmatprep.subr.mxu0 0.0
  %1466 = vmatpush1.msra.mxu0 %v38
  %1467 = vmatprep.subr.mxu0 0.0
  %1468 = vmatpush1.msra.mxu0 %v39
  %1469 = vmatprep.subr.mxu0 0.0
  %1470 = vmatpush1.msra.mxu0 %v40
  %1471 = vmatprep.subr.mxu0 0.0
  %1472 = vmatpush1.msra.mxu0 %v41
  %1473 = vmatprep.subr.mxu0 0.0
  %1474 = vmatpush1.msra.mxu0 %v42
  %1475 = vmatprep.subr.mxu0 0.0
  %1476 = vmatpush1.msra.mxu0 %v43
  %1477 = vmatprep.subr.mxu0 0.0
  %1478 = vmatpush1.msra.mxu0 %v44
  %1479 = vmatprep.subr.mxu0 0.0
  %1480 = vmatpush1.msra.mxu0 %v45
  %1481 = vmatprep.mubr.f32.mxu0 %v1306
  %1482 = vmatmul.mubr.f32.gmra.mrb[0].mxu0 %v1305
  %v1483 = vpop.f32.mrb[0].mxu0
  %v1484 = vadd.f32 0.0, %v1483
  %v1485 = vpop.f32.mrb[0].mxu0
  %1486 = vmatprep.mubr.f32.mxu0 %v1310
  %1487 = vmatmul.mubr.f32.gmra.mrb[0].mxu0 %v1309
  %v1488 = vpop.f32.mrb[0].mxu0
  %v1489 = vadd.f32 0.0, %v1488
  %v1490 = vpop.f32.mrb[0].mxu0
  %1491 = vmatprep.mubr.f32.mxu0 %v1314
  %1492 = vmatmul.mubr.f32.gmra.mrb[0].mxu0 %v1313
  %v1493 = vpop.f32.mrb[0].mxu0
  %v1494 = vadd.f32 0.0, %v1493
  %v1495 = vpop.f32.mrb[0].mxu0
  %1496 = vmatprep.mubr.f32.mxu0 %v1318
  %1497 = vmatmul.mubr.f32.gmra.mrb[0].mxu0 %v1317
  %v1498 = vpop.f32.mrb[0].mxu0
  %v1499 = vadd.f32 0.0, %v1498
  %v1500 = vpop.f32.mrb[0].mxu0
  %1501 = vmatprep.mubr.f32.mxu0 %v1322
  %1502 = vmatmul.mubr.f32.gmra.mrb[0].mxu0 %v1321
  %v1503 = vpop.f32.mrb[0].mxu0
  %v1504 = vadd.f32 0.0, %v1503
  %v1505 = vpop.f32.mrb[0].mxu0
  %1506 = vmatprep.mubr.f32.mxu0 %v1326
  %1507 = vmatmul.mubr.f32.gmra.mrb[0].mxu0 %v1325
  %v1508 = vpop.f32.mrb[0].mxu0
  %v1509 = vadd.f32 0.0, %v1508
  %v1510 = vpop.f32.mrb[0].mxu0
  %1511 = vmatprep.mubr.f32.mxu0 %v1330
  %1512 = vmatmul.mubr.f32.gmra.mrb[0].mxu0 %v1329
  %v1513 = vpop.f32.mrb[0].mxu0
  %v1514 = vadd.f32 0.0, %v1513
  %v1515 = vpop.f32.mrb[0].mxu0
  %1516 = vmatprep.mubr.f32.mxu0 %v1334
  %1517 = vmatmul.mubr.f32.gmra.mrb[0].mxu0 %v1333
  %v1518 = vpop.f32.mrb[0].mxu0
  %v1519 = vadd.f32 0.0, %v1518
  %v1520 = vpop.f32.mrb[0].mxu0
  %1521 = vmatprep.mubr.f32.mxu0 %v1338
  %1522 = vmatmul.mubr.f32.gmra.mrb[0].mxu0 %v1337
  %v1523 = vpop.f32.mrb[0].mxu0
  %v1524 = vadd.f32 0.0, %v1523
  %v1525 = vpop.f32.mrb[0].mxu0
  %1526 = vmatprep.mubr.f32.mxu0 %v1342
  %1527 = vmatmul.mubr.f32.gmra.mrb[0].mxu0 %v1341
  %v1528 = vpop.f32.mrb[0].mxu0
  %v1529 = vadd.f32 0.0, %v1528
  %v1530 = vpop.f32.mrb[0].mxu0
  %1531 = vmatprep.mubr.f32.mxu0 %v1346
  %1532 = vmatmul.mubr.f32.gmra.mrb[0].mxu0 %v1345
  %v1533 = vpop.f32.mrb[0].mxu0
  %v1534 = vadd.f32 0.0, %v1533
  %v1535 = vpop.f32.mrb[0].mxu0
  %1536 = vmatprep.mubr.f32.mxu0 %v1350
  %1537 = vmatmul.mubr.f32.gmra.mrb[0].mxu0 %v1349
  %v1538 = vpop.f32.mrb[0].mxu0
  %v1539 = vadd.f32 0.0, %v1538
  %v1540 = vpop.f32.mrb[0].mxu0
  %1541 = vmatprep.mubr.f32.mxu0 %v1354
  %1542 = vmatmul.mubr.f32.gmra.mrb[0].mxu0 %v1353
  %v1543 = vpop.f32.mrb[0].mxu0
  %v1544 = vadd.f32 0.0, %v1543
  %v1545 = vpop.f32.mrb[0].mxu0
  %1546 = vmatprep.mubr.f32.mxu0 %v1358
  %1547 = vmatmul.mubr.f32.gmra.mrb[0].mxu0 %v1357
  %v1548 = vpop.f32.mrb[0].mxu0
  %v1549 = vadd.f32 0.0, %v1548
  %v1550 = vpop.f32.mrb[0].mxu0
  %1551 = vmatprep.mubr.f32.mxu0 %v1362
  %1552 = vmatmul.mubr.f32.gmra.mrb[0].mxu0 %v1361
  %v1553 = vpop.f32.mrb[0].mxu0
  %v1554 = vadd.f32 0.0, %v1553
  %v1555 = vpop.f32.mrb[0].mxu0
  %1556 = vmatprep.mubr.f32.mxu0 %v1366
  %1557 = vmatmul.mubr.f32.gmra.mrb[0].mxu0 %v1365
  %v1558 = vpop.f32.mrb[0].mxu0
  %v1559 = vadd.f32 0.0, %v1558
  %v1560 = vpop.f32.mrb[0].mxu0
  %1561 = vdwg.mxu0
  %1562 = vmatprep.subr.mxu0 0.0
  %1563 = vmatpush1.msra.mxu0 %v46
  %1564 = vmatprep.subr.mxu0 0.0
  %1565 = vmatpush1.msra.mxu0 %v47
  %1566 = vmatprep.subr.mxu0 0.0
  %1567 = vmatpush1.msra.mxu0 %v48
  %1568 = vmatprep.subr.mxu0 0.0
  %1569 = vmatpush1.msra.mxu0 %v49
  %1570 = vmatprep.subr.mxu0 0.0
  %1571 = vmatpush1.msra.mxu0 %v50
  %1572 = vmatprep.subr.mxu0 0.0
  %1573 = vmatpush1.msra.mxu0 %v51
  %1574 = vmatprep.subr.mxu0 0.0
  %1575 = vmatpush1.msra.mxu0 %v52
  %1576 = vmatprep.subr.mxu0 0.0
  %1577 = vmatpush1.msra.mxu0 %v53
  %1578 = vmatprep.subr.mxu0 0.0
  %1579 = vmatpush1.msra.mxu0 %v54
  %1580 = vmatprep.subr.mxu0 0.0
  %1581 = vmatpush1.msra.mxu0 %v55
  %1582 = vmatprep.subr.mxu0 0.0
  %1583 = vmatpush1.msra.mxu0 %v56
  %1584 = vmatprep.subr.mxu0 0.0
  %1585 = vmatpush1.msra.mxu0 %v57
  %1586 = vmatprep.subr.mxu0 0.0
  %1587 = vmatpush1.msra.mxu0 %v58
  %1588 = vmatprep.subr.mxu0 0.0
  %1589 = vmatpush1.msra.mxu0 %v59
  %1590 = vmatprep.subr.mxu0 0.0
  %1591 = vmatpush1.msra.mxu0 %v60
  %1592 = vmatprep.subr.mxu0 0.0
  %1593 = vmatpush1.msra.mxu0 %v61
  %1594 = vmatprep.subr.mxu0 0.0
  %1595 = vmatpush1.msra.mxu0 %v62
  %1596 = vmatprep.subr.mxu0 0.0
  %1597 = vmatpush1.msra.mxu0 0.0
  %1598 = vmatprep.subr.mxu0 0.0
  %1599 = vmatpush1.msra.mxu0 0.0
  %1600 = vmatprep.subr.mxu0 0.0
  %1601 = vmatpush1.msra.mxu0 0.0
  %1602 = vmatprep.subr.mxu0 0.0
  %1603 = vmatpush1.msra.mxu0 0.0
  %1604 = vmatprep.subr.mxu0 0.0
  %1605 = vmatpush1.msra.mxu0 0.0
  %1606 = vmatprep.subr.mxu0 0.0
  %1607 = vmatpush1.msra.mxu0 0.0
  %1608 = vmatprep.subr.mxu0 0.0
  %1609 = vmatpush1.msra.mxu0 0.0
  %1610 = vmatprep.subr.mxu0 0.0
  %1611 = vmatpush1.msra.mxu0 0.0
  %1612 = vmatprep.subr.mxu0 0.0
  %1613 = vmatpush1.msra.mxu0 0.0
  %1614 = vmatprep.subr.mxu0 0.0
  %1615 = vmatpush1.msra.mxu0 0.0
  %1616 = vmatprep.subr.mxu0 0.0
  %1617 = vmatpush1.msra.mxu0 0.0
  %1618 = vmatprep.subr.mxu0 0.0
  %1619 = vmatpush1.msra.mxu0 0.0
  %1620 = vmatprep.subr.mxu0 0.0
  %1621 = vmatpush1.msra.mxu0 0.0
  %1622 = vmatprep.subr.mxu0 0.0
  %1623 = vmatpush1.msra.mxu0 0.0
  %1624 = vmatprep.subr.mxu0 0.0
  %1625 = vmatpush1.msra.mxu0 0.0
  %1626 = vmatprep.mubr.f32.mxu0 %v1370
  %1627 = vmatmul.mubr.f32.gmra.mrb[0].mxu0 %v1307
  %v1628 = vpop.f32.mrb[0].mxu0
  %v1629 = vadd.f32 %v1484, %v1628
  %v1630 = vpop.f32.mrb[0].mxu0
  %1631 = vmatprep.mubr.f32.mxu0 %v1373
  %1632 = vmatmul.mubr.f32.gmra.mrb[0].mxu0 %v1311
  %v1633 = vpop.f32.mrb[0].mxu0
  %v1634 = vadd.f32 %v1489, %v1633
  %v1635 = vpop.f32.mrb[0].mxu0
  %1636 = vmatprep.mubr.f32.mxu0 %v1376
  %1637 = vmatmul.mubr.f32.gmra.mrb[0].mxu0 %v1315
  %v1638 = vpop.f32.mrb[0].mxu0
  %v1639 = vadd.f32 %v1494, %v1638
  %v1640 = vpop.f32.mrb[0].mxu0
  %1641 = vmatprep.mubr.f32.mxu0 %v1379
  %1642 = vmatmul.mubr.f32.gmra.mrb[0].mxu0 %v1319
  %v1643 = vpop.f32.mrb[0].mxu0
  %v1644 = vadd.f32 %v1499, %v1643
  %v1645 = vpop.f32.mrb[0].mxu0
  %1646 = vmatprep.mubr.f32.mxu0 %v1382
  %1647 = vmatmul.mubr.f32.gmra.mrb[0].mxu0 %v1323
  %v1648 = vpop.f32.mrb[0].mxu0
  %v1649 = vadd.f32 %v1504, %v1648
  %v1650 = vpop.f32.mrb[0].mxu0
  %1651 = vmatprep.mubr.f32.mxu0 %v1385
  %1652 = vmatmul.mubr.f32.gmra.mrb[0].mxu0 %v1327
  %v1653 = vpop.f32.mrb[0].mxu0
  %v1654 = vadd.f32 %v1509, %v1653
  %v1655 = vpop.f32.mrb[0].mxu0
  %1656 = vmatprep.mubr.f32.mxu0 %v1388
  %1657 = vmatmul.mubr.f32.gmra.mrb[0].mxu0 %v1331
  %v1658 = vpop.f32.mrb[0].mxu0
  %v1659 = vadd.f32 %v1514, %v1658
  %v1660 = vpop.f32.mrb[0].mxu0
  %1661 = vmatprep.mubr.f32.mxu0 %v1391
  %1662 = vmatmul.mubr.f32.gmra.mrb[0].mxu0 %v1335
  %v1663 = vpop.f32.mrb[0].mxu0
  %v1664 = vadd.f32 %v1519, %v1663
  %v1665 = vpop.f32.mrb[0].mxu0
  %1666 = vmatprep.mubr.f32.mxu0 %v1394
  %1667 = vmatmul.mubr.f32.gmra.mrb[0].mxu0 %v1339
  %v1668 = vpop.f32.mrb[0].mxu0
  %v1669 = vadd.f32 %v1524, %v1668
  %v1670 = vpop.f32.mrb[0].mxu0
  %1671 = vmatprep.mubr.f32.mxu0 %v1397
  %1672 = vmatmul.mubr.f32.gmra.mrb[0].mxu0 %v1343
  %v1673 = vpop.f32.mrb[0].mxu0
  %v1674 = vadd.f32 %v1529, %v1673
  %v1675 = vpop.f32.mrb[0].mxu0
  %1676 = vmatprep.mubr.f32.mxu0 %v1400
  %1677 = vmatmul.mubr.f32.gmra.mrb[0].mxu0 %v1347
  %v1678 = vpop.f32.mrb[0].mxu0
  %v1679 = vadd.f32 %v1534, %v1678
  %v1680 = vpop.f32.mrb[0].mxu0
  %1681 = vmatprep.mubr.f32.mxu0 %v1403
  %1682 = vmatmul.mubr.f32.gmra.mrb[0].mxu0 %v1351
  %v1683 = vpop.f32.mrb[0].mxu0
  %v1684 = vadd.f32 %v1539, %v1683
  %v1685 = vpop.f32.mrb[0].mxu0
  %1686 = vmatprep.mubr.f32.mxu0 %v1406
  %1687 = vmatmul.mubr.f32.gmra.mrb[0].mxu0 %v1355
  %v1688 = vpop.f32.mrb[0].mxu0
  %v1689 = vadd.f32 %v1544, %v1688
  %v1690 = vpop.f32.mrb[0].mxu0
  %1691 = vmatprep.mubr.f32.mxu0 %v1409
  %1692 = vmatmul.mubr.f32.gmra.mrb[0].mxu0 %v1359
  %v1693 = vpop.f32.mrb[0].mxu0
  %v1694 = vadd.f32 %v1549, %v1693
  %v1695 = vpop.f32.mrb[0].mxu0
  %1696 = vmatprep.mubr.f32.mxu0 %v1412
  %1697 = vmatmul.mubr.f32.gmra.mrb[0].mxu0 %v1363
  %v1698 = vpop.f32.mrb[0].mxu0
  %v1699 = vadd.f32 %v1554, %v1698
  %v1700 = vpop.f32.mrb[0].mxu0
  %1701 = vmatprep.mubr.f32.mxu0 %v1415
  %1702 = vmatmul.mubr.f32.gmra.mrb[0].mxu0 %v1367
  %v1703 = vpop.f32.mrb[0].mxu0
  %v1704 = vadd.f32 %v1559, %v1703
  %v1705 = vpop.f32.mrb[0].mxu0
  %1706 = vdwg.mxu0
  %v1707 = vmax.f32 %v1288, %v1629
  %v1708 = vmax.f32 %v1289, %v1634
  %v1709 = vmax.f32 %v1290, %v1639
  %v1710 = vmax.f32 %v1291, %v1644
  %v1711 = vmax.f32 %v1292, %v1649
  %v1712 = vmax.f32 %v1293, %v1654
  %v1713 = vmax.f32 %v1294, %v1659
  %v1714 = vmax.f32 %v1295, %v1664
  %v1715 = vmax.f32 %v1296, %v1669
  %v1716 = vmax.f32 %v1297, %v1674
  %v1717 = vmax.f32 %v1298, %v1679
  %v1718 = vmax.f32 %v1299, %v1684
  %v1719 = vmax.f32 %v1300, %v1689
  %v1720 = vmax.f32 %v1301, %v1694
  %v1721 = vmax.f32 %v1302, %v1699
  %v1722 = vmax.f32 %v1303, %v1704
  %v1723 = vld [vmem:[%s2] sm:$0x1]
  %v1725 = vlaneseq
  %v1726 = vshrl.u32 %v1725, 7
  %v1727 = vsub.s32 0, %v1726
  %v1728 = vrot.slane %v1723, %v1727
  %v1730 = vadd.f32 %v1707, %v1728
  %v1731 = vadd.f32 %v1708, %v1728
  %v1732 = vadd.f32 %v1709, %v1728
  %v1733 = vadd.f32 %v1710, %v1728
  %v1734 = vadd.f32 %v1711, %v1728
  %v1735 = vadd.f32 %v1712, %v1728
  %v1736 = vadd.f32 %v1713, %v1728
  %v1737 = vadd.f32 %v1714, %v1728
  %v1738 = vadd.f32 %v1715, %v1728
  %v1739 = vadd.f32 %v1716, %v1728
  %v1740 = vadd.f32 %v1717, %v1728
  %v1741 = vadd.f32 %v1718, %v1728
  %v1742 = vadd.f32 %v1719, %v1728
  %v1743 = vadd.f32 %v1720, %v1728
  %v1744 = vadd.f32 %v1721, %v1728
  %v1745 = vadd.f32 %v1722, %v1728
  %v1746 = vmax.f32 %v1730, 0.0
  %v1747 = vmax.f32 %v1731, 0.0
  %v1748 = vmax.f32 %v1732, 0.0
  %v1749 = vmax.f32 %v1733, 0.0
  %v1750 = vmax.f32 %v1734, 0.0
  %v1751 = vmax.f32 %v1735, 0.0
  %v1752 = vmax.f32 %v1736, 0.0
  %v1753 = vmax.f32 %v1737, 0.0
  %v1754 = vmax.f32 %v1738, 0.0
  %v1755 = vmax.f32 %v1739, 0.0
  %v1756 = vmax.f32 %v1740, 0.0
  %v1757 = vmax.f32 %v1741, 0.0
  %v1758 = vmax.f32 %v1742, 0.0
  %v1759 = vmax.f32 %v1743, 0.0
  %v1760 = vmax.f32 %v1744, 0.0
  %v1761 = vmax.f32 %v1745, 0.0
  %vm1762 = vcmask 130048
  %1763 = vst.msk [vmem:[%s3] sm:$0xff] %vm1762, %v1746
  %1764 = vst.msk [vmem:[%s3 + $0x8] sm:$0xff] %vm1762, %v1747
  %1765 = vst.msk [vmem:[%s3 + $0x10] sm:$0xff] %vm1762, %v1748
  %1766 = vst.msk [vmem:[%s3 + $0x18] sm:$0xff] %vm1762, %v1749
  %1767 = vst.msk [vmem:[%s3 + $0x20] sm:$0xff] %vm1762, %v1750
  %1768 = vst.msk [vmem:[%s3 + $0x28] sm:$0xff] %vm1762, %v1751
  %1769 = vst.msk [vmem:[%s3 + $0x30] sm:$0xff] %vm1762, %v1752
  %1770 = vst.msk [vmem:[%s3 + $0x38] sm:$0xff] %vm1762, %v1753
  %1771 = vst.msk [vmem:[%s3 + $0x40] sm:$0xff] %vm1762, %v1754
  %1772 = vst.msk [vmem:[%s3 + $0x48] sm:$0xff] %vm1762, %v1755
  %1773 = vst.msk [vmem:[%s3 + $0x50] sm:$0xff] %vm1762, %v1756
  %1774 = vst.msk [vmem:[%s3 + $0x58] sm:$0xff] %vm1762, %v1757
  %1775 = vst.msk [vmem:[%s3 + $0x60] sm:$0xff] %vm1762, %v1758
  %1776 = vst.msk [vmem:[%s3 + $0x68] sm:$0xff] %vm1762, %v1759
  %1777 = vst.msk [vmem:[%s3 + $0x70] sm:$0xff] %vm1762, %v1760
  %1778 = vst.msk [vmem:[%s3 + $0x78] sm:$0xff] %vm1762, %v1761
  // Predicated region
  $region14: #{cnn_forward.4} parent=0 // pred_check
    _
  $region15: #{cnn_forward.4} parent=0 // pred_check_branch
    %1780 = sbr.rel (0) target = $region17
  $region16: #{cnn_forward.4} parent=0 // pred_region
    _
  $region17: #{cnn_forward.4} parent=0 // pred_fallthru
    _
  // Predicated region
  $region18: #{cnn_forward.4} parent=0 // pred_check
    _
  $region19: #{cnn_forward.4} parent=0 // pred_check_branch
    %1782 = sbr.rel (0) target = $region21
  $region20: #{cnn_forward.4} parent=0 // pred_region
    _
  $region21: #{cnn_forward.4} parent=0 // pred_fallthru
    _

// kernel: cnn_forward.5
$region0: #{cnn_forward.5}
  #allocation0 [shape = 'u32[]', space=smem, size = 0x4, offset = 0x4, fixed_abs, tag = 'smem constant byte address 0x4 - core index']
  #allocation1 [shape = 'u32[144,128]{1,0:T(1,128)}', space=vmem, size = 0x12000, scoped, tag = 'internal scratch']
  %s0 = inlined_call_operand.vmem [shape: f32[2,1024], index: 0, kind: input, shape index: {}]
  %s1 = inlined_call_operand.vmem [shape: f32[1024,10], index: 1, kind: input, shape index: {}]
  %s2 = inlined_call_operand.vmem [shape: f32[1,10], index: 2, kind: input, shape index: {}]
  %s3 = inlined_call_operand.hbm [shape: f32[2,10], index: 3, kind: output, shape index: {}]
  %s4 = sld [smem:[#allocation0]]
  $region22: #{cnn_forward.5} parent=0
    _
  %s6 = ssub.s32 1, %s4
  %s7 = scalar_select 0, %s6, %s4
  $region1: #{cnn_forward.5} parent=0
    #allocation2 [shape = 'u8[1024]{0}', space=vmem, size = 0x400, scoped, tag = 'output window, operand 0, single buffered']
    #allocation3 [shape = 's32[1]{0}', space=sflag, size = 0x4, scoped, tag = 'scoped memory for cnn_forward.5']
    %8 = vsyncpa [#allocation3], 0
    // Predicated region
    $region2: #{cnn_forward.5} parent=1 // pred_check
      _
    $region3: #{cnn_forward.5} parent=1 // pred_check_branch
      %10 = sbr.rel (0) target = $region5
    $region4: #{cnn_forward.5} parent=1 // pred_region
      _
    $region5: #{cnn_forward.5} parent=1 // pred_fallthru
      _
    // Predicated region
    $region6: #{cnn_forward.5} parent=1 // pred_check
      _
    $region7: #{cnn_forward.5} parent=1 // pred_check_branch
      %12 = sbr.rel (0) target = $region9
    $region8: #{cnn_forward.5} parent=1 // pred_region
      _
    $region9: #{cnn_forward.5} parent=1 // pred_fallthru
      _
    // Predicated region
    $region10: #{cnn_forward.5} parent=1 // pred_check
      _
    $region11: #{cnn_forward.5} parent=1 // pred_check_branch
      %14 = sbr.rel (0) target = $region13
    $region12: #{cnn_forward.5} parent=1 // pred_region
      _
    $region13: #{cnn_forward.5} parent=1 // pred_fallthru
      _
    %v15 = vld [vmem:[%s0] sm:$0xff]
    %v16 = vld [vmem:[%s0 + $0x8] sm:$0xff]
    %v17 = vld [vmem:[%s1] sm:$0xff]
    %v18 = vld [vmem:[%s1 + $0x8] sm:$0xff]
    %v19 = vld [vmem:[%s1 + $0x10] sm:$0xff]
    %v20 = vld [vmem:[%s1 + $0x18] sm:$0xff]
    %v21 = vld [vmem:[%s1 + $0x20] sm:$0xff]
    %v22 = vld [vmem:[%s1 + $0x28] sm:$0xff]
    %v23 = vld [vmem:[%s1 + $0x30] sm:$0xff]
    %v24 = vld [vmem:[%s1 + $0x38] sm:$0xff]
    %v25 = vld [vmem:[%s1 + $0x40] sm:$0xff]
    %v26 = vld [vmem:[%s1 + $0x48] sm:$0xff]
    %v27 = vld [vmem:[%s1 + $0x50] sm:$0xff]
    %v28 = vld [vmem:[%s1 + $0x58] sm:$0xff]
    %v29 = vld [vmem:[%s1 + $0x60] sm:$0xff]
    %v30 = vld [vmem:[%s1 + $0x68] sm:$0xff]
    %v31 = vld [vmem:[%s1 + $0x70] sm:$0xff]
    %v32 = vld [vmem:[%s1 + $0x78] sm:$0xff]
    %v33 = vld [vmem:[%s1 + $0x80] sm:$0xff]
    %v34 = vld [vmem:[%s1 + $0x88] sm:$0xff]
    %v35 = vld [vmem:[%s1 + $0x90] sm:$0xff]
    %v36 = vld [vmem:[%s1 + $0x98] sm:$0xff]
    %v37 = vld [vmem:[%s1 + $0xa0] sm:$0xff]
    %v38 = vld [vmem:[%s1 + $0xa8] sm:$0xff]
    %v39 = vld [vmem:[%s1 + $0xb0] sm:$0xff]
    %v40 = vld [vmem:[%s1 + $0xb8] sm:$0xff]
    %v41 = vld [vmem:[%s1 + $0xc0] sm:$0xff]
    %v42 = vld [vmem:[%s1 + $0xc8] sm:$0xff]
    %v43 = vld [vmem:[%s1 + $0xd0] sm:$0xff]
    %v44 = vld [vmem:[%s1 + $0xd8] sm:$0xff]
    %v45 = vld [vmem:[%s1 + $0xe0] sm:$0xff]
    %v46 = vld [vmem:[%s1 + $0xe8] sm:$0xff]
    %v47 = vld [vmem:[%s1 + $0xf0] sm:$0xff]
    %v48 = vld [vmem:[%s1 + $0xf8] sm:$0xff]
    %v49 = vld [vmem:[%s1 + $0x100] sm:$0xff]
    %v50 = vld [vmem:[%s1 + $0x108] sm:$0xff]
    %v51 = vld [vmem:[%s1 + $0x110] sm:$0xff]
    %v52 = vld [vmem:[%s1 + $0x118] sm:$0xff]
    %v53 = vld [vmem:[%s1 + $0x120] sm:$0xff]
    %v54 = vld [vmem:[%s1 + $0x128] sm:$0xff]
    %v55 = vld [vmem:[%s1 + $0x130] sm:$0xff]
    %v56 = vld [vmem:[%s1 + $0x138] sm:$0xff]
    %v57 = vld [vmem:[%s1 + $0x140] sm:$0xff]
    %v58 = vld [vmem:[%s1 + $0x148] sm:$0xff]
    %v59 = vld [vmem:[%s1 + $0x150] sm:$0xff]
    %v60 = vld [vmem:[%s1 + $0x158] sm:$0xff]
    %v61 = vld [vmem:[%s1 + $0x160] sm:$0xff]
    %v62 = vld [vmem:[%s1 + $0x168] sm:$0xff]
    %v63 = vld [vmem:[%s1 + $0x170] sm:$0xff]
    %v64 = vld [vmem:[%s1 + $0x178] sm:$0xff]
    %v65 = vld [vmem:[%s1 + $0x180] sm:$0xff]
    %v66 = vld [vmem:[%s1 + $0x188] sm:$0xff]
    %v67 = vld [vmem:[%s1 + $0x190] sm:$0xff]
    %v68 = vld [vmem:[%s1 + $0x198] sm:$0xff]
    %v69 = vld [vmem:[%s1 + $0x1a0] sm:$0xff]
    %v70 = vld [vmem:[%s1 + $0x1a8] sm:$0xff]
    %v71 = vld [vmem:[%s1 + $0x1b0] sm:$0xff]
    %v72 = vld [vmem:[%s1 + $0x1b8] sm:$0xff]
    %v73 = vld [vmem:[%s1 + $0x1c0] sm:$0xff]
    %v74 = vld [vmem:[%s1 + $0x1c8] sm:$0xff]
    %v75 = vld [vmem:[%s1 + $0x1d0] sm:$0xff]
    %v76 = vld [vmem:[%s1 + $0x1d8] sm:$0xff]
    %v77 = vld [vmem:[%s1 + $0x1e0] sm:$0xff]
    %v78 = vld [vmem:[%s1 + $0x1e8] sm:$0xff]
    %v79 = vld [vmem:[%s1 + $0x1f0] sm:$0xff]
    %v80 = vld [vmem:[%s1 + $0x1f8] sm:$0xff]
    %v81 = vld [vmem:[%s1 + $0x200] sm:$0xff]
    %v82 = vld [vmem:[%s1 + $0x208] sm:$0xff]
    %v83 = vld [vmem:[%s1 + $0x210] sm:$0xff]
    %v84 = vld [vmem:[%s1 + $0x218] sm:$0xff]
    %v85 = vld [vmem:[%s1 + $0x220] sm:$0xff]
    %v86 = vld [vmem:[%s1 + $0x228] sm:$0xff]
    %v87 = vld [vmem:[%s1 + $0x230] sm:$0xff]
    %v88 = vld [vmem:[%s1 + $0x238] sm:$0xff]
    %v89 = vld [vmem:[%s1 + $0x240] sm:$0xff]
    %v90 = vld [vmem:[%s1 + $0x248] sm:$0xff]
    %v91 = vld [vmem:[%s1 + $0x250] sm:$0xff]
    %v92 = vld [vmem:[%s1 + $0x258] sm:$0xff]
    %v93 = vld [vmem:[%s1 + $0x260] sm:$0xff]
    %v94 = vld [vmem:[%s1 + $0x268] sm:$0xff]
    %v95 = vld [vmem:[%s1 + $0x270] sm:$0xff]
    %v96 = vld [vmem:[%s1 + $0x278] sm:$0xff]
    %v97 = vld [vmem:[%s1 + $0x280] sm:$0xff]
    %v98 = vld [vmem:[%s1 + $0x288] sm:$0xff]
    %v99 = vld [vmem:[%s1 + $0x290] sm:$0xff]
    %v100 = vld [vmem:[%s1 + $0x298] sm:$0xff]
    %v101 = vld [vmem:[%s1 + $0x2a0] sm:$0xff]
    %v102 = vld [vmem:[%s1 + $0x2a8] sm:$0xff]
    %v103 = vld [vmem:[%s1 + $0x2b0] sm:$0xff]
    %v104 = vld [vmem:[%s1 + $0x2b8] sm:$0xff]
    %v105 = vld [vmem:[%s1 + $0x2c0] sm:$0xff]
    %v106 = vld [vmem:[%s1 + $0x2c8] sm:$0xff]
    %v107 = vld [vmem:[%s1 + $0x2d0] sm:$0xff]
    %v108 = vld [vmem:[%s1 + $0x2d8] sm:$0xff]
    %v109 = vld [vmem:[%s1 + $0x2e0] sm:$0xff]
    %v110 = vld [vmem:[%s1 + $0x2e8] sm:$0xff]
    %v111 = vld [vmem:[%s1 + $0x2f0] sm:$0xff]
    %v112 = vld [vmem:[%s1 + $0x2f8] sm:$0xff]
    %v113 = vld [vmem:[%s1 + $0x300] sm:$0xff]
    %v114 = vld [vmem:[%s1 + $0x308] sm:$0xff]
    %v115 = vld [vmem:[%s1 + $0x310] sm:$0xff]
    %v116 = vld [vmem:[%s1 + $0x318] sm:$0xff]
    %v117 = vld [vmem:[%s1 + $0x320] sm:$0xff]
    %v118 = vld [vmem:[%s1 + $0x328] sm:$0xff]
    %v119 = vld [vmem:[%s1 + $0x330] sm:$0xff]
    %v120 = vld [vmem:[%s1 + $0x338] sm:$0xff]
    %v121 = vld [vmem:[%s1 + $0x340] sm:$0xff]
    %v122 = vld [vmem:[%s1 + $0x348] sm:$0xff]
    %v123 = vld [vmem:[%s1 + $0x350] sm:$0xff]
    %v124 = vld [vmem:[%s1 + $0x358] sm:$0xff]
    %v125 = vld [vmem:[%s1 + $0x360] sm:$0xff]
    %v126 = vld [vmem:[%s1 + $0x368] sm:$0xff]
    %v127 = vld [vmem:[%s1 + $0x370] sm:$0xff]
    %v128 = vld [vmem:[%s1 + $0x378] sm:$0xff]
    %v129 = vld [vmem:[%s1 + $0x380] sm:$0xff]
    %v130 = vld [vmem:[%s1 + $0x388] sm:$0xff]
    %v131 = vld [vmem:[%s1 + $0x390] sm:$0xff]
    %v132 = vld [vmem:[%s1 + $0x398] sm:$0xff]
    %v133 = vld [vmem:[%s1 + $0x3a0] sm:$0xff]
    %v134 = vld [vmem:[%s1 + $0x3a8] sm:$0xff]
    %v135 = vld [vmem:[%s1 + $0x3b0] sm:$0xff]
    %v136 = vld [vmem:[%s1 + $0x3b8] sm:$0xff]
    %v137 = vld [vmem:[%s1 + $0x3c0] sm:$0xff]
    %v138 = vld [vmem:[%s1 + $0x3c8] sm:$0xff]
    %v139 = vld [vmem:[%s1 + $0x3d0] sm:$0xff]
    %v140 = vld [vmem:[%s1 + $0x3d8] sm:$0xff]
    %v141 = vld [vmem:[%s1 + $0x3e0] sm:$0xff]
    %v142 = vld [vmem:[%s1 + $0x3e8] sm:$0xff]
    %v143 = vld [vmem:[%s1 + $0x3f0] sm:$0xff]
    %v144 = vld [vmem:[%s1 + $0x3f8] sm:$0xff]
    %v145 = vld [vmem:[%s2] sm:$0x1]
    %v147 = vlaneseq
    %v148 = vshrl.u32 %v147, 7
    %v149 = vsub.s32 0, %v148
    %v150 = vrot.slane %v145, %v149
    %v154 = vcombine.high %v15, %v15
    %v156 = vunpack.c.l.s4 1983009808
    %v157 = vunpack.c.0.s8 %v156
    %v158 = vlaneseq
    %v159 = vshrl.u32 %v158, 7
    %v160 = vsub.s32 %v157, %v159
    %v161 = vrot.slane %v15, %v160
    %v163 = vunpack.c.l.s4 1983009808
    %v164 = vunpack.c.0.s8 %v163
    %v165 = vlaneseq
    %v166 = vshrl.u32 %v165, 7
    %v167 = vsub.s32 %v164, %v166
    %v168 = vrot.slane %v154, %v167
    %v169 = vcombine.high %v161, %v161
    %v170 = vcombine.high %v168, %v168
    %v171 = vcombine.high %v16, %v16
    %v173 = vunpack.c.l.s4 1983009808
    %v174 = vunpack.c.0.s8 %v173
    %v175 = vlaneseq
    %v176 = vshrl.u32 %v175, 7
    %v177 = vsub.s32 %v174, %v176
    %v178 = vrot.slane %v16, %v177
    %v180 = vunpack.c.l.s4 1983009808
    %v181 = vunpack.c.0.s8 %v180
    %v182 = vlaneseq
    %v183 = vshrl.u32 %v182, 7
    %v184 = vsub.s32 %v181, %v183
    %v185 = vrot.slane %v171, %v184
    %v186 = vcombine.high %v178, %v178
    %v187 = vcombine.high %v185, %v185
    %196 = vmatprep.subr.mxu0 0.0
    %197 = vmatpush1.msra.mxu0 %v17
    %198 = vmatprep.subr.mxu0 0.0
    %199 = vmatpush1.msra.mxu0 %v18
    %200 = vmatprep.subr.mxu0 0.0
    %201 = vmatpush1.msra.mxu0 %v19
    %202 = vmatprep.subr.mxu0 0.0
    %203 = vmatpush1.msra.mxu0 %v20
    %204 = vmatprep.subr.mxu0 0.0
    %205 = vmatpush1.msra.mxu0 %v21
    %206 = vmatprep.subr.mxu0 0.0
    %207 = vmatpush1.msra.mxu0 %v22
    %208 = vmatprep.subr.mxu0 0.0
    %209 = vmatpush1.msra.mxu0 %v23
    %210 = vmatprep.subr.mxu0 0.0
    %211 = vmatpush1.msra.mxu0 %v24
    %212 = vmatprep.subr.mxu0 0.0
    %213 = vmatpush1.msra.mxu0 %v25
    %214 = vmatprep.subr.mxu0 0.0
    %215 = vmatpush1.msra.mxu0 %v26
    %216 = vmatprep.subr.mxu0 0.0
    %217 = vmatpush1.msra.mxu0 %v27
    %218 = vmatprep.subr.mxu0 0.0
    %219 = vmatpush1.msra.mxu0 %v28
    %220 = vmatprep.subr.mxu0 0.0
    %221 = vmatpush1.msra.mxu0 %v29
    %222 = vmatprep.subr.mxu0 0.0
    %223 = vmatpush1.msra.mxu0 %v30
    %224 = vmatprep.subr.mxu0 0.0
    %225 = vmatpush1.msra.mxu0 %v31
    %226 = vmatprep.subr.mxu0 0.0
    %227 = vmatpush1.msra.mxu0 %v32
    %228 = vmatprep.subr.mxu0 0.0
    %229 = vmatpush1.msra.mxu0 %v33
    %230 = vmatprep.subr.mxu0 0.0
    %231 = vmatpush1.msra.mxu0 %v34
    %232 = vmatprep.subr.mxu0 0.0
    %233 = vmatpush1.msra.mxu0 %v35
    %234 = vmatprep.subr.mxu0 0.0
    %235 = vmatpush1.msra.mxu0 %v36
    %236 = vmatprep.subr.mxu0 0.0
    %237 = vmatpush1.msra.mxu0 %v37
    %238 = vmatprep.subr.mxu0 0.0
    %239 = vmatpush1.msra.mxu0 %v38
    %240 = vmatprep.subr.mxu0 0.0
    %241 = vmatpush1.msra.mxu0 %v39
    %242 = vmatprep.subr.mxu0 0.0
    %243 = vmatpush1.msra.mxu0 %v40
    %244 = vmatprep.subr.mxu0 0.0
    %245 = vmatpush1.msra.mxu0 %v41
    %246 = vmatprep.subr.mxu0 0.0
    %247 = vmatpush1.msra.mxu0 %v42
    %248 = vmatprep.subr.mxu0 0.0
    %249 = vmatpush1.msra.mxu0 %v43
    %250 = vmatprep.subr.mxu0 0.0
    %251 = vmatpush1.msra.mxu0 %v44
    %252 = vmatprep.subr.mxu0 0.0
    %253 = vmatpush1.msra.mxu0 %v45
    %254 = vmatprep.subr.mxu0 0.0
    %255 = vmatpush1.msra.mxu0 %v46
    %256 = vmatprep.subr.mxu0 0.0
    %257 = vmatpush1.msra.mxu0 %v47
    %258 = vmatprep.subr.mxu0 0.0
    %259 = vmatpush1.msra.mxu0 %v48
    %260 = vmatprep.mubr.f32.mxu0 %v169
    %261 = vmatmul.mubr.f32.gmra.mrb[0].mxu0 %v161
    %v262 = vpop.f32.mrb[0].mxu0
    %v263 = vadd.f32 %v150, %v262
    %v264 = vpop.f32.mrb[0].mxu0
    %265 = vdwg.mxu0
    %266 = vmatprep.subr.mxu0 0.0
    %267 = vmatpush1.msra.mxu0 %v49
    %268 = vmatprep.subr.mxu0 0.0
    %269 = vmatpush1.msra.mxu0 %v50
    %270 = vmatprep.subr.mxu0 0.0
    %271 = vmatpush1.msra.mxu0 %v51
    %272 = vmatprep.subr.mxu0 0.0
    %273 = vmatpush1.msra.mxu0 %v52
    %274 = vmatprep.subr.mxu0 0.0
    %275 = vmatpush1.msra.mxu0 %v53
    %276 = vmatprep.subr.mxu0 0.0
    %277 = vmatpush1.msra.mxu0 %v54
    %278 = vmatprep.subr.mxu0 0.0
    %279 = vmatpush1.msra.mxu0 %v55
    %280 = vmatprep.subr.mxu0 0.0
    %281 = vmatpush1.msra.mxu0 %v56
    %282 = vmatprep.subr.mxu0 0.0
    %283 = vmatpush1.msra.mxu0 %v57
    %284 = vmatprep.subr.mxu0 0.0
    %285 = vmatpush1.msra.mxu0 %v58
    %286 = vmatprep.subr.mxu0 0.0
    %287 = vmatpush1.msra.mxu0 %v59
    %288 = vmatprep.subr.mxu0 0.0
    %289 = vmatpush1.msra.mxu0 %v60
    %290 = vmatprep.subr.mxu0 0.0
    %291 = vmatpush1.msra.mxu0 %v61
    %292 = vmatprep.subr.mxu0 0.0
    %293 = vmatpush1.msra.mxu0 %v62
    %294 = vmatprep.subr.mxu0 0.0
    %295 = vmatpush1.msra.mxu0 %v63
    %296 = vmatprep.subr.mxu0 0.0
    %297 = vmatpush1.msra.mxu0 %v64
    %298 = vmatprep.subr.mxu0 0.0
    %299 = vmatpush1.msra.mxu0 %v65
    %300 = vmatprep.subr.mxu0 0.0
    %301 = vmatpush1.msra.mxu0 %v66
    %302 = vmatprep.subr.mxu0 0.0
    %303 = vmatpush1.msra.mxu0 %v67
    %304 = vmatprep.subr.mxu0 0.0
    %305 = vmatpush1.msra.mxu0 %v68
    %306 = vmatprep.subr.mxu0 0.0
    %307 = vmatpush1.msra.mxu0 %v69
    %308 = vmatprep.subr.mxu0 0.0
    %309 = vmatpush1.msra.mxu0 %v70
    %310 = vmatprep.subr.mxu0 0.0
    %311 = vmatpush1.msra.mxu0 %v71
    %312 = vmatprep.subr.mxu0 0.0
    %313 = vmatpush1.msra.mxu0 %v72
    %314 = vmatprep.subr.mxu0 0.0
    %315 = vmatpush1.msra.mxu0 %v73
    %316 = vmatprep.subr.mxu0 0.0
    %317 = vmatpush1.msra.mxu0 %v74
    %318 = vmatprep.subr.mxu0 0.0
    %319 = vmatpush1.msra.mxu0 %v75
    %320 = vmatprep.subr.mxu0 0.0
    %321 = vmatpush1.msra.mxu0 %v76
    %322 = vmatprep.subr.mxu0 0.0
    %323 = vmatpush1.msra.mxu0 %v77
    %324 = vmatprep.subr.mxu0 0.0
    %325 = vmatpush1.msra.mxu0 %v78
    %326 = vmatprep.subr.mxu0 0.0
    %327 = vmatpush1.msra.mxu0 %v79
    %328 = vmatprep.subr.mxu0 0.0
    %329 = vmatpush1.msra.mxu0 %v80
    %330 = vmatprep.mubr.f32.mxu0 %v170
    %331 = vmatmul.mubr.f32.gmra.mrb[0].mxu0 %v168
    %v332 = vpop.f32.mrb[0].mxu0
    %v333 = vadd.f32 %v263, %v332
    %v334 = vpop.f32.mrb[0].mxu0
    %335 = vdwg.mxu0
    %336 = vmatprep.subr.mxu0 0.0
    %337 = vmatpush1.msra.mxu0 %v81
    %338 = vmatprep.subr.mxu0 0.0
    %339 = vmatpush1.msra.mxu0 %v82
    %340 = vmatprep.subr.mxu0 0.0
    %341 = vmatpush1.msra.mxu0 %v83
    %342 = vmatprep.subr.mxu0 0.0
    %343 = vmatpush1.msra.mxu0 %v84
    %344 = vmatprep.subr.mxu0 0.0
    %345 = vmatpush1.msra.mxu0 %v85
    %346 = vmatprep.subr.mxu0 0.0
    %347 = vmatpush1.msra.mxu0 %v86
    %348 = vmatprep.subr.mxu0 0.0
    %349 = vmatpush1.msra.mxu0 %v87
    %350 = vmatprep.subr.mxu0 0.0
    %351 = vmatpush1.msra.mxu0 %v88
    %352 = vmatprep.subr.mxu0 0.0
    %353 = vmatpush1.msra.mxu0 %v89
    %354 = vmatprep.subr.mxu0 0.0
    %355 = vmatpush1.msra.mxu0 %v90
    %356 = vmatprep.subr.mxu0 0.0
    %357 = vmatpush1.msra.mxu0 %v91
    %358 = vmatprep.subr.mxu0 0.0
    %359 = vmatpush1.msra.mxu0 %v92
    %360 = vmatprep.subr.mxu0 0.0
    %361 = vmatpush1.msra.mxu0 %v93
    %362 = vmatprep.subr.mxu0 0.0
    %363 = vmatpush1.msra.mxu0 %v94
    %364 = vmatprep.subr.mxu0 0.0
    %365 = vmatpush1.msra.mxu0 %v95
    %366 = vmatprep.subr.mxu0 0.0
    %367 = vmatpush1.msra.mxu0 %v96
    %368 = vmatprep.subr.mxu0 0.0
    %369 = vmatpush1.msra.mxu0 %v97
    %370 = vmatprep.subr.mxu0 0.0
    %371 = vmatpush1.msra.mxu0 %v98
    %372 = vmatprep.subr.mxu0 0.0
    %373 = vmatpush1.msra.mxu0 %v99
    %374 = vmatprep.subr.mxu0 0.0
    %375 = vmatpush1.msra.mxu0 %v100
    %376 = vmatprep.subr.mxu0 0.0
    %377 = vmatpush1.msra.mxu0 %v101
    %378 = vmatprep.subr.mxu0 0.0
    %379 = vmatpush1.msra.mxu0 %v102
    %380 = vmatprep.subr.mxu0 0.0
    %381 = vmatpush1.msra.mxu0 %v103
    %382 = vmatprep.subr.mxu0 0.0
    %383 = vmatpush1.msra.mxu0 %v104
    %384 = vmatprep.subr.mxu0 0.0
    %385 = vmatpush1.msra.mxu0 %v105
    %386 = vmatprep.subr.mxu0 0.0
    %387 = vmatpush1.msra.mxu0 %v106
    %388 = vmatprep.subr.mxu0 0.0
    %389 = vmatpush1.msra.mxu0 %v107
    %390 = vmatprep.subr.mxu0 0.0
    %391 = vmatpush1.msra.mxu0 %v108
    %392 = vmatprep.subr.mxu0 0.0
    %393 = vmatpush1.msra.mxu0 %v109
    %394 = vmatprep.subr.mxu0 0.0
    %395 = vmatpush1.msra.mxu0 %v110
    %396 = vmatprep.subr.mxu0 0.0
    %397 = vmatpush1.msra.mxu0 %v111
    %398 = vmatprep.subr.mxu0 0.0
    %399 = vmatpush1.msra.mxu0 %v112
    %400 = vmatprep.mubr.f32.mxu0 %v186
    %401 = vmatmul.mubr.f32.gmra.mrb[0].mxu0 %v178
    %v402 = vpop.f32.mrb[0].mxu0
    %v403 = vadd.f32 %v333, %v402
    %v404 = vpop.f32.mrb[0].mxu0
    %405 = vdwg.mxu0
    %406 = vmatprep.subr.mxu0 0.0
    %407 = vmatpush1.msra.mxu0 %v113
    %408 = vmatprep.subr.mxu0 0.0
    %409 = vmatpush1.msra.mxu0 %v114
    %410 = vmatprep.subr.mxu0 0.0
    %411 = vmatpush1.msra.mxu0 %v115
    %412 = vmatprep.subr.mxu0 0.0
    %413 = vmatpush1.msra.mxu0 %v116
    %414 = vmatprep.subr.mxu0 0.0
    %415 = vmatpush1.msra.mxu0 %v117
    %416 = vmatprep.subr.mxu0 0.0
    %417 = vmatpush1.msra.mxu0 %v118
    %418 = vmatprep.subr.mxu0 0.0
    %419 = vmatpush1.msra.mxu0 %v119
    %420 = vmatprep.subr.mxu0 0.0
    %421 = vmatpush1.msra.mxu0 %v120
    %422 = vmatprep.subr.mxu0 0.0
    %423 = vmatpush1.msra.mxu0 %v121
    %424 = vmatprep.subr.mxu0 0.0
    %425 = vmatpush1.msra.mxu0 %v122
    %426 = vmatprep.subr.mxu0 0.0
    %427 = vmatpush1.msra.mxu0 %v123
    %428 = vmatprep.subr.mxu0 0.0
    %429 = vmatpush1.msra.mxu0 %v124
    %430 = vmatprep.subr.mxu0 0.0
    %431 = vmatpush1.msra.mxu0 %v125
    %432 = vmatprep.subr.mxu0 0.0
    %433 = vmatpush1.msra.mxu0 %v126
    %434 = vmatprep.subr.mxu0 0.0
    %435 = vmatpush1.msra.mxu0 %v127
    %436 = vmatprep.subr.mxu0 0.0
    %437 = vmatpush1.msra.mxu0 %v128
    %438 = vmatprep.subr.mxu0 0.0
    %439 = vmatpush1.msra.mxu0 %v129
    %440 = vmatprep.subr.mxu0 0.0
    %441 = vmatpush1.msra.mxu0 %v130
    %442 = vmatprep.subr.mxu0 0.0
    %443 = vmatpush1.msra.mxu0 %v131
    %444 = vmatprep.subr.mxu0 0.0
    %445 = vmatpush1.msra.mxu0 %v132
    %446 = vmatprep.subr.mxu0 0.0
    %447 = vmatpush1.msra.mxu0 %v133
    %448 = vmatprep.subr.mxu0 0.0
    %449 = vmatpush1.msra.mxu0 %v134
    %450 = vmatprep.subr.mxu0 0.0
    %451 = vmatpush1.msra.mxu0 %v135
    %452 = vmatprep.subr.mxu0 0.0
    %453 = vmatpush1.msra.mxu0 %v136
    %454 = vmatprep.subr.mxu0 0.0
    %455 = vmatpush1.msra.mxu0 %v137
    %456 = vmatprep.subr.mxu0 0.0
    %457 = vmatpush1.msra.mxu0 %v138
    %458 = vmatprep.subr.mxu0 0.0
    %459 = vmatpush1.msra.mxu0 %v139
    %460 = vmatprep.subr.mxu0 0.0
    %461 = vmatpush1.msra.mxu0 %v140
    %462 = vmatprep.subr.mxu0 0.0
    %463 = vmatpush1.msra.mxu0 %v141
    %464 = vmatprep.subr.mxu0 0.0
    %465 = vmatpush1.msra.mxu0 %v142
    %466 = vmatprep.subr.mxu0 0.0
    %467 = vmatpush1.msra.mxu0 %v143
    %468 = vmatprep.subr.mxu0 0.0
    %469 = vmatpush1.msra.mxu0 %v144
    %470 = vmatprep.mubr.f32.mxu0 %v187
    %471 = vmatmul.mubr.f32.gmra.mrb[0].mxu0 %v185
    %v472 = vpop.f32.mrb[0].mxu0
    %v473 = vadd.f32 %v403, %v472
    %v474 = vpop.f32.mrb[0].mxu0
    %475 = vdwg.mxu0
    %vm476 = vcmask 74752
    %477 = vst.msk [vmem:[#allocation2] sm:$0x3] %vm476, %v473
    // Predicated region
    $region14: #{cnn_forward.5} parent=1 // pred_check
      _
    $region15: #{cnn_forward.5} parent=1 // pred_check_branch
      %479 = sbr.rel (0) target = $region17
    $region16: #{cnn_forward.5} parent=1 // pred_region
      %s481 = ssub.s32 32, 32
      %482 = vsyncadd [#allocation3], %s481
      %s484 = sshll.u32 [#allocation2], 4
      %s485 = int_to_ptr.vmem [resolvable:$true] %s484
      %487 = dma.vmem_to_hbm [thread:$0]  %s485, 32, %s3, [#allocation3]
    $region17: #{cnn_forward.5} parent=1 // pred_fallthru
      _
    // Predicated region
    $region18: #{cnn_forward.5} parent=1 // pred_check
      _
    $region19: #{cnn_forward.5} parent=1 // pred_check_branch
      %489 = sbr.rel (0) target = $region21
    $region20: #{cnn_forward.5} parent=1 // pred_region
      %490 = dma.done [#allocation3], 32
    $region21: #{cnn_forward.5} parent=1 // pred_fallthru
      _
    %491 = vsyncpa [#allocation3], 1

</llo_original>
